<compile_context>
chip_gen: v7x
topology: tpu7x:2x2x1
jax: 0.10.0
libtpu: 0.0.40
codegen_flags: <defaults>
</compile_context>

<pallas_src>
import math
import jax
import jax.numpy as jnp
from jax.experimental import pallas as pl
from jax.experimental.pallas import tpu as pltpu

# -------------------- config (small, consistent with DPR semantics) -------
BATCH = 2
SEQ = 8
HIDDEN = 32
N_HEADS = 2
HEAD_DIM = HIDDEN // N_HEADS
INTERMEDIATE = 64
N_LAYERS = 2
VOCAB = 100
MAX_POS = 32
LN_EPS = 1e-12
N_TOWERS = 2                 # question encoder, context encoder
BS = BATCH * SEQ             # flattened (batch * seq) rows inside the kernel

W_CAT = 4 * HIDDEN + INTERMEDIATE        # [wq*s | wk | wv | wo | w1] columns
W_VEC = max(3 * HIDDEN, INTERMEDIATE)    # packed bias / LayerNorm vector width
N_VEC_ROWS = 8                           # bqkv, bo, ln1g, ln1b, b1, b2, ln2g, ln2b


# -------------------- shared math helpers ---------------------------------
def _layernorm(x, gamma, beta, eps=LN_EPS):
    mean = jnp.mean(x, axis=-1, keepdims=True)
    var = jnp.mean(jnp.square(x - mean), axis=-1, keepdims=True)
    return (x - mean) * jax.lax.rsqrt(var + eps) * gamma + beta


# -------------------- Pallas kernel: fused dual-tower encoder -------------
def fused_encoder_kernel(x_ref, bias_ref, wcat_ref, w2_ref, vec_ref, out_ref):
    """Both towers, all layers, one kernel invocation.

    x_ref    : (N_TOWERS, BS, H)                 embedded activations
    bias_ref : (N_TOWERS, BS, BS)                additive attention bias
                                                 (batch block-diag + padding)
    wcat_ref : (N_TOWERS, N_LAYERS, H, 4H+I)     [wq*scale | wk | wv | wo | w1]
    w2_ref   : (N_TOWERS, N_LAYERS, I, H)        FFN down projection
    vec_ref  : (N_TOWERS, N_LAYERS, 8, W_VEC)    packed biases / LN params
    out_ref  : (N_TOWERS, BS, H)                 final sequence output
    """
    for t in range(N_TOWERS):                       # static: 2 towers
        x = x_ref[t]                                # (BS, H)
        # Hoisted out of the layer loop (broadcast_in_dim is not CSE'd).
        bias_h = jnp.broadcast_to(bias_ref[t][None], (N_HEADS, BS, BS))

        for l in range(N_LAYERS):                   # static layer loop, VMEM-resident
            wcat = wcat_ref[t, l]                   # (H, 4H+I)
            w2 = w2_ref[t, l]                       # (I, H)
            vec = vec_ref[t, l]                     # (8, W_VEC)

            wqkv = wcat[:, :3 * HIDDEN]             # (H, 3H)   scale folded into wq
            wo = wcat[:, 3 * HIDDEN:4 * HIDDEN]     # (H, H)
            w1 = wcat[:, 4 * HIDDEN:4 * HIDDEN + INTERMEDIATE]   # (H, I)

            # ---- fused QKV projection: one MXU matmul ----
            qkv = jnp.dot(x, wqkv, preferred_element_type=jnp.float32) \
                + vec[0, :3 * HIDDEN]               # (BS, 3H)
            q = qkv[:, :HIDDEN]
            k = qkv[:, HIDDEN:2 * HIDDEN]
            v = qkv[:, 2 * HIDDEN:3 * HIDDEN]
            qh = jnp.stack([q[:, h * HEAD_DIM:(h + 1) * HEAD_DIM]
                            for h in range(N_HEADS)])            # (Nh, BS, Dh)
            kh = jnp.stack([k[:, h * HEAD_DIM:(h + 1) * HEAD_DIM]
                            for h in range(N_HEADS)])
            vh = jnp.stack([v[:, h * HEAD_DIM:(h + 1) * HEAD_DIM]
                            for h in range(N_HEADS)])

            # ---- attention (scale already folded into wq/bq) ----
            s = jnp.einsum('nqd,nkd->nqk', qh, kh,
                           preferred_element_type=jnp.float32) + bias_h
            s = s - jnp.max(s, axis=-1, keepdims=True)
            e = jnp.exp(s)
            p = e * pl.reciprocal(jnp.sum(e, axis=-1, keepdims=True), approx=True)
            ctx = jnp.einsum('nqk,nkd->nqd', p, vh,
                             preferred_element_type=jnp.float32)  # (Nh, BS, Dh)

            # ---- concat heads back to lanes, single WO matmul ----
            ctx_cat = jnp.concatenate([ctx[h] for h in range(N_HEADS)], axis=-1)
            attn = jnp.dot(ctx_cat, wo, preferred_element_type=jnp.float32) \
                 + vec[1, :HIDDEN]

            h1 = _layernorm(x + attn, vec[2, :HIDDEN], vec[3, :HIDDEN])

            # ---- feed-forward ----
            ff = jnp.dot(h1, w1, preferred_element_type=jnp.float32) \
               + vec[4, :INTERMEDIATE]
            ff = jax.nn.gelu(ff, approximate=True)
            ff = jnp.dot(ff, w2, preferred_element_type=jnp.float32) \
               + vec[5, :HIDDEN]

            x = _layernorm(h1 + ff, vec[6, :HIDDEN], vec[7, :HIDDEN])

        out_ref[t] = x      # only ~2 KiB HBM store per tower


def fused_dpr_encoders(x_all, bias_all, wcat, w2, vec):
    """Single pallas_call, single grid step, 5 operands total."""
    def full(shape):
        nd = len(shape)
        return pl.BlockSpec(shape, lambda i, _nd=nd: (0,) * _nd)

    return pl.pallas_call(
        fused_encoder_kernel,
        out_shape=jax.ShapeDtypeStruct((N_TOWERS, BS, HIDDEN), jnp.float32),
        grid=(1,),
        in_specs=[full(x_all.shape), full(bias_all.shape),
                  full(wcat.shape), full(w2.shape), full(vec.shape)],
        out_specs=full((N_TOWERS, BS, HIDDEN)),
        compiler_params=pltpu.CompilerParams(
            dimension_semantics=("arbitrary",)),
    )(x_all, bias_all, wcat, w2, vec)


# -------------------- weight packing (JAX glue, outside the kernel) -------
def _pack_towers(q_layers, c_layers):
    """Pack per-layer weights of both towers into 3 slabs.

    Returns:
      wcat : (N_TOWERS, N_LAYERS, H, 4H+I)   [wq*scale | wk | wv | wo | w1]
      w2   : (N_TOWERS, N_LAYERS, I, H)
      vec  : (N_TOWERS, N_LAYERS, 8, W_VEC)  rows = bqkv(*scale on bq), bo,
                                             ln1g, ln1b, b1, b2, ln2g, ln2b
    """
    scale = 1.0 / math.sqrt(HEAD_DIM)

    def pad_row(v):
        v = v.reshape(-1)
        return jnp.pad(v, (0, W_VEC - v.shape[0]))

    def pack_layer(lp):
        wcat = jnp.concatenate(
            [lp["wq"] * scale, lp["wk"], lp["wv"], lp["wo"], lp["w1"]], axis=1)
        bqkv = jnp.concatenate(
            [lp["bq"].reshape(-1) * scale, lp["bk"].reshape(-1),
             lp["bv"].reshape(-1)])
        vec = jnp.stack([
            pad_row(bqkv), pad_row(lp["bo"]),
            pad_row(lp["ln1g"]), pad_row(lp["ln1b"]),
            pad_row(lp["b1"]), pad_row(lp["b2"]),
            pad_row(lp["ln2g"]), pad_row(lp["ln2b"]),
        ], axis=0)
        return wcat, lp["w2"], vec

    wcats, w2s, vecs = [], [], []
    for layers in (q_layers, c_layers):
        for lp in layers:
            a, b, c = pack_layer(lp)
            wcats.append(a)
            w2s.append(b)
            vecs.append(c)

    wcat = jnp.stack(wcats).reshape(N_TOWERS, N_LAYERS, HIDDEN, W_CAT)
    w2 = jnp.stack(w2s).reshape(N_TOWERS, N_LAYERS, INTERMEDIATE, HIDDEN)
    vec = jnp.stack(vecs).reshape(N_TOWERS, N_LAYERS, N_VEC_ROWS, W_VEC)
    return wcat, w2, vec


# -------------------- JAX glue: embeddings, masks, pooling -----------------
def embed(input_ids, ep):
    we = ep["word"][input_ids]                             # (B, S, H) gather
    pe = ep["pos"][jnp.arange(input_ids.shape[1])][None]   # (1, S, H)
    te = ep["type"][0][None, None]                         # (1, 1, H) token_type=0
    return _layernorm(we + pe + te, ep["lng"], ep["lnb"])


def _make_attn_bias(attention_mask):
    """(B, S) padding mask -> (B*S, B*S) additive bias (batch block-diag)."""
    batch_idx = jnp.arange(BS) // SEQ
    same_batch = batch_idx[:, None] == batch_idx[None, :]
    valid_key = attention_mask.reshape(BS).astype(bool)
    return jnp.where(same_batch & valid_key[None, :], 0.0, -1e9).astype(jnp.float32)


def dpr_combined_forward(q_params, c_params,
                         question_input_ids, question_attention_mask,
                         context_input_ids, context_attention_mask):
    xq = embed(question_input_ids, q_params["emb"]).reshape(BS, HIDDEN)
    xc = embed(context_input_ids, c_params["emb"]).reshape(BS, HIDDEN)
    x_all = jnp.stack([xq, xc], axis=0)                               # (2, BS, H)
    bias_all = jnp.stack([_make_attn_bias(question_attention_mask),
                          _make_attn_bias(context_attention_mask)], axis=0)
    wcat, w2, vec = _pack_towers(q_params["layers"], c_params["layers"])

    seq_out = fused_dpr_encoders(x_all, bias_all, wcat, w2, vec)      # (2, BS, H)
    seq_out = seq_out.reshape(N_TOWERS, BATCH, SEQ, HIDDEN)
    # DPR pooler_output (projection_dim=0) == [CLS] hidden state
    return seq_out[0, :, 0, :], seq_out[1, :, 0, :]


# -------------------- pure-JAX reference (for correctness check) ----------
def _ref_layer(x, attn_bias, lp):
    q = x @ lp["wq"] + lp["bq"]
    k = x @ lp["wk"] + lp["bk"]
    v = x @ lp["wv"] + lp["bv"]
    scale = 1.0 / math.sqrt(HEAD_DIM)
    ctxs = []
    for h in range(N_HEADS):
        sl = slice(h * HEAD_DIM, (h + 1) * HEAD_DIM)
        s = jnp.einsum("bqd,bkd->bqk", q[..., sl], k[..., sl]) * scale + attn_bias
        p = jax.nn.softmax(s, axis=-1)
        ctxs.append(jnp.einsum("bqk,bkd->bqd", p, v[..., sl]))
    ctx = jnp.concatenate(ctxs, axis=-1)
    h1 = _layernorm(x + ctx @ lp["wo"] + lp["bo"], lp["ln1g"], lp["ln1b"])
    ff = jax.nn.gelu(h1 @ lp["w1"] + lp["b1"], approximate=True) @ lp["w2"] + lp["b2"]
    return _layernorm(h1 + ff, lp["ln2g"], lp["ln2b"])


def _ref_encoder(input_ids, attention_mask, params):
    x = embed(input_ids, params["emb"])
    attn_bias = ((1.0 - attention_mask.astype(jnp.float32)) * -1e9)[:, None, :]
    for lp in params["layers"]:
        x = _ref_layer(x, attn_bias, lp)
    return x[:, 0, :]


# -------------------- deterministic parameter init ------------------------
def _init_layer(key):
    ks = jax.random.split(key, 6)
    n = lambda k, s: 0.02 * jax.random.normal(k, s, dtype=jnp.float32)
    return {
        "wq": n(ks[0], (HIDDEN, HIDDEN)), "bq": jnp.zeros((1, HIDDEN), jnp.float32),
        "wk": n(ks[1], (HIDDEN, HIDDEN)), "bk": jnp.zeros((1, HIDDEN), jnp.float32),
        "wv": n(ks[2], (HIDDEN, HIDDEN)), "bv": jnp.zeros((1, HIDDEN), jnp.float32),
        "wo": n(ks[3], (HIDDEN, HIDDEN)), "bo": jnp.zeros((1, HIDDEN), jnp.float32),
        "ln1g": jnp.ones((1, HIDDEN), jnp.float32), "ln1b": jnp.zeros((1, HIDDEN), jnp.float32),
        "w1": n(ks[4], (HIDDEN, INTERMEDIATE)), "b1": jnp.zeros((1, INTERMEDIATE), jnp.float32),
        "w2": n(ks[5], (INTERMEDIATE, HIDDEN)), "b2": jnp.zeros((1, HIDDEN), jnp.float32),
        "ln2g": jnp.ones((1, HIDDEN), jnp.float32), "ln2b": jnp.zeros((1, HIDDEN), jnp.float32),
    }


def _init_encoder(key):
    ks = jax.random.split(key, N_LAYERS + 3)
    n = lambda k, s: 0.02 * jax.random.normal(k, s, dtype=jnp.float32)
    return {
        "emb": {
            "word": n(ks[0], (VOCAB, HIDDEN)),
            "pos": n(ks[1], (MAX_POS, HIDDEN)),
            "type": n(ks[2], (2, HIDDEN)),
            "lng": jnp.ones((HIDDEN,), jnp.float32),
            "lnb": jnp.zeros((HIDDEN,), jnp.float32),
        },
        "layers": [_init_layer(ks[3 + i]) for i in range(N_LAYERS)],
    }


# -------------------- main -------------------------------------------------
if __name__ == "__main__":
    key = jax.random.PRNGKey(0)
    k_q_ids, k_c_ids, k_qp, k_cp = jax.random.split(key, 4)

    q_params = _init_encoder(k_qp)
    c_params = _init_encoder(k_cp)

    question_input_ids = jax.random.randint(k_q_ids, (BATCH, SEQ), 0, VOCAB, dtype=jnp.int32)
    context_input_ids = jax.random.randint(k_c_ids, (BATCH, SEQ), 0, VOCAB, dtype=jnp.int32)
    question_attention_mask = jnp.ones((BATCH, SEQ), dtype=jnp.int32)
    # context has some padding to exercise the attention mask path
    context_attention_mask = jnp.concatenate(
        [jnp.ones((BATCH, SEQ - 2), jnp.int32), jnp.zeros((BATCH, 2), jnp.int32)], axis=1)

    forward = jax.jit(dpr_combined_forward)
    q_out, c_out = forward(q_params, c_params,
                           question_input_ids, question_attention_mask,
                           context_input_ids, context_attention_mask)
    jax.block_until_ready((q_out, c_out))

    # correctness check against an independent pure-JAX reference
    q_ref = _ref_encoder(question_input_ids, question_attention_mask, q_params)
    c_ref = _ref_encoder(context_input_ids, context_attention_mask, c_params)
    assert q_out.shape == (BATCH, HIDDEN) and c_out.shape == (BATCH, HIDDEN)
    # tolerance slightly above fp32 exact to cover the approximate (EUP)
    # reciprocal in the kernel's softmax; structural errors are O(1).
    assert jnp.allclose(q_out, q_ref, atol=2e-3, rtol=2e-3)
    assert jnp.allclose(c_out, c_ref, atol=2e-3, rtol=2e-3)

    print("KERNEL_OK")
</pallas_src>

<mosaic_0001>
module attributes {stable_mosaic.version = 11 : i64} {
  func.func @fused_encoder_kernel(%arg0: i32, %arg1: memref<2x16x32xf32, #tpu.memory_space<vmem>>, %arg2: memref<2x16x16xf32, #tpu.memory_space<vmem>>, %arg3: memref<2x2x32x192xf32, #tpu.memory_space<vmem>>, %arg4: memref<2x2x64x32xf32, #tpu.memory_space<vmem>>, %arg5: memref<2x2x8x96xf32, #tpu.memory_space<vmem>>, %arg6: memref<2x16x32xf32, #tpu.memory_space<vmem>>) attributes {dimension_semantics = [#tpu.dimension_semantics<arbitrary>], iteration_bounds = array<i64: 1>, scalar_prefetch = 0 : i64, scratch_operands = 0 : i64, tpu.core_type = #tpu.core_type<tc>, window_params = [{pipeline_mode = #tpu.pipeline_mode<synchronous>, transform_indices = @transform_0, window_bounds = array<i64: 2, 16, 32>}, {pipeline_mode = #tpu.pipeline_mode<synchronous>, transform_indices = @transform_1, window_bounds = array<i64: 2, 16, 16>}, {pipeline_mode = #tpu.pipeline_mode<synchronous>, transform_indices = @transform_2, window_bounds = array<i64: 2, 2, 32, 192>}, {pipeline_mode = #tpu.pipeline_mode<synchronous>, transform_indices = @transform_3, window_bounds = array<i64: 2, 2, 64, 32>}, {pipeline_mode = #tpu.pipeline_mode<synchronous>, transform_indices = @transform_4, window_bounds = array<i64: 2, 2, 8, 96>}, {pipeline_mode = #tpu.pipeline_mode<synchronous>, transform_indices = @transform_5, window_bounds = array<i64: 2, 16, 32>}]} {
    %c0 = arith.constant 0 : index
    %c0_0 = arith.constant 0 : index
    %c0_1 = arith.constant 0 : index
    %0 = vector.load %arg1[%c0, %c0_0, %c0_1] : memref<2x16x32xf32, #tpu.memory_space<vmem>>, vector<1x16x32xf32>
    %1 = vector.shape_cast %0 : vector<1x16x32xf32> to vector<16x32xf32>
    %c0_2 = arith.constant 0 : index
    %c0_3 = arith.constant 0 : index
    %c0_4 = arith.constant 0 : index
    %2 = vector.load %arg2[%c0_2, %c0_3, %c0_4] : memref<2x16x16xf32, #tpu.memory_space<vmem>>, vector<1x16x16xf32>
    %3 = vector.shape_cast %2 : vector<1x16x16xf32> to vector<16x16xf32>
    %4 = vector.shape_cast %3 : vector<16x16xf32> to vector<1x16x16xf32>
    %5 = vector.shape_cast %4 : vector<1x16x16xf32> to vector<1x16x16xf32>
    %6 = vector.broadcast %5 : vector<1x16x16xf32> to vector<2x16x16xf32>
    %c0_5 = arith.constant 0 : index
    %c0_6 = arith.constant 0 : index
    %c0_7 = arith.constant 0 : index
    %c0_8 = arith.constant 0 : index
    %7 = vector.load %arg3[%c0_5, %c0_6, %c0_7, %c0_8] : memref<2x2x32x192xf32, #tpu.memory_space<vmem>>, vector<1x1x32x192xf32>
    %8 = vector.shape_cast %7 : vector<1x1x32x192xf32> to vector<32x192xf32>
    %c0_9 = arith.constant 0 : index
    %c0_10 = arith.constant 0 : index
    %c0_11 = arith.constant 0 : index
    %c0_12 = arith.constant 0 : index
    %9 = vector.load %arg4[%c0_9, %c0_10, %c0_11, %c0_12] : memref<2x2x64x32xf32, #tpu.memory_space<vmem>>, vector<1x1x64x32xf32>
    %10 = vector.shape_cast %9 : vector<1x1x64x32xf32> to vector<64x32xf32>
    %c0_13 = arith.constant 0 : index
    %c0_14 = arith.constant 0 : index
    %c0_15 = arith.constant 0 : index
    %c0_16 = arith.constant 0 : index
    %11 = vector.load %arg5[%c0_13, %c0_14, %c0_15, %c0_16] : memref<2x2x8x96xf32, #tpu.memory_space<vmem>>, vector<1x1x8x96xf32>
    %12 = vector.shape_cast %11 : vector<1x1x8x96xf32> to vector<8x96xf32>
    %13 = vector.extract_strided_slice %8 {offsets = [0, 0], sizes = [32, 96], strides = [1, 1]} : vector<32x192xf32> to vector<32x96xf32>
    %14 = vector.extract_strided_slice %8 {offsets = [0, 96], sizes = [32, 32], strides = [1, 1]} : vector<32x192xf32> to vector<32x32xf32>
    %15 = vector.extract_strided_slice %8 {offsets = [0, 128], sizes = [32, 64], strides = [1, 1]} : vector<32x192xf32> to vector<32x64xf32>
    %cst = arith.constant dense<0.000000e+00> : vector<16x96xf32>
    %16 = tpu.matmul %1, %13, %cst {dimension_numbers = #tpu.dot_dimension_numbers<[1], [0], [0], [1], [0, 0, 1, 1], [], []>} : vector<16x32xf32>, vector<32x96xf32>, vector<16x96xf32> -> vector<16x96xf32>
    %17 = vector.extract_strided_slice %12 {offsets = [0, 0], sizes = [1, 96], strides = [1, 1]} : vector<8x96xf32> to vector<1x96xf32>
    %18 = vector.shape_cast %17 : vector<1x96xf32> to vector<96xf32>
    %19 = vector.shape_cast %18 : vector<96xf32> to vector<1x96xf32>
    %20 = vector.broadcast %19 : vector<1x96xf32> to vector<16x96xf32>
    %21 = arith.addf %16, %20 : vector<16x96xf32>
    %22 = vector.extract_strided_slice %21 {offsets = [0, 0], sizes = [16, 32], strides = [1, 1]} : vector<16x96xf32> to vector<16x32xf32>
    %23 = vector.extract_strided_slice %21 {offsets = [0, 32], sizes = [16, 32], strides = [1, 1]} : vector<16x96xf32> to vector<16x32xf32>
    %24 = vector.extract_strided_slice %21 {offsets = [0, 64], sizes = [16, 32], strides = [1, 1]} : vector<16x96xf32> to vector<16x32xf32>
    %25 = vector.extract_strided_slice %22 {offsets = [0, 0], sizes = [16, 16], strides = [1, 1]} : vector<16x32xf32> to vector<16x16xf32>
    %26 = vector.extract_strided_slice %22 {offsets = [0, 16], sizes = [16, 16], strides = [1, 1]} : vector<16x32xf32> to vector<16x16xf32>
    %27 = vector.shape_cast %25 : vector<16x16xf32> to vector<1x16x16xf32>
    %28 = vector.shape_cast %26 : vector<16x16xf32> to vector<1x16x16xf32>
    %29 = tpu.concatenate %27, %28 in 0 : vector<1x16x16xf32>, vector<1x16x16xf32> -> vector<2x16x16xf32>
    %30 = vector.extract_strided_slice %23 {offsets = [0, 0], sizes = [16, 16], strides = [1, 1]} : vector<16x32xf32> to vector<16x16xf32>
    %31 = vector.extract_strided_slice %23 {offsets = [0, 16], sizes = [16, 16], strides = [1, 1]} : vector<16x32xf32> to vector<16x16xf32>
    %32 = vector.shape_cast %30 : vector<16x16xf32> to vector<1x16x16xf32>
    %33 = vector.shape_cast %31 : vector<16x16xf32> to vector<1x16x16xf32>
    %34 = tpu.concatenate %32, %33 in 0 : vector<1x16x16xf32>, vector<1x16x16xf32> -> vector<2x16x16xf32>
    %35 = vector.extract_strided_slice %24 {offsets = [0, 0], sizes = [16, 16], strides = [1, 1]} : vector<16x32xf32> to vector<16x16xf32>
    %36 = vector.extract_strided_slice %24 {offsets = [0, 16], sizes = [16, 16], strides = [1, 1]} : vector<16x32xf32> to vector<16x16xf32>
    %37 = vector.shape_cast %35 : vector<16x16xf32> to vector<1x16x16xf32>
    %38 = vector.shape_cast %36 : vector<16x16xf32> to vector<1x16x16xf32>
    %39 = tpu.concatenate %37, %38 in 0 : vector<1x16x16xf32>, vector<1x16x16xf32> -> vector<2x16x16xf32>
    "tpu.trace_start"() <{level = 10 : i32, message = "nqd,nkd->nqk"}> : () -> ()
    %cst_17 = arith.constant dense<0.000000e+00> : vector<2x16x16xf32>
    %40 = tpu.matmul %29, %34, %cst_17 {dimension_numbers = #tpu.dot_dimension_numbers<[2], [2], [1], [1], [0, 0, 0, 1, 1, 1], [0], [0]>} : vector<2x16x16xf32>, vector<2x16x16xf32>, vector<2x16x16xf32> -> vector<2x16x16xf32>
    "tpu.trace_stop"() : () -> ()
    %41 = arith.addf %40, %6 : vector<2x16x16xf32>
    %cst_18 = arith.constant dense<0xFF800000> : vector<2x16xf32>
    %42 = vector.multi_reduction <maximumf>, %41, %cst_18 [2] : vector<2x16x16xf32> to vector<2x16xf32>
    %43 = vector.shape_cast %42 : vector<2x16xf32> to vector<2x16x1xf32>
    %44 = vector.broadcast %43 : vector<2x16x1xf32> to vector<2x16x16xf32>
    %45 = arith.subf %41, %44 : vector<2x16x16xf32>
    %46 = math.exp %45 : vector<2x16x16xf32>
    %cst_19 = arith.constant dense<0.000000e+00> : vector<2x16xf32>
    %47 = vector.multi_reduction <add>, %46, %cst_19 [2] : vector<2x16x16xf32> to vector<2x16xf32>
    %48 = vector.shape_cast %47 : vector<2x16xf32> to vector<2x16x1xf32>
    %49 = tpu.reciprocal %48 {approx = true} : vector<2x16x1xf32> -> vector<2x16x1xf32>
    %50 = vector.broadcast %49 : vector<2x16x1xf32> to vector<2x16x16xf32>
    %51 = arith.mulf %46, %50 : vector<2x16x16xf32>
    "tpu.trace_start"() <{level = 10 : i32, message = "nqk,nkd->nqd"}> : () -> ()
    %cst_20 = arith.constant dense<0.000000e+00> : vector<2x16x16xf32>
    %52 = tpu.matmul %51, %39, %cst_20 {dimension_numbers = #tpu.dot_dimension_numbers<[2], [1], [1], [2], [0, 0, 0, 1, 1, 2], [0], [0]>} : vector<2x16x16xf32>, vector<2x16x16xf32>, vector<2x16x16xf32> -> vector<2x16x16xf32>
    "tpu.trace_stop"() : () -> ()
    %53 = vector.extract_strided_slice %52 {offsets = [0, 0, 0], sizes = [1, 16, 16], strides = [1, 1, 1]} : vector<2x16x16xf32> to vector<1x16x16xf32>
    %54 = vector.shape_cast %53 : vector<1x16x16xf32> to vector<16x16xf32>
    %55 = vector.extract_strided_slice %52 {offsets = [1, 0, 0], sizes = [1, 16, 16], strides = [1, 1, 1]} : vector<2x16x16xf32> to vector<1x16x16xf32>
    %56 = vector.shape_cast %55 : vector<1x16x16xf32> to vector<16x16xf32>
    %57 = tpu.concatenate %54, %56 in 1 : vector<16x16xf32>, vector<16x16xf32> -> vector<16x32xf32>
    %cst_21 = arith.constant dense<0.000000e+00> : vector<16x32xf32>
    %58 = tpu.matmul %57, %14, %cst_21 {dimension_numbers = #tpu.dot_dimension_numbers<[1], [0], [0], [1], [0, 0, 1, 1], [], []>} : vector<16x32xf32>, vector<32x32xf32>, vector<16x32xf32> -> vector<16x32xf32>
    %59 = vector.extract_strided_slice %12 {offsets = [1, 0], sizes = [1, 32], strides = [1, 1]} : vector<8x96xf32> to vector<1x32xf32>
    %60 = vector.shape_cast %59 : vector<1x32xf32> to vector<32xf32>
    %61 = vector.shape_cast %60 : vector<32xf32> to vector<1x32xf32>
    %62 = vector.broadcast %61 : vector<1x32xf32> to vector<16x32xf32>
    %63 = arith.addf %58, %62 : vector<16x32xf32>
    %64 = arith.addf %1, %63 : vector<16x32xf32>
    %65 = vector.extract_strided_slice %12 {offsets = [2, 0], sizes = [1, 32], strides = [1, 1]} : vector<8x96xf32> to vector<1x32xf32>
    %66 = vector.shape_cast %65 : vector<1x32xf32> to vector<32xf32>
    %67 = vector.extract_strided_slice %12 {offsets = [3, 0], sizes = [1, 32], strides = [1, 1]} : vector<8x96xf32> to vector<1x32xf32>
    %68 = vector.shape_cast %67 : vector<1x32xf32> to vector<32xf32>
    %cst_22 = arith.constant dense<0.000000e+00> : vector<16xf32>
    %69 = vector.multi_reduction <add>, %64, %cst_22 [1] : vector<16x32xf32> to vector<16xf32>
    %70 = vector.shape_cast %69 : vector<16xf32> to vector<16x1xf32>
    %cst_23 = arith.constant 3.200000e+01 : f32
    %71 = vector.broadcast %cst_23 : f32 to vector<16x1xf32>
    %72 = arith.divf %70, %71 : vector<16x1xf32>
    %73 = vector.broadcast %72 : vector<16x1xf32> to vector<16x32xf32>
    %74 = arith.subf %64, %73 : vector<16x32xf32>
    %75 = arith.mulf %74, %74 : vector<16x32xf32>
    %cst_24 = arith.constant dense<0.000000e+00> : vector<16xf32>
    %76 = vector.multi_reduction <add>, %75, %cst_24 [1] : vector<16x32xf32> to vector<16xf32>
    %77 = vector.shape_cast %76 : vector<16xf32> to vector<16x1xf32>
    %cst_25 = arith.constant 3.200000e+01 : f32
    %78 = vector.broadcast %cst_25 : f32 to vector<16x1xf32>
    %79 = arith.divf %77, %78 : vector<16x1xf32>
    %80 = vector.broadcast %72 : vector<16x1xf32> to vector<16x32xf32>
    %81 = arith.subf %64, %80 : vector<16x32xf32>
    %cst_26 = arith.constant 9.99999996E-13 : f32
    %82 = vector.broadcast %cst_26 : f32 to vector<16x1xf32>
    %83 = arith.addf %79, %82 : vector<16x1xf32>
    %84 = math.rsqrt %83 : vector<16x1xf32>
    %85 = vector.broadcast %84 : vector<16x1xf32> to vector<16x32xf32>
    %86 = arith.mulf %81, %85 : vector<16x32xf32>
    %87 = vector.shape_cast %66 : vector<32xf32> to vector<1x32xf32>
    %88 = vector.broadcast %87 : vector<1x32xf32> to vector<16x32xf32>
    %89 = arith.mulf %86, %88 : vector<16x32xf32>
    %90 = vector.shape_cast %68 : vector<32xf32> to vector<1x32xf32>
    %91 = vector.broadcast %90 : vector<1x32xf32> to vector<16x32xf32>
    %92 = arith.addf %89, %91 : vector<16x32xf32>
    %cst_27 = arith.constant dense<0.000000e+00> : vector<16x64xf32>
    %93 = tpu.matmul %92, %15, %cst_27 {dimension_numbers = #tpu.dot_dimension_numbers<[1], [0], [0], [1], [0, 0, 1, 1], [], []>} : vector<16x32xf32>, vector<32x64xf32>, vector<16x64xf32> -> vector<16x64xf32>
    %94 = vector.extract_strided_slice %12 {offsets = [4, 0], sizes = [1, 64], strides = [1, 1]} : vector<8x96xf32> to vector<1x64xf32>
    %95 = vector.shape_cast %94 : vector<1x64xf32> to vector<64xf32>
    %96 = vector.shape_cast %95 : vector<64xf32> to vector<1x64xf32>
    %97 = vector.broadcast %96 : vector<1x64xf32> to vector<16x64xf32>
    %98 = arith.addf %93, %97 : vector<16x64xf32>
    %99 = arith.mulf %98, %98 : vector<16x64xf32>
    %100 = arith.mulf %98, %99 : vector<16x64xf32>
    %cst_28 = arith.constant 4.471500e-02 : f32
    %101 = vector.broadcast %cst_28 : f32 to vector<16x64xf32>
    %102 = arith.mulf %101, %100 : vector<16x64xf32>
    %103 = arith.addf %98, %102 : vector<16x64xf32>
    %cst_29 = arith.constant 0.797884583 : f32
    %104 = vector.broadcast %cst_29 : f32 to vector<16x64xf32>
    %105 = arith.mulf %104, %103 : vector<16x64xf32>
    %106 = math.tanh %105 : vector<16x64xf32>
    %cst_30 = arith.constant 1.000000e+00 : f32
    %107 = vector.broadcast %cst_30 : f32 to vector<16x64xf32>
    %108 = arith.addf %107, %106 : vector<16x64xf32>
    %cst_31 = arith.constant 5.000000e-01 : f32
    %109 = vector.broadcast %cst_31 : f32 to vector<16x64xf32>
    %110 = arith.mulf %109, %108 : vector<16x64xf32>
    %111 = arith.mulf %98, %110 : vector<16x64xf32>
    %cst_32 = arith.constant dense<0.000000e+00> : vector<16x32xf32>
    %112 = tpu.matmul %111, %10, %cst_32 {dimension_numbers = #tpu.dot_dimension_numbers<[1], [0], [0], [1], [0, 0, 1, 1], [], []>} : vector<16x64xf32>, vector<64x32xf32>, vector<16x32xf32> -> vector<16x32xf32>
    %113 = vector.extract_strided_slice %12 {offsets = [5, 0], sizes = [1, 32], strides = [1, 1]} : vector<8x96xf32> to vector<1x32xf32>
    %114 = vector.shape_cast %113 : vector<1x32xf32> to vector<32xf32>
    %115 = vector.shape_cast %114 : vector<32xf32> to vector<1x32xf32>
    %116 = vector.broadcast %115 : vector<1x32xf32> to vector<16x32xf32>
    %117 = arith.addf %112, %116 : vector<16x32xf32>
    %118 = arith.addf %92, %117 : vector<16x32xf32>
    %119 = vector.extract_strided_slice %12 {offsets = [6, 0], sizes = [1, 32], strides = [1, 1]} : vector<8x96xf32> to vector<1x32xf32>
    %120 = vector.shape_cast %119 : vector<1x32xf32> to vector<32xf32>
    %121 = vector.extract_strided_slice %12 {offsets = [7, 0], sizes = [1, 32], strides = [1, 1]} : vector<8x96xf32> to vector<1x32xf32>
    %122 = vector.shape_cast %121 : vector<1x32xf32> to vector<32xf32>
    %cst_33 = arith.constant dense<0.000000e+00> : vector<16xf32>
    %123 = vector.multi_reduction <add>, %118, %cst_33 [1] : vector<16x32xf32> to vector<16xf32>
    %124 = vector.shape_cast %123 : vector<16xf32> to vector<16x1xf32>
    %cst_34 = arith.constant 3.200000e+01 : f32
    %125 = vector.broadcast %cst_34 : f32 to vector<16x1xf32>
    %126 = arith.divf %124, %125 : vector<16x1xf32>
    %127 = vector.broadcast %126 : vector<16x1xf32> to vector<16x32xf32>
    %128 = arith.subf %118, %127 : vector<16x32xf32>
    %129 = arith.mulf %128, %128 : vector<16x32xf32>
    %cst_35 = arith.constant dense<0.000000e+00> : vector<16xf32>
    %130 = vector.multi_reduction <add>, %129, %cst_35 [1] : vector<16x32xf32> to vector<16xf32>
    %131 = vector.shape_cast %130 : vector<16xf32> to vector<16x1xf32>
    %cst_36 = arith.constant 3.200000e+01 : f32
    %132 = vector.broadcast %cst_36 : f32 to vector<16x1xf32>
    %133 = arith.divf %131, %132 : vector<16x1xf32>
    %134 = vector.broadcast %126 : vector<16x1xf32> to vector<16x32xf32>
    %135 = arith.subf %118, %134 : vector<16x32xf32>
    %cst_37 = arith.constant 9.99999996E-13 : f32
    %136 = vector.broadcast %cst_37 : f32 to vector<16x1xf32>
    %137 = arith.addf %133, %136 : vector<16x1xf32>
    %138 = math.rsqrt %137 : vector<16x1xf32>
    %139 = vector.broadcast %138 : vector<16x1xf32> to vector<16x32xf32>
    %140 = arith.mulf %135, %139 : vector<16x32xf32>
    %141 = vector.shape_cast %120 : vector<32xf32> to vector<1x32xf32>
    %142 = vector.broadcast %141 : vector<1x32xf32> to vector<16x32xf32>
    %143 = arith.mulf %140, %142 : vector<16x32xf32>
    %144 = vector.shape_cast %122 : vector<32xf32> to vector<1x32xf32>
    %145 = vector.broadcast %144 : vector<1x32xf32> to vector<16x32xf32>
    %146 = arith.addf %143, %145 : vector<16x32xf32>
    %c0_38 = arith.constant 0 : index
    %c1 = arith.constant 1 : index
    %c0_39 = arith.constant 0 : index
    %c0_40 = arith.constant 0 : index
    %147 = vector.load %arg3[%c0_38, %c1, %c0_39, %c0_40] : memref<2x2x32x192xf32, #tpu.memory_space<vmem>>, vector<1x1x32x192xf32>
    %148 = vector.shape_cast %147 : vector<1x1x32x192xf32> to vector<32x192xf32>
    %c0_41 = arith.constant 0 : index
    %c1_42 = arith.constant 1 : index
    %c0_43 = arith.constant 0 : index
    %c0_44 = arith.constant 0 : index
    %149 = vector.load %arg4[%c0_41, %c1_42, %c0_43, %c0_44] : memref<2x2x64x32xf32, #tpu.memory_space<vmem>>, vector<1x1x64x32xf32>
    %150 = vector.shape_cast %149 : vector<1x1x64x32xf32> to vector<64x32xf32>
    %c0_45 = arith.constant 0 : index
    %c1_46 = arith.constant 1 : index
    %c0_47 = arith.constant 0 : index
    %c0_48 = arith.constant 0 : index
    %151 = vector.load %arg5[%c0_45, %c1_46, %c0_47, %c0_48] : memref<2x2x8x96xf32, #tpu.memory_space<vmem>>, vector<1x1x8x96xf32>
    %152 = vector.shape_cast %151 : vector<1x1x8x96xf32> to vector<8x96xf32>
    %153 = vector.extract_strided_slice %148 {offsets = [0, 0], sizes = [32, 96], strides = [1, 1]} : vector<32x192xf32> to vector<32x96xf32>
    %154 = vector.extract_strided_slice %148 {offsets = [0, 96], sizes = [32, 32], strides = [1, 1]} : vector<32x192xf32> to vector<32x32xf32>
    %155 = vector.extract_strided_slice %148 {offsets = [0, 128], sizes = [32, 64], strides = [1, 1]} : vector<32x192xf32> to vector<32x64xf32>
    %cst_49 = arith.constant dense<0.000000e+00> : vector<16x96xf32>
    %156 = tpu.matmul %146, %153, %cst_49 {dimension_numbers = #tpu.dot_dimension_numbers<[1], [0], [0], [1], [0, 0, 1, 1], [], []>} : vector<16x32xf32>, vector<32x96xf32>, vector<16x96xf32> -> vector<16x96xf32>
    %157 = vector.extract_strided_slice %152 {offsets = [0, 0], sizes = [1, 96], strides = [1, 1]} : vector<8x96xf32> to vector<1x96xf32>
    %158 = vector.shape_cast %157 : vector<1x96xf32> to vector<96xf32>
    %159 = vector.shape_cast %158 : vector<96xf32> to vector<1x96xf32>
    %160 = vector.broadcast %159 : vector<1x96xf32> to vector<16x96xf32>
    %161 = arith.addf %156, %160 : vector<16x96xf32>
    %162 = vector.extract_strided_slice %161 {offsets = [0, 0], sizes = [16, 32], strides = [1, 1]} : vector<16x96xf32> to vector<16x32xf32>
    %163 = vector.extract_strided_slice %161 {offsets = [0, 32], sizes = [16, 32], strides = [1, 1]} : vector<16x96xf32> to vector<16x32xf32>
    %164 = vector.extract_strided_slice %161 {offsets = [0, 64], sizes = [16, 32], strides = [1, 1]} : vector<16x96xf32> to vector<16x32xf32>
    %165 = vector.extract_strided_slice %162 {offsets = [0, 0], sizes = [16, 16], strides = [1, 1]} : vector<16x32xf32> to vector<16x16xf32>
    %166 = vector.extract_strided_slice %162 {offsets = [0, 16], sizes = [16, 16], strides = [1, 1]} : vector<16x32xf32> to vector<16x16xf32>
    %167 = vector.shape_cast %165 : vector<16x16xf32> to vector<1x16x16xf32>
    %168 = vector.shape_cast %166 : vector<16x16xf32> to vector<1x16x16xf32>
    %169 = tpu.concatenate %167, %168 in 0 : vector<1x16x16xf32>, vector<1x16x16xf32> -> vector<2x16x16xf32>
    %170 = vector.extract_strided_slice %163 {offsets = [0, 0], sizes = [16, 16], strides = [1, 1]} : vector<16x32xf32> to vector<16x16xf32>
    %171 = vector.extract_strided_slice %163 {offsets = [0, 16], sizes = [16, 16], strides = [1, 1]} : vector<16x32xf32> to vector<16x16xf32>
    %172 = vector.shape_cast %170 : vector<16x16xf32> to vector<1x16x16xf32>
    %173 = vector.shape_cast %171 : vector<16x16xf32> to vector<1x16x16xf32>
    %174 = tpu.concatenate %172, %173 in 0 : vector<1x16x16xf32>, vector<1x16x16xf32> -> vector<2x16x16xf32>
    %175 = vector.extract_strided_slice %164 {offsets = [0, 0], sizes = [16, 16], strides = [1, 1]} : vector<16x32xf32> to vector<16x16xf32>
    %176 = vector.extract_strided_slice %164 {offsets = [0, 16], sizes = [16, 16], strides = [1, 1]} : vector<16x32xf32> to vector<16x16xf32>
    %177 = vector.shape_cast %175 : vector<16x16xf32> to vector<1x16x16xf32>
    %178 = vector.shape_cast %176 : vector<16x16xf32> to vector<1x16x16xf32>
    %179 = tpu.concatenate %177, %178 in 0 : vector<1x16x16xf32>, vector<1x16x16xf32> -> vector<2x16x16xf32>
    "tpu.trace_start"() <{level = 10 : i32, message = "nqd,nkd->nqk"}> : () -> ()
    %cst_50 = arith.constant dense<0.000000e+00> : vector<2x16x16xf32>
    %180 = tpu.matmul %169, %174, %cst_50 {dimension_numbers = #tpu.dot_dimension_numbers<[2], [2], [1], [1], [0, 0, 0, 1, 1, 1], [0], [0]>} : vector<2x16x16xf32>, vector<2x16x16xf32>, vector<2x16x16xf32> -> vector<2x16x16xf32>
    "tpu.trace_stop"() : () -> ()
    %181 = arith.addf %180, %6 : vector<2x16x16xf32>
    %cst_51 = arith.constant dense<0xFF800000> : vector<2x16xf32>
    %182 = vector.multi_reduction <maximumf>, %181, %cst_51 [2] : vector<2x16x16xf32> to vector<2x16xf32>
    %183 = vector.shape_cast %182 : vector<2x16xf32> to vector<2x16x1xf32>
    %184 = vector.broadcast %183 : vector<2x16x1xf32> to vector<2x16x16xf32>
    %185 = arith.subf %181, %184 : vector<2x16x16xf32>
    %186 = math.exp %185 : vector<2x16x16xf32>
    %cst_52 = arith.constant dense<0.000000e+00> : vector<2x16xf32>
    %187 = vector.multi_reduction <add>, %186, %cst_52 [2] : vector<2x16x16xf32> to vector<2x16xf32>
    %188 = vector.shape_cast %187 : vector<2x16xf32> to vector<2x16x1xf32>
    %189 = tpu.reciprocal %188 {approx = true} : vector<2x16x1xf32> -> vector<2x16x1xf32>
    %190 = vector.broadcast %189 : vector<2x16x1xf32> to vector<2x16x16xf32>
    %191 = arith.mulf %186, %190 : vector<2x16x16xf32>
    "tpu.trace_start"() <{level = 10 : i32, message = "nqk,nkd->nqd"}> : () -> ()
    %cst_53 = arith.constant dense<0.000000e+00> : vector<2x16x16xf32>
    %192 = tpu.matmul %191, %179, %cst_53 {dimension_numbers = #tpu.dot_dimension_numbers<[2], [1], [1], [2], [0, 0, 0, 1, 1, 2], [0], [0]>} : vector<2x16x16xf32>, vector<2x16x16xf32>, vector<2x16x16xf32> -> vector<2x16x16xf32>
    "tpu.trace_stop"() : () -> ()
    %193 = vector.extract_strided_slice %192 {offsets = [0, 0, 0], sizes = [1, 16, 16], strides = [1, 1, 1]} : vector<2x16x16xf32> to vector<1x16x16xf32>
    %194 = vector.shape_cast %193 : vector<1x16x16xf32> to vector<16x16xf32>
    %195 = vector.extract_strided_slice %192 {offsets = [1, 0, 0], sizes = [1, 16, 16], strides = [1, 1, 1]} : vector<2x16x16xf32> to vector<1x16x16xf32>
    %196 = vector.shape_cast %195 : vector<1x16x16xf32> to vector<16x16xf32>
    %197 = tpu.concatenate %194, %196 in 1 : vector<16x16xf32>, vector<16x16xf32> -> vector<16x32xf32>
    %cst_54 = arith.constant dense<0.000000e+00> : vector<16x32xf32>
    %198 = tpu.matmul %197, %154, %cst_54 {dimension_numbers = #tpu.dot_dimension_numbers<[1], [0], [0], [1], [0, 0, 1, 1], [], []>} : vector<16x32xf32>, vector<32x32xf32>, vector<16x32xf32> -> vector<16x32xf32>
    %199 = vector.extract_strided_slice %152 {offsets = [1, 0], sizes = [1, 32], strides = [1, 1]} : vector<8x96xf32> to vector<1x32xf32>
    %200 = vector.shape_cast %199 : vector<1x32xf32> to vector<32xf32>
    %201 = vector.shape_cast %200 : vector<32xf32> to vector<1x32xf32>
    %202 = vector.broadcast %201 : vector<1x32xf32> to vector<16x32xf32>
    %203 = arith.addf %198, %202 : vector<16x32xf32>
    %204 = arith.addf %146, %203 : vector<16x32xf32>
    %205 = vector.extract_strided_slice %152 {offsets = [2, 0], sizes = [1, 32], strides = [1, 1]} : vector<8x96xf32> to vector<1x32xf32>
    %206 = vector.shape_cast %205 : vector<1x32xf32> to vector<32xf32>
    %207 = vector.extract_strided_slice %152 {offsets = [3, 0], sizes = [1, 32], strides = [1, 1]} : vector<8x96xf32> to vector<1x32xf32>
    %208 = vector.shape_cast %207 : vector<1x32xf32> to vector<32xf32>
    %cst_55 = arith.constant dense<0.000000e+00> : vector<16xf32>
    %209 = vector.multi_reduction <add>, %204, %cst_55 [1] : vector<16x32xf32> to vector<16xf32>
    %210 = vector.shape_cast %209 : vector<16xf32> to vector<16x1xf32>
    %cst_56 = arith.constant 3.200000e+01 : f32
    %211 = vector.broadcast %cst_56 : f32 to vector<16x1xf32>
    %212 = arith.divf %210, %211 : vector<16x1xf32>
    %213 = vector.broadcast %212 : vector<16x1xf32> to vector<16x32xf32>
    %214 = arith.subf %204, %213 : vector<16x32xf32>
    %215 = arith.mulf %214, %214 : vector<16x32xf32>
    %cst_57 = arith.constant dense<0.000000e+00> : vector<16xf32>
    %216 = vector.multi_reduction <add>, %215, %cst_57 [1] : vector<16x32xf32> to vector<16xf32>
    %217 = vector.shape_cast %216 : vector<16xf32> to vector<16x1xf32>
    %cst_58 = arith.constant 3.200000e+01 : f32
    %218 = vector.broadcast %cst_58 : f32 to vector<16x1xf32>
    %219 = arith.divf %217, %218 : vector<16x1xf32>
    %220 = vector.broadcast %212 : vector<16x1xf32> to vector<16x32xf32>
    %221 = arith.subf %204, %220 : vector<16x32xf32>
    %cst_59 = arith.constant 9.99999996E-13 : f32
    %222 = vector.broadcast %cst_59 : f32 to vector<16x1xf32>
    %223 = arith.addf %219, %222 : vector<16x1xf32>
    %224 = math.rsqrt %223 : vector<16x1xf32>
    %225 = vector.broadcast %224 : vector<16x1xf32> to vector<16x32xf32>
    %226 = arith.mulf %221, %225 : vector<16x32xf32>
    %227 = vector.shape_cast %206 : vector<32xf32> to vector<1x32xf32>
    %228 = vector.broadcast %227 : vector<1x32xf32> to vector<16x32xf32>
    %229 = arith.mulf %226, %228 : vector<16x32xf32>
    %230 = vector.shape_cast %208 : vector<32xf32> to vector<1x32xf32>
    %231 = vector.broadcast %230 : vector<1x32xf32> to vector<16x32xf32>
    %232 = arith.addf %229, %231 : vector<16x32xf32>
    %cst_60 = arith.constant dense<0.000000e+00> : vector<16x64xf32>
    %233 = tpu.matmul %232, %155, %cst_60 {dimension_numbers = #tpu.dot_dimension_numbers<[1], [0], [0], [1], [0, 0, 1, 1], [], []>} : vector<16x32xf32>, vector<32x64xf32>, vector<16x64xf32> -> vector<16x64xf32>
    %234 = vector.extract_strided_slice %152 {offsets = [4, 0], sizes = [1, 64], strides = [1, 1]} : vector<8x96xf32> to vector<1x64xf32>
    %235 = vector.shape_cast %234 : vector<1x64xf32> to vector<64xf32>
    %236 = vector.shape_cast %235 : vector<64xf32> to vector<1x64xf32>
    %237 = vector.broadcast %236 : vector<1x64xf32> to vector<16x64xf32>
    %238 = arith.addf %233, %237 : vector<16x64xf32>
    %239 = arith.mulf %238, %238 : vector<16x64xf32>
    %240 = arith.mulf %238, %239 : vector<16x64xf32>
    %cst_61 = arith.constant 4.471500e-02 : f32
    %241 = vector.broadcast %cst_61 : f32 to vector<16x64xf32>
    %242 = arith.mulf %241, %240 : vector<16x64xf32>
    %243 = arith.addf %238, %242 : vector<16x64xf32>
    %cst_62 = arith.constant 0.797884583 : f32
    %244 = vector.broadcast %cst_62 : f32 to vector<16x64xf32>
    %245 = arith.mulf %244, %243 : vector<16x64xf32>
    %246 = math.tanh %245 : vector<16x64xf32>
    %cst_63 = arith.constant 1.000000e+00 : f32
    %247 = vector.broadcast %cst_63 : f32 to vector<16x64xf32>
    %248 = arith.addf %247, %246 : vector<16x64xf32>
    %cst_64 = arith.constant 5.000000e-01 : f32
    %249 = vector.broadcast %cst_64 : f32 to vector<16x64xf32>
    %250 = arith.mulf %249, %248 : vector<16x64xf32>
    %251 = arith.mulf %238, %250 : vector<16x64xf32>
    %cst_65 = arith.constant dense<0.000000e+00> : vector<16x32xf32>
    %252 = tpu.matmul %251, %150, %cst_65 {dimension_numbers = #tpu.dot_dimension_numbers<[1], [0], [0], [1], [0, 0, 1, 1], [], []>} : vector<16x64xf32>, vector<64x32xf32>, vector<16x32xf32> -> vector<16x32xf32>
    %253 = vector.extract_strided_slice %152 {offsets = [5, 0], sizes = [1, 32], strides = [1, 1]} : vector<8x96xf32> to vector<1x32xf32>
    %254 = vector.shape_cast %253 : vector<1x32xf32> to vector<32xf32>
    %255 = vector.shape_cast %254 : vector<32xf32> to vector<1x32xf32>
    %256 = vector.broadcast %255 : vector<1x32xf32> to vector<16x32xf32>
    %257 = arith.addf %252, %256 : vector<16x32xf32>
    %258 = arith.addf %232, %257 : vector<16x32xf32>
    %259 = vector.extract_strided_slice %152 {offsets = [6, 0], sizes = [1, 32], strides = [1, 1]} : vector<8x96xf32> to vector<1x32xf32>
    %260 = vector.shape_cast %259 : vector<1x32xf32> to vector<32xf32>
    %261 = vector.extract_strided_slice %152 {offsets = [7, 0], sizes = [1, 32], strides = [1, 1]} : vector<8x96xf32> to vector<1x32xf32>
    %262 = vector.shape_cast %261 : vector<1x32xf32> to vector<32xf32>
    %cst_66 = arith.constant dense<0.000000e+00> : vector<16xf32>
    %263 = vector.multi_reduction <add>, %258, %cst_66 [1] : vector<16x32xf32> to vector<16xf32>
    %264 = vector.shape_cast %263 : vector<16xf32> to vector<16x1xf32>
    %cst_67 = arith.constant 3.200000e+01 : f32
    %265 = vector.broadcast %cst_67 : f32 to vector<16x1xf32>
    %266 = arith.divf %264, %265 : vector<16x1xf32>
    %267 = vector.broadcast %266 : vector<16x1xf32> to vector<16x32xf32>
    %268 = arith.subf %258, %267 : vector<16x32xf32>
    %269 = arith.mulf %268, %268 : vector<16x32xf32>
    %cst_68 = arith.constant dense<0.000000e+00> : vector<16xf32>
    %270 = vector.multi_reduction <add>, %269, %cst_68 [1] : vector<16x32xf32> to vector<16xf32>
    %271 = vector.shape_cast %270 : vector<16xf32> to vector<16x1xf32>
    %cst_69 = arith.constant 3.200000e+01 : f32
    %272 = vector.broadcast %cst_69 : f32 to vector<16x1xf32>
    %273 = arith.divf %271, %272 : vector<16x1xf32>
    %274 = vector.broadcast %266 : vector<16x1xf32> to vector<16x32xf32>
    %275 = arith.subf %258, %274 : vector<16x32xf32>
    %cst_70 = arith.constant 9.99999996E-13 : f32
    %276 = vector.broadcast %cst_70 : f32 to vector<16x1xf32>
    %277 = arith.addf %273, %276 : vector<16x1xf32>
    %278 = math.rsqrt %277 : vector<16x1xf32>
    %279 = vector.broadcast %278 : vector<16x1xf32> to vector<16x32xf32>
    %280 = arith.mulf %275, %279 : vector<16x32xf32>
    %281 = vector.shape_cast %260 : vector<32xf32> to vector<1x32xf32>
    %282 = vector.broadcast %281 : vector<1x32xf32> to vector<16x32xf32>
    %283 = arith.mulf %280, %282 : vector<16x32xf32>
    %284 = vector.shape_cast %262 : vector<32xf32> to vector<1x32xf32>
    %285 = vector.broadcast %284 : vector<1x32xf32> to vector<16x32xf32>
    %286 = arith.addf %283, %285 : vector<16x32xf32>
    %c0_71 = arith.constant 0 : index
    %c0_72 = arith.constant 0 : index
    %c0_73 = arith.constant 0 : index
    %287 = vector.load %arg6[%c0_71, %c0_72, %c0_73] : memref<2x16x32xf32, #tpu.memory_space<vmem>>, vector<1x16x32xf32>
    %288 = vector.shape_cast %287 : vector<1x16x32xf32> to vector<16x32xf32>
    %289 = vector.shape_cast %286 : vector<16x32xf32> to vector<1x16x32xf32>
    tpu.vector_store %arg6[%c0_71, %c0_72, %c0_73], %289 {strides = array<i32>} : memref<2x16x32xf32, #tpu.memory_space<vmem>>, vector<1x16x32xf32>,
    %c1_74 = arith.constant 1 : index
    %c0_75 = arith.constant 0 : index
    %c0_76 = arith.constant 0 : index
    %290 = vector.load %arg1[%c1_74, %c0_75, %c0_76] : memref<2x16x32xf32, #tpu.memory_space<vmem>>, vector<1x16x32xf32>
    %291 = vector.shape_cast %290 : vector<1x16x32xf32> to vector<16x32xf32>
    %c1_77 = arith.constant 1 : index
    %c0_78 = arith.constant 0 : index
    %c0_79 = arith.constant 0 : index
    %292 = vector.load %arg2[%c1_77, %c0_78, %c0_79] : memref<2x16x16xf32, #tpu.memory_space<vmem>>, vector<1x16x16xf32>
    %293 = vector.shape_cast %292 : vector<1x16x16xf32> to vector<16x16xf32>
    %294 = vector.shape_cast %293 : vector<16x16xf32> to vector<1x16x16xf32>
    %295 = vector.shape_cast %294 : vector<1x16x16xf32> to vector<1x16x16xf32>
    %296 = vector.broadcast %295 : vector<1x16x16xf32> to vector<2x16x16xf32>
    %c1_80 = arith.constant 1 : index
    %c0_81 = arith.constant 0 : index
    %c0_82 = arith.constant 0 : index
    %c0_83 = arith.constant 0 : index
    %297 = vector.load %arg3[%c1_80, %c0_81, %c0_82, %c0_83] : memref<2x2x32x192xf32, #tpu.memory_space<vmem>>, vector<1x1x32x192xf32>
    %298 = vector.shape_cast %297 : vector<1x1x32x192xf32> to vector<32x192xf32>
    %c1_84 = arith.constant 1 : index
    %c0_85 = arith.constant 0 : index
    %c0_86 = arith.constant 0 : index
    %c0_87 = arith.constant 0 : index
    %299 = vector.load %arg4[%c1_84, %c0_85, %c0_86, %c0_87] : memref<2x2x64x32xf32, #tpu.memory_space<vmem>>, vector<1x1x64x32xf32>
    %300 = vector.shape_cast %299 : vector<1x1x64x32xf32> to vector<64x32xf32>
    %c1_88 = arith.constant 1 : index
    %c0_89 = arith.constant 0 : index
    %c0_90 = arith.constant 0 : index
    %c0_91 = arith.constant 0 : index
    %301 = vector.load %arg5[%c1_88, %c0_89, %c0_90, %c0_91] : memref<2x2x8x96xf32, #tpu.memory_space<vmem>>, vector<1x1x8x96xf32>
    %302 = vector.shape_cast %301 : vector<1x1x8x96xf32> to vector<8x96xf32>
    %303 = vector.extract_strided_slice %298 {offsets = [0, 0], sizes = [32, 96], strides = [1, 1]} : vector<32x192xf32> to vector<32x96xf32>
    %304 = vector.extract_strided_slice %298 {offsets = [0, 96], sizes = [32, 32], strides = [1, 1]} : vector<32x192xf32> to vector<32x32xf32>
    %305 = vector.extract_strided_slice %298 {offsets = [0, 128], sizes = [32, 64], strides = [1, 1]} : vector<32x192xf32> to vector<32x64xf32>
    %cst_92 = arith.constant dense<0.000000e+00> : vector<16x96xf32>
    %306 = tpu.matmul %291, %303, %cst_92 {dimension_numbers = #tpu.dot_dimension_numbers<[1], [0], [0], [1], [0, 0, 1, 1], [], []>} : vector<16x32xf32>, vector<32x96xf32>, vector<16x96xf32> -> vector<16x96xf32>
    %307 = vector.extract_strided_slice %302 {offsets = [0, 0], sizes = [1, 96], strides = [1, 1]} : vector<8x96xf32> to vector<1x96xf32>
    %308 = vector.shape_cast %307 : vector<1x96xf32> to vector<96xf32>
    %309 = vector.shape_cast %308 : vector<96xf32> to vector<1x96xf32>
    %310 = vector.broadcast %309 : vector<1x96xf32> to vector<16x96xf32>
    %311 = arith.addf %306, %310 : vector<16x96xf32>
    %312 = vector.extract_strided_slice %311 {offsets = [0, 0], sizes = [16, 32], strides = [1, 1]} : vector<16x96xf32> to vector<16x32xf32>
    %313 = vector.extract_strided_slice %311 {offsets = [0, 32], sizes = [16, 32], strides = [1, 1]} : vector<16x96xf32> to vector<16x32xf32>
    %314 = vector.extract_strided_slice %311 {offsets = [0, 64], sizes = [16, 32], strides = [1, 1]} : vector<16x96xf32> to vector<16x32xf32>
    %315 = vector.extract_strided_slice %312 {offsets = [0, 0], sizes = [16, 16], strides = [1, 1]} : vector<16x32xf32> to vector<16x16xf32>
    %316 = vector.extract_strided_slice %312 {offsets = [0, 16], sizes = [16, 16], strides = [1, 1]} : vector<16x32xf32> to vector<16x16xf32>
    %317 = vector.shape_cast %315 : vector<16x16xf32> to vector<1x16x16xf32>
    %318 = vector.shape_cast %316 : vector<16x16xf32> to vector<1x16x16xf32>
    %319 = tpu.concatenate %317, %318 in 0 : vector<1x16x16xf32>, vector<1x16x16xf32> -> vector<2x16x16xf32>
    %320 = vector.extract_strided_slice %313 {offsets = [0, 0], sizes = [16, 16], strides = [1, 1]} : vector<16x32xf32> to vector<16x16xf32>
    %321 = vector.extract_strided_slice %313 {offsets = [0, 16], sizes = [16, 16], strides = [1, 1]} : vector<16x32xf32> to vector<16x16xf32>
    %322 = vector.shape_cast %320 : vector<16x16xf32> to vector<1x16x16xf32>
    %323 = vector.shape_cast %321 : vector<16x16xf32> to vector<1x16x16xf32>
    %324 = tpu.concatenate %322, %323 in 0 : vector<1x16x16xf32>, vector<1x16x16xf32> -> vector<2x16x16xf32>
    %325 = vector.extract_strided_slice %314 {offsets = [0, 0], sizes = [16, 16], strides = [1, 1]} : vector<16x32xf32> to vector<16x16xf32>
    %326 = vector.extract_strided_slice %314 {offsets = [0, 16], sizes = [16, 16], strides = [1, 1]} : vector<16x32xf32> to vector<16x16xf32>
    %327 = vector.shape_cast %325 : vector<16x16xf32> to vector<1x16x16xf32>
    %328 = vector.shape_cast %326 : vector<16x16xf32> to vector<1x16x16xf32>
    %329 = tpu.concatenate %327, %328 in 0 : vector<1x16x16xf32>, vector<1x16x16xf32> -> vector<2x16x16xf32>
    "tpu.trace_start"() <{level = 10 : i32, message = "nqd,nkd->nqk"}> : () -> ()
    %cst_93 = arith.constant dense<0.000000e+00> : vector<2x16x16xf32>
    %330 = tpu.matmul %319, %324, %cst_93 {dimension_numbers = #tpu.dot_dimension_numbers<[2], [2], [1], [1], [0, 0, 0, 1, 1, 1], [0], [0]>} : vector<2x16x16xf32>, vector<2x16x16xf32>, vector<2x16x16xf32> -> vector<2x16x16xf32>
    "tpu.trace_stop"() : () -> ()
    %331 = arith.addf %330, %296 : vector<2x16x16xf32>
    %cst_94 = arith.constant dense<0xFF800000> : vector<2x16xf32>
    %332 = vector.multi_reduction <maximumf>, %331, %cst_94 [2] : vector<2x16x16xf32> to vector<2x16xf32>
    %333 = vector.shape_cast %332 : vector<2x16xf32> to vector<2x16x1xf32>
    %334 = vector.broadcast %333 : vector<2x16x1xf32> to vector<2x16x16xf32>
    %335 = arith.subf %331, %334 : vector<2x16x16xf32>
    %336 = math.exp %335 : vector<2x16x16xf32>
    %cst_95 = arith.constant dense<0.000000e+00> : vector<2x16xf32>
    %337 = vector.multi_reduction <add>, %336, %cst_95 [2] : vector<2x16x16xf32> to vector<2x16xf32>
    %338 = vector.shape_cast %337 : vector<2x16xf32> to vector<2x16x1xf32>
    %339 = tpu.reciprocal %338 {approx = true} : vector<2x16x1xf32> -> vector<2x16x1xf32>
    %340 = vector.broadcast %339 : vector<2x16x1xf32> to vector<2x16x16xf32>
    %341 = arith.mulf %336, %340 : vector<2x16x16xf32>
    "tpu.trace_start"() <{level = 10 : i32, message = "nqk,nkd->nqd"}> : () -> ()
    %cst_96 = arith.constant dense<0.000000e+00> : vector<2x16x16xf32>
    %342 = tpu.matmul %341, %329, %cst_96 {dimension_numbers = #tpu.dot_dimension_numbers<[2], [1], [1], [2], [0, 0, 0, 1, 1, 2], [0], [0]>} : vector<2x16x16xf32>, vector<2x16x16xf32>, vector<2x16x16xf32> -> vector<2x16x16xf32>
    "tpu.trace_stop"() : () -> ()
    %343 = vector.extract_strided_slice %342 {offsets = [0, 0, 0], sizes = [1, 16, 16], strides = [1, 1, 1]} : vector<2x16x16xf32> to vector<1x16x16xf32>
    %344 = vector.shape_cast %343 : vector<1x16x16xf32> to vector<16x16xf32>
    %345 = vector.extract_strided_slice %342 {offsets = [1, 0, 0], sizes = [1, 16, 16], strides = [1, 1, 1]} : vector<2x16x16xf32> to vector<1x16x16xf32>
    %346 = vector.shape_cast %345 : vector<1x16x16xf32> to vector<16x16xf32>
    %347 = tpu.concatenate %344, %346 in 1 : vector<16x16xf32>, vector<16x16xf32> -> vector<16x32xf32>
    %cst_97 = arith.constant dense<0.000000e+00> : vector<16x32xf32>
    %348 = tpu.matmul %347, %304, %cst_97 {dimension_numbers = #tpu.dot_dimension_numbers<[1], [0], [0], [1], [0, 0, 1, 1], [], []>} : vector<16x32xf32>, vector<32x32xf32>, vector<16x32xf32> -> vector<16x32xf32>
    %349 = vector.extract_strided_slice %302 {offsets = [1, 0], sizes = [1, 32], strides = [1, 1]} : vector<8x96xf32> to vector<1x32xf32>
    %350 = vector.shape_cast %349 : vector<1x32xf32> to vector<32xf32>
    %351 = vector.shape_cast %350 : vector<32xf32> to vector<1x32xf32>
    %352 = vector.broadcast %351 : vector<1x32xf32> to vector<16x32xf32>
    %353 = arith.addf %348, %352 : vector<16x32xf32>
    %354 = arith.addf %291, %353 : vector<16x32xf32>
    %355 = vector.extract_strided_slice %302 {offsets = [2, 0], sizes = [1, 32], strides = [1, 1]} : vector<8x96xf32> to vector<1x32xf32>
    %356 = vector.shape_cast %355 : vector<1x32xf32> to vector<32xf32>
    %357 = vector.extract_strided_slice %302 {offsets = [3, 0], sizes = [1, 32], strides = [1, 1]} : vector<8x96xf32> to vector<1x32xf32>
    %358 = vector.shape_cast %357 : vector<1x32xf32> to vector<32xf32>
    %cst_98 = arith.constant dense<0.000000e+00> : vector<16xf32>
    %359 = vector.multi_reduction <add>, %354, %cst_98 [1] : vector<16x32xf32> to vector<16xf32>
    %360 = vector.shape_cast %359 : vector<16xf32> to vector<16x1xf32>
    %cst_99 = arith.constant 3.200000e+01 : f32
    %361 = vector.broadcast %cst_99 : f32 to vector<16x1xf32>
    %362 = arith.divf %360, %361 : vector<16x1xf32>
    %363 = vector.broadcast %362 : vector<16x1xf32> to vector<16x32xf32>
    %364 = arith.subf %354, %363 : vector<16x32xf32>
    %365 = arith.mulf %364, %364 : vector<16x32xf32>
    %cst_100 = arith.constant dense<0.000000e+00> : vector<16xf32>
    %366 = vector.multi_reduction <add>, %365, %cst_100 [1] : vector<16x32xf32> to vector<16xf32>
    %367 = vector.shape_cast %366 : vector<16xf32> to vector<16x1xf32>
    %cst_101 = arith.constant 3.200000e+01 : f32
    %368 = vector.broadcast %cst_101 : f32 to vector<16x1xf32>
    %369 = arith.divf %367, %368 : vector<16x1xf32>
    %370 = vector.broadcast %362 : vector<16x1xf32> to vector<16x32xf32>
    %371 = arith.subf %354, %370 : vector<16x32xf32>
    %cst_102 = arith.constant 9.99999996E-13 : f32
    %372 = vector.broadcast %cst_102 : f32 to vector<16x1xf32>
    %373 = arith.addf %369, %372 : vector<16x1xf32>
    %374 = math.rsqrt %373 : vector<16x1xf32>
    %375 = vector.broadcast %374 : vector<16x1xf32> to vector<16x32xf32>
    %376 = arith.mulf %371, %375 : vector<16x32xf32>
    %377 = vector.shape_cast %356 : vector<32xf32> to vector<1x32xf32>
    %378 = vector.broadcast %377 : vector<1x32xf32> to vector<16x32xf32>
    %379 = arith.mulf %376, %378 : vector<16x32xf32>
    %380 = vector.shape_cast %358 : vector<32xf32> to vector<1x32xf32>
    %381 = vector.broadcast %380 : vector<1x32xf32> to vector<16x32xf32>
    %382 = arith.addf %379, %381 : vector<16x32xf32>
    %cst_103 = arith.constant dense<0.000000e+00> : vector<16x64xf32>
    %383 = tpu.matmul %382, %305, %cst_103 {dimension_numbers = #tpu.dot_dimension_numbers<[1], [0], [0], [1], [0, 0, 1, 1], [], []>} : vector<16x32xf32>, vector<32x64xf32>, vector<16x64xf32> -> vector<16x64xf32>
    %384 = vector.extract_strided_slice %302 {offsets = [4, 0], sizes = [1, 64], strides = [1, 1]} : vector<8x96xf32> to vector<1x64xf32>
    %385 = vector.shape_cast %384 : vector<1x64xf32> to vector<64xf32>
    %386 = vector.shape_cast %385 : vector<64xf32> to vector<1x64xf32>
    %387 = vector.broadcast %386 : vector<1x64xf32> to vector<16x64xf32>
    %388 = arith.addf %383, %387 : vector<16x64xf32>
    %389 = arith.mulf %388, %388 : vector<16x64xf32>
    %390 = arith.mulf %388, %389 : vector<16x64xf32>
    %cst_104 = arith.constant 4.471500e-02 : f32
    %391 = vector.broadcast %cst_104 : f32 to vector<16x64xf32>
    %392 = arith.mulf %391, %390 : vector<16x64xf32>
    %393 = arith.addf %388, %392 : vector<16x64xf32>
    %cst_105 = arith.constant 0.797884583 : f32
    %394 = vector.broadcast %cst_105 : f32 to vector<16x64xf32>
    %395 = arith.mulf %394, %393 : vector<16x64xf32>
    %396 = math.tanh %395 : vector<16x64xf32>
    %cst_106 = arith.constant 1.000000e+00 : f32
    %397 = vector.broadcast %cst_106 : f32 to vector<16x64xf32>
    %398 = arith.addf %397, %396 : vector<16x64xf32>
    %cst_107 = arith.constant 5.000000e-01 : f32
    %399 = vector.broadcast %cst_107 : f32 to vector<16x64xf32>
    %400 = arith.mulf %399, %398 : vector<16x64xf32>
    %401 = arith.mulf %388, %400 : vector<16x64xf32>
    %cst_108 = arith.constant dense<0.000000e+00> : vector<16x32xf32>
    %402 = tpu.matmul %401, %300, %cst_108 {dimension_numbers = #tpu.dot_dimension_numbers<[1], [0], [0], [1], [0, 0, 1, 1], [], []>} : vector<16x64xf32>, vector<64x32xf32>, vector<16x32xf32> -> vector<16x32xf32>
    %403 = vector.extract_strided_slice %302 {offsets = [5, 0], sizes = [1, 32], strides = [1, 1]} : vector<8x96xf32> to vector<1x32xf32>
    %404 = vector.shape_cast %403 : vector<1x32xf32> to vector<32xf32>
    %405 = vector.shape_cast %404 : vector<32xf32> to vector<1x32xf32>
    %406 = vector.broadcast %405 : vector<1x32xf32> to vector<16x32xf32>
    %407 = arith.addf %402, %406 : vector<16x32xf32>
    %408 = arith.addf %382, %407 : vector<16x32xf32>
    %409 = vector.extract_strided_slice %302 {offsets = [6, 0], sizes = [1, 32], strides = [1, 1]} : vector<8x96xf32> to vector<1x32xf32>
    %410 = vector.shape_cast %409 : vector<1x32xf32> to vector<32xf32>
    %411 = vector.extract_strided_slice %302 {offsets = [7, 0], sizes = [1, 32], strides = [1, 1]} : vector<8x96xf32> to vector<1x32xf32>
    %412 = vector.shape_cast %411 : vector<1x32xf32> to vector<32xf32>
    %cst_109 = arith.constant dense<0.000000e+00> : vector<16xf32>
    %413 = vector.multi_reduction <add>, %408, %cst_109 [1] : vector<16x32xf32> to vector<16xf32>
    %414 = vector.shape_cast %413 : vector<16xf32> to vector<16x1xf32>
    %cst_110 = arith.constant 3.200000e+01 : f32
    %415 = vector.broadcast %cst_110 : f32 to vector<16x1xf32>
    %416 = arith.divf %414, %415 : vector<16x1xf32>
    %417 = vector.broadcast %416 : vector<16x1xf32> to vector<16x32xf32>
    %418 = arith.subf %408, %417 : vector<16x32xf32>
    %419 = arith.mulf %418, %418 : vector<16x32xf32>
    %cst_111 = arith.constant dense<0.000000e+00> : vector<16xf32>
    %420 = vector.multi_reduction <add>, %419, %cst_111 [1] : vector<16x32xf32> to vector<16xf32>
    %421 = vector.shape_cast %420 : vector<16xf32> to vector<16x1xf32>
    %cst_112 = arith.constant 3.200000e+01 : f32
    %422 = vector.broadcast %cst_112 : f32 to vector<16x1xf32>
    %423 = arith.divf %421, %422 : vector<16x1xf32>
    %424 = vector.broadcast %416 : vector<16x1xf32> to vector<16x32xf32>
    %425 = arith.subf %408, %424 : vector<16x32xf32>
    %cst_113 = arith.constant 9.99999996E-13 : f32
    %426 = vector.broadcast %cst_113 : f32 to vector<16x1xf32>
    %427 = arith.addf %423, %426 : vector<16x1xf32>
    %428 = math.rsqrt %427 : vector<16x1xf32>
    %429 = vector.broadcast %428 : vector<16x1xf32> to vector<16x32xf32>
    %430 = arith.mulf %425, %429 : vector<16x32xf32>
    %431 = vector.shape_cast %410 : vector<32xf32> to vector<1x32xf32>
    %432 = vector.broadcast %431 : vector<1x32xf32> to vector<16x32xf32>
    %433 = arith.mulf %430, %432 : vector<16x32xf32>
    %434 = vector.shape_cast %412 : vector<32xf32> to vector<1x32xf32>
    %435 = vector.broadcast %434 : vector<1x32xf32> to vector<16x32xf32>
    %436 = arith.addf %433, %435 : vector<16x32xf32>
    %c1_114 = arith.constant 1 : index
    %c1_115 = arith.constant 1 : index
    %c0_116 = arith.constant 0 : index
    %c0_117 = arith.constant 0 : index
    %437 = vector.load %arg3[%c1_114, %c1_115, %c0_116, %c0_117] : memref<2x2x32x192xf32, #tpu.memory_space<vmem>>, vector<1x1x32x192xf32>
    %438 = vector.shape_cast %437 : vector<1x1x32x192xf32> to vector<32x192xf32>
    %c1_118 = arith.constant 1 : index
    %c1_119 = arith.constant 1 : index
    %c0_120 = arith.constant 0 : index
    %c0_121 = arith.constant 0 : index
    %439 = vector.load %arg4[%c1_118, %c1_119, %c0_120, %c0_121] : memref<2x2x64x32xf32, #tpu.memory_space<vmem>>, vector<1x1x64x32xf32>
    %440 = vector.shape_cast %439 : vector<1x1x64x32xf32> to vector<64x32xf32>
    %c1_122 = arith.constant 1 : index
    %c1_123 = arith.constant 1 : index
    %c0_124 = arith.constant 0 : index
    %c0_125 = arith.constant 0 : index
    %441 = vector.load %arg5[%c1_122, %c1_123, %c0_124, %c0_125] : memref<2x2x8x96xf32, #tpu.memory_space<vmem>>, vector<1x1x8x96xf32>
    %442 = vector.shape_cast %441 : vector<1x1x8x96xf32> to vector<8x96xf32>
    %443 = vector.extract_strided_slice %438 {offsets = [0, 0], sizes = [32, 96], strides = [1, 1]} : vector<32x192xf32> to vector<32x96xf32>
    %444 = vector.extract_strided_slice %438 {offsets = [0, 96], sizes = [32, 32], strides = [1, 1]} : vector<32x192xf32> to vector<32x32xf32>
    %445 = vector.extract_strided_slice %438 {offsets = [0, 128], sizes = [32, 64], strides = [1, 1]} : vector<32x192xf32> to vector<32x64xf32>
    %cst_126 = arith.constant dense<0.000000e+00> : vector<16x96xf32>
    %446 = tpu.matmul %436, %443, %cst_126 {dimension_numbers = #tpu.dot_dimension_numbers<[1], [0], [0], [1], [0, 0, 1, 1], [], []>} : vector<16x32xf32>, vector<32x96xf32>, vector<16x96xf32> -> vector<16x96xf32>
    %447 = vector.extract_strided_slice %442 {offsets = [0, 0], sizes = [1, 96], strides = [1, 1]} : vector<8x96xf32> to vector<1x96xf32>
    %448 = vector.shape_cast %447 : vector<1x96xf32> to vector<96xf32>
    %449 = vector.shape_cast %448 : vector<96xf32> to vector<1x96xf32>
    %450 = vector.broadcast %449 : vector<1x96xf32> to vector<16x96xf32>
    %451 = arith.addf %446, %450 : vector<16x96xf32>
    %452 = vector.extract_strided_slice %451 {offsets = [0, 0], sizes = [16, 32], strides = [1, 1]} : vector<16x96xf32> to vector<16x32xf32>
    %453 = vector.extract_strided_slice %451 {offsets = [0, 32], sizes = [16, 32], strides = [1, 1]} : vector<16x96xf32> to vector<16x32xf32>
    %454 = vector.extract_strided_slice %451 {offsets = [0, 64], sizes = [16, 32], strides = [1, 1]} : vector<16x96xf32> to vector<16x32xf32>
    %455 = vector.extract_strided_slice %452 {offsets = [0, 0], sizes = [16, 16], strides = [1, 1]} : vector<16x32xf32> to vector<16x16xf32>
    %456 = vector.extract_strided_slice %452 {offsets = [0, 16], sizes = [16, 16], strides = [1, 1]} : vector<16x32xf32> to vector<16x16xf32>
    %457 = vector.shape_cast %455 : vector<16x16xf32> to vector<1x16x16xf32>
    %458 = vector.shape_cast %456 : vector<16x16xf32> to vector<1x16x16xf32>
    %459 = tpu.concatenate %457, %458 in 0 : vector<1x16x16xf32>, vector<1x16x16xf32> -> vector<2x16x16xf32>
    %460 = vector.extract_strided_slice %453 {offsets = [0, 0], sizes = [16, 16], strides = [1, 1]} : vector<16x32xf32> to vector<16x16xf32>
    %461 = vector.extract_strided_slice %453 {offsets = [0, 16], sizes = [16, 16], strides = [1, 1]} : vector<16x32xf32> to vector<16x16xf32>
    %462 = vector.shape_cast %460 : vector<16x16xf32> to vector<1x16x16xf32>
    %463 = vector.shape_cast %461 : vector<16x16xf32> to vector<1x16x16xf32>
    %464 = tpu.concatenate %462, %463 in 0 : vector<1x16x16xf32>, vector<1x16x16xf32> -> vector<2x16x16xf32>
    %465 = vector.extract_strided_slice %454 {offsets = [0, 0], sizes = [16, 16], strides = [1, 1]} : vector<16x32xf32> to vector<16x16xf32>
    %466 = vector.extract_strided_slice %454 {offsets = [0, 16], sizes = [16, 16], strides = [1, 1]} : vector<16x32xf32> to vector<16x16xf32>
    %467 = vector.shape_cast %465 : vector<16x16xf32> to vector<1x16x16xf32>
    %468 = vector.shape_cast %466 : vector<16x16xf32> to vector<1x16x16xf32>
    %469 = tpu.concatenate %467, %468 in 0 : vector<1x16x16xf32>, vector<1x16x16xf32> -> vector<2x16x16xf32>
    "tpu.trace_start"() <{level = 10 : i32, message = "nqd,nkd->nqk"}> : () -> ()
    %cst_127 = arith.constant dense<0.000000e+00> : vector<2x16x16xf32>
    %470 = tpu.matmul %459, %464, %cst_127 {dimension_numbers = #tpu.dot_dimension_numbers<[2], [2], [1], [1], [0, 0, 0, 1, 1, 1], [0], [0]>} : vector<2x16x16xf32>, vector<2x16x16xf32>, vector<2x16x16xf32> -> vector<2x16x16xf32>
    "tpu.trace_stop"() : () -> ()
    %471 = arith.addf %470, %296 : vector<2x16x16xf32>
    %cst_128 = arith.constant dense<0xFF800000> : vector<2x16xf32>
    %472 = vector.multi_reduction <maximumf>, %471, %cst_128 [2] : vector<2x16x16xf32> to vector<2x16xf32>
    %473 = vector.shape_cast %472 : vector<2x16xf32> to vector<2x16x1xf32>
    %474 = vector.broadcast %473 : vector<2x16x1xf32> to vector<2x16x16xf32>
    %475 = arith.subf %471, %474 : vector<2x16x16xf32>
    %476 = math.exp %475 : vector<2x16x16xf32>
    %cst_129 = arith.constant dense<0.000000e+00> : vector<2x16xf32>
    %477 = vector.multi_reduction <add>, %476, %cst_129 [2] : vector<2x16x16xf32> to vector<2x16xf32>
    %478 = vector.shape_cast %477 : vector<2x16xf32> to vector<2x16x1xf32>
    %479 = tpu.reciprocal %478 {approx = true} : vector<2x16x1xf32> -> vector<2x16x1xf32>
    %480 = vector.broadcast %479 : vector<2x16x1xf32> to vector<2x16x16xf32>
    %481 = arith.mulf %476, %480 : vector<2x16x16xf32>
    "tpu.trace_start"() <{level = 10 : i32, message = "nqk,nkd->nqd"}> : () -> ()
    %cst_130 = arith.constant dense<0.000000e+00> : vector<2x16x16xf32>
    %482 = tpu.matmul %481, %469, %cst_130 {dimension_numbers = #tpu.dot_dimension_numbers<[2], [1], [1], [2], [0, 0, 0, 1, 1, 2], [0], [0]>} : vector<2x16x16xf32>, vector<2x16x16xf32>, vector<2x16x16xf32> -> vector<2x16x16xf32>
    "tpu.trace_stop"() : () -> ()
    %483 = vector.extract_strided_slice %482 {offsets = [0, 0, 0], sizes = [1, 16, 16], strides = [1, 1, 1]} : vector<2x16x16xf32> to vector<1x16x16xf32>
    %484 = vector.shape_cast %483 : vector<1x16x16xf32> to vector<16x16xf32>
    %485 = vector.extract_strided_slice %482 {offsets = [1, 0, 0], sizes = [1, 16, 16], strides = [1, 1, 1]} : vector<2x16x16xf32> to vector<1x16x16xf32>
    %486 = vector.shape_cast %485 : vector<1x16x16xf32> to vector<16x16xf32>
    %487 = tpu.concatenate %484, %486 in 1 : vector<16x16xf32>, vector<16x16xf32> -> vector<16x32xf32>
    %cst_131 = arith.constant dense<0.000000e+00> : vector<16x32xf32>
    %488 = tpu.matmul %487, %444, %cst_131 {dimension_numbers = #tpu.dot_dimension_numbers<[1], [0], [0], [1], [0, 0, 1, 1], [], []>} : vector<16x32xf32>, vector<32x32xf32>, vector<16x32xf32> -> vector<16x32xf32>
    %489 = vector.extract_strided_slice %442 {offsets = [1, 0], sizes = [1, 32], strides = [1, 1]} : vector<8x96xf32> to vector<1x32xf32>
    %490 = vector.shape_cast %489 : vector<1x32xf32> to vector<32xf32>
    %491 = vector.shape_cast %490 : vector<32xf32> to vector<1x32xf32>
    %492 = vector.broadcast %491 : vector<1x32xf32> to vector<16x32xf32>
    %493 = arith.addf %488, %492 : vector<16x32xf32>
    %494 = arith.addf %436, %493 : vector<16x32xf32>
    %495 = vector.extract_strided_slice %442 {offsets = [2, 0], sizes = [1, 32], strides = [1, 1]} : vector<8x96xf32> to vector<1x32xf32>
    %496 = vector.shape_cast %495 : vector<1x32xf32> to vector<32xf32>
    %497 = vector.extract_strided_slice %442 {offsets = [3, 0], sizes = [1, 32], strides = [1, 1]} : vector<8x96xf32> to vector<1x32xf32>
    %498 = vector.shape_cast %497 : vector<1x32xf32> to vector<32xf32>
    %cst_132 = arith.constant dense<0.000000e+00> : vector<16xf32>
    %499 = vector.multi_reduction <add>, %494, %cst_132 [1] : vector<16x32xf32> to vector<16xf32>
    %500 = vector.shape_cast %499 : vector<16xf32> to vector<16x1xf32>
    %cst_133 = arith.constant 3.200000e+01 : f32
    %501 = vector.broadcast %cst_133 : f32 to vector<16x1xf32>
    %502 = arith.divf %500, %501 : vector<16x1xf32>
    %503 = vector.broadcast %502 : vector<16x1xf32> to vector<16x32xf32>
    %504 = arith.subf %494, %503 : vector<16x32xf32>
    %505 = arith.mulf %504, %504 : vector<16x32xf32>
    %cst_134 = arith.constant dense<0.000000e+00> : vector<16xf32>
    %506 = vector.multi_reduction <add>, %505, %cst_134 [1] : vector<16x32xf32> to vector<16xf32>
    %507 = vector.shape_cast %506 : vector<16xf32> to vector<16x1xf32>
    %cst_135 = arith.constant 3.200000e+01 : f32
    %508 = vector.broadcast %cst_135 : f32 to vector<16x1xf32>
    %509 = arith.divf %507, %508 : vector<16x1xf32>
    %510 = vector.broadcast %502 : vector<16x1xf32> to vector<16x32xf32>
    %511 = arith.subf %494, %510 : vector<16x32xf32>
    %cst_136 = arith.constant 9.99999996E-13 : f32
    %512 = vector.broadcast %cst_136 : f32 to vector<16x1xf32>
    %513 = arith.addf %509, %512 : vector<16x1xf32>
    %514 = math.rsqrt %513 : vector<16x1xf32>
    %515 = vector.broadcast %514 : vector<16x1xf32> to vector<16x32xf32>
    %516 = arith.mulf %511, %515 : vector<16x32xf32>
    %517 = vector.shape_cast %496 : vector<32xf32> to vector<1x32xf32>
    %518 = vector.broadcast %517 : vector<1x32xf32> to vector<16x32xf32>
    %519 = arith.mulf %516, %518 : vector<16x32xf32>
    %520 = vector.shape_cast %498 : vector<32xf32> to vector<1x32xf32>
    %521 = vector.broadcast %520 : vector<1x32xf32> to vector<16x32xf32>
    %522 = arith.addf %519, %521 : vector<16x32xf32>
    %cst_137 = arith.constant dense<0.000000e+00> : vector<16x64xf32>
    %523 = tpu.matmul %522, %445, %cst_137 {dimension_numbers = #tpu.dot_dimension_numbers<[1], [0], [0], [1], [0, 0, 1, 1], [], []>} : vector<16x32xf32>, vector<32x64xf32>, vector<16x64xf32> -> vector<16x64xf32>
    %524 = vector.extract_strided_slice %442 {offsets = [4, 0], sizes = [1, 64], strides = [1, 1]} : vector<8x96xf32> to vector<1x64xf32>
    %525 = vector.shape_cast %524 : vector<1x64xf32> to vector<64xf32>
    %526 = vector.shape_cast %525 : vector<64xf32> to vector<1x64xf32>
    %527 = vector.broadcast %526 : vector<1x64xf32> to vector<16x64xf32>
    %528 = arith.addf %523, %527 : vector<16x64xf32>
    %529 = arith.mulf %528, %528 : vector<16x64xf32>
    %530 = arith.mulf %528, %529 : vector<16x64xf32>
    %cst_138 = arith.constant 4.471500e-02 : f32
    %531 = vector.broadcast %cst_138 : f32 to vector<16x64xf32>
    %532 = arith.mulf %531, %530 : vector<16x64xf32>
    %533 = arith.addf %528, %532 : vector<16x64xf32>
    %cst_139 = arith.constant 0.797884583 : f32
    %534 = vector.broadcast %cst_139 : f32 to vector<16x64xf32>
    %535 = arith.mulf %534, %533 : vector<16x64xf32>
    %536 = math.tanh %535 : vector<16x64xf32>
    %cst_140 = arith.constant 1.000000e+00 : f32
    %537 = vector.broadcast %cst_140 : f32 to vector<16x64xf32>
    %538 = arith.addf %537, %536 : vector<16x64xf32>
    %cst_141 = arith.constant 5.000000e-01 : f32
    %539 = vector.broadcast %cst_141 : f32 to vector<16x64xf32>
    %540 = arith.mulf %539, %538 : vector<16x64xf32>
    %541 = arith.mulf %528, %540 : vector<16x64xf32>
    %cst_142 = arith.constant dense<0.000000e+00> : vector<16x32xf32>
    %542 = tpu.matmul %541, %440, %cst_142 {dimension_numbers = #tpu.dot_dimension_numbers<[1], [0], [0], [1], [0, 0, 1, 1], [], []>} : vector<16x64xf32>, vector<64x32xf32>, vector<16x32xf32> -> vector<16x32xf32>
    %543 = vector.extract_strided_slice %442 {offsets = [5, 0], sizes = [1, 32], strides = [1, 1]} : vector<8x96xf32> to vector<1x32xf32>
    %544 = vector.shape_cast %543 : vector<1x32xf32> to vector<32xf32>
    %545 = vector.shape_cast %544 : vector<32xf32> to vector<1x32xf32>
    %546 = vector.broadcast %545 : vector<1x32xf32> to vector<16x32xf32>
    %547 = arith.addf %542, %546 : vector<16x32xf32>
    %548 = arith.addf %522, %547 : vector<16x32xf32>
    %549 = vector.extract_strided_slice %442 {offsets = [6, 0], sizes = [1, 32], strides = [1, 1]} : vector<8x96xf32> to vector<1x32xf32>
    %550 = vector.shape_cast %549 : vector<1x32xf32> to vector<32xf32>
    %551 = vector.extract_strided_slice %442 {offsets = [7, 0], sizes = [1, 32], strides = [1, 1]} : vector<8x96xf32> to vector<1x32xf32>
    %552 = vector.shape_cast %551 : vector<1x32xf32> to vector<32xf32>
    %cst_143 = arith.constant dense<0.000000e+00> : vector<16xf32>
    %553 = vector.multi_reduction <add>, %548, %cst_143 [1] : vector<16x32xf32> to vector<16xf32>
    %554 = vector.shape_cast %553 : vector<16xf32> to vector<16x1xf32>
    %cst_144 = arith.constant 3.200000e+01 : f32
    %555 = vector.broadcast %cst_144 : f32 to vector<16x1xf32>
    %556 = arith.divf %554, %555 : vector<16x1xf32>
    %557 = vector.broadcast %556 : vector<16x1xf32> to vector<16x32xf32>
    %558 = arith.subf %548, %557 : vector<16x32xf32>
    %559 = arith.mulf %558, %558 : vector<16x32xf32>
    %cst_145 = arith.constant dense<0.000000e+00> : vector<16xf32>
    %560 = vector.multi_reduction <add>, %559, %cst_145 [1] : vector<16x32xf32> to vector<16xf32>
    %561 = vector.shape_cast %560 : vector<16xf32> to vector<16x1xf32>
    %cst_146 = arith.constant 3.200000e+01 : f32
    %562 = vector.broadcast %cst_146 : f32 to vector<16x1xf32>
    %563 = arith.divf %561, %562 : vector<16x1xf32>
    %564 = vector.broadcast %556 : vector<16x1xf32> to vector<16x32xf32>
    %565 = arith.subf %548, %564 : vector<16x32xf32>
    %cst_147 = arith.constant 9.99999996E-13 : f32
    %566 = vector.broadcast %cst_147 : f32 to vector<16x1xf32>
    %567 = arith.addf %563, %566 : vector<16x1xf32>
    %568 = math.rsqrt %567 : vector<16x1xf32>
    %569 = vector.broadcast %568 : vector<16x1xf32> to vector<16x32xf32>
    %570 = arith.mulf %565, %569 : vector<16x32xf32>
    %571 = vector.shape_cast %550 : vector<32xf32> to vector<1x32xf32>
    %572 = vector.broadcast %571 : vector<1x32xf32> to vector<16x32xf32>
    %573 = arith.mulf %570, %572 : vector<16x32xf32>
    %574 = vector.shape_cast %552 : vector<32xf32> to vector<1x32xf32>
    %575 = vector.broadcast %574 : vector<1x32xf32> to vector<16x32xf32>
    %576 = arith.addf %573, %575 : vector<16x32xf32>
    %c1_148 = arith.constant 1 : index
    %c0_149 = arith.constant 0 : index
    %c0_150 = arith.constant 0 : index
    %577 = vector.load %arg6[%c1_148, %c0_149, %c0_150] : memref<2x16x32xf32, #tpu.memory_space<vmem>>, vector<1x16x32xf32>
    %578 = vector.shape_cast %577 : vector<1x16x32xf32> to vector<16x32xf32>
    %579 = vector.shape_cast %576 : vector<16x32xf32> to vector<1x16x32xf32>
    tpu.vector_store %arg6[%c1_148, %c0_149, %c0_150], %579 {strides = array<i32>} : memref<2x16x32xf32, #tpu.memory_space<vmem>>, vector<1x16x32xf32>,
    return
  }
  func.func @transform_0(%arg0: i32) -> (i32, i32, i32) {
    %c0_i32 = arith.constant 0 : i32
    %c0_i32_0 = arith.constant 0 : i32
    %c0_i32_1 = arith.constant 0 : i32
    %c0_i32_2 = arith.constant 0 : i32
    return %c0_i32, %c0_i32_0, %c0_i32_1 : i32, i32, i32
  }
  func.func @transform_1(%arg0: i32) -> (i32, i32, i32) {
    %c0_i32 = arith.constant 0 : i32
    %c0_i32_0 = arith.constant 0 : i32
    %c0_i32_1 = arith.constant 0 : i32
    %c0_i32_2 = arith.constant 0 : i32
    return %c0_i32, %c0_i32_0, %c0_i32_1 : i32, i32, i32
  }
  func.func @transform_2(%arg0: i32) -> (i32, i32, i32, i32) {
    %c0_i32 = arith.constant 0 : i32
    %c0_i32_0 = arith.constant 0 : i32
    %c0_i32_1 = arith.constant 0 : i32
    %c0_i32_2 = arith.constant 0 : i32
    %c0_i32_3 = arith.constant 0 : i32
    return %c0_i32, %c0_i32_0, %c0_i32_1, %c0_i32_2 : i32, i32, i32, i32
  }
  func.func @transform_3(%arg0: i32) -> (i32, i32, i32, i32) {
    %c0_i32 = arith.constant 0 : i32
    %c0_i32_0 = arith.constant 0 : i32
    %c0_i32_1 = arith.constant 0 : i32
    %c0_i32_2 = arith.constant 0 : i32
    %c0_i32_3 = arith.constant 0 : i32
    return %c0_i32, %c0_i32_0, %c0_i32_1, %c0_i32_2 : i32, i32, i32, i32
  }
  func.func @transform_4(%arg0: i32) -> (i32, i32, i32, i32) {
    %c0_i32 = arith.constant 0 : i32
    %c0_i32_0 = arith.constant 0 : i32
    %c0_i32_1 = arith.constant 0 : i32
    %c0_i32_2 = arith.constant 0 : i32
    %c0_i32_3 = arith.constant 0 : i32
    return %c0_i32, %c0_i32_0, %c0_i32_1, %c0_i32_2 : i32, i32, i32, i32
  }
  func.func @transform_5(%arg0: i32) -> (i32, i32, i32) {
    %c0_i32 = arith.constant 0 : i32
    %c0_i32_0 = arith.constant 0 : i32
    %c0_i32_1 = arith.constant 0 : i32
    %c0_i32_2 = arith.constant 0 : i32
    return %c0_i32, %c0_i32_0, %c0_i32_1 : i32, i32, i32
  }
}

</mosaic_0001>

<llo_original>
// kernel: dpr_combined_forward.1
$region0: #{dpr_combined_forward.1}
  #allocation0 [shape = 'u32[]', space=smem, size = 0x4, offset = 0x4, fixed_abs, tag = 'smem constant byte address 0x4 - core index']
  #allocation1 [shape = 'u32[144,128]{1,0:T(1,128)}', space=vmem, size = 0x12000, scoped, tag = 'internal scratch']
  %s0 = inlined_call_operand.vmem [shape: f32[2,16,32], index: 0, kind: input, shape index: {}]
  %s1 = inlined_call_operand.vmem [shape: f32[2,16,16], index: 1, kind: input, shape index: {}]
  %s2 = inlined_call_operand.vmem [shape: f32[2,2,32,192], index: 2, kind: input, shape index: {}]
  %s3 = inlined_call_operand.vmem [shape: f32[2,2,64,32], index: 3, kind: input, shape index: {}]
  %s4 = inlined_call_operand.vmem [shape: f32[2,2,8,96], index: 4, kind: input, shape index: {}]
  %s5 = inlined_call_operand.vmem [shape: f32[2,16,32], index: 5, kind: output, shape index: {}]
  %s6 = sld [smem:[#allocation0]]
  $region30: #{dpr_combined_forward.1} parent=0
    _
  %s8 = ssub.s32 1, %s6
  %s9 = scalar_select 0, %s8, %s6
  // Predicated region
  $region2: #{dpr_combined_forward.1} parent=0 // pred_check
    _
  $region3: #{dpr_combined_forward.1} parent=0 // pred_check_branch
    %11 = sbr.rel (0) target = $region5
  $region4: #{dpr_combined_forward.1} parent=0 // pred_region
    _
  $region5: #{dpr_combined_forward.1} parent=0 // pred_fallthru
    _
  // Predicated region
  $region6: #{dpr_combined_forward.1} parent=0 // pred_check
    _
  $region7: #{dpr_combined_forward.1} parent=0 // pred_check_branch
    %13 = sbr.rel (0) target = $region9
  $region8: #{dpr_combined_forward.1} parent=0 // pred_region
    _
  $region9: #{dpr_combined_forward.1} parent=0 // pred_fallthru
    _
  // Predicated region
  $region10: #{dpr_combined_forward.1} parent=0 // pred_check
    _
  $region11: #{dpr_combined_forward.1} parent=0 // pred_check_branch
    %15 = sbr.rel (0) target = $region13
  $region12: #{dpr_combined_forward.1} parent=0 // pred_region
    _
  $region13: #{dpr_combined_forward.1} parent=0 // pred_fallthru
    _
  // Predicated region
  $region14: #{dpr_combined_forward.1} parent=0 // pred_check
    _
  $region15: #{dpr_combined_forward.1} parent=0 // pred_check_branch
    %17 = sbr.rel (0) target = $region17
  $region16: #{dpr_combined_forward.1} parent=0 // pred_region
    _
  $region17: #{dpr_combined_forward.1} parent=0 // pred_fallthru
    _
  // Predicated region
  $region18: #{dpr_combined_forward.1} parent=0 // pred_check
    _
  $region19: #{dpr_combined_forward.1} parent=0 // pred_check_branch
    %19 = sbr.rel (0) target = $region21
  $region20: #{dpr_combined_forward.1} parent=0 // pred_region
    _
  $region21: #{dpr_combined_forward.1} parent=0 // pred_fallthru
    _
  %v20 = vld [vmem:[%s0] sm:$0xff]
  %v21 = vld [vmem:[%s0 + $0x8] sm:$0xff]
  %v22 = vld [vmem:[%s1] sm:$0xff]
  %v23 = vld [vmem:[%s1 + $0x8] sm:$0xff]
  %v24 = vld [vmem:[%s2] sm:$0xff]
  %v25 = vld [vmem:[%s2 + $0x8] sm:$0xff]
  %v26 = vld [vmem:[%s2 + $0x10] sm:$0xff]
  %v27 = vld [vmem:[%s2 + $0x18] sm:$0xff]
  %v28 = vld [vmem:[%s2 + $0x20] sm:$0xff]
  %v29 = vld [vmem:[%s2 + $0x28] sm:$0xff]
  %v30 = vld [vmem:[%s2 + $0x30] sm:$0xff]
  %v31 = vld [vmem:[%s2 + $0x38] sm:$0xff]
  %v32 = vld [vmem:[%s3] sm:$0xff]
  %v33 = vld [vmem:[%s3 + $0x8] sm:$0xff]
  %v34 = vld [vmem:[%s3 + $0x10] sm:$0xff]
  %v35 = vld [vmem:[%s3 + $0x18] sm:$0xff]
  %v36 = vld [vmem:[%s3 + $0x20] sm:$0xff]
  %v37 = vld [vmem:[%s3 + $0x28] sm:$0xff]
  %v38 = vld [vmem:[%s3 + $0x30] sm:$0xff]
  %v39 = vld [vmem:[%s3 + $0x38] sm:$0xff]
  %v40 = vld [vmem:[%s4] sm:$0xff]
  %v41 = vlaneseq
  %v42 = vshrl.u32 %v41, 7
  %v43 = vsub.s32 0, %v42
  %v44 = vrot.slane %v40, %v43
  %vm45 = vcmask 261120
  %v47 = vsel %vm45, %v20, 0
  %v50 = vsel %vm45, %v21, 0
  %52 = vmatprep.subr.mxu0 0.0
  %53 = vmatpush1.msra.mxu0 %v24
  %54 = vmatprep.subr.mxu0 0.0
  %55 = vmatpush1.msra.mxu0 %v26
  %56 = vmatprep.subr.mxu0 0.0
  %57 = vmatpush1.msra.mxu0 %v28
  %58 = vmatprep.subr.mxu0 0.0
  %59 = vmatpush1.msra.mxu0 %v30
  %60 = vmatprep.subr.mxu0 0.0
  %61 = vmatpush1.msra.mxu0 0.0
  %62 = vmatprep.subr.mxu0 0.0
  %63 = vmatpush1.msra.mxu0 0.0
  %64 = vmatprep.subr.mxu0 0.0
  %65 = vmatpush1.msra.mxu0 0.0
  %66 = vmatprep.subr.mxu0 0.0
  %67 = vmatpush1.msra.mxu0 0.0
  %68 = vmatprep.subr.mxu0 0.0
  %69 = vmatpush1.msra.mxu0 0.0
  %70 = vmatprep.subr.mxu0 0.0
  %71 = vmatpush1.msra.mxu0 0.0
  %72 = vmatprep.subr.mxu0 0.0
  %73 = vmatpush1.msra.mxu0 0.0
  %74 = vmatprep.subr.mxu0 0.0
  %75 = vmatpush1.msra.mxu0 0.0
  %76 = vmatprep.subr.mxu0 0.0
  %77 = vmatpush1.msra.mxu0 0.0
  %78 = vmatprep.subr.mxu0 0.0
  %79 = vmatpush1.msra.mxu0 0.0
  %80 = vmatprep.subr.mxu0 0.0
  %81 = vmatpush1.msra.mxu0 0.0
  %82 = vmatprep.subr.mxu0 0.0
  %83 = vmatpush1.msra.mxu0 0.0
  %84 = vmatprep.subr.mxu0 0.0
  %85 = vmatpush1.msra.mxu0 0.0
  %86 = vmatprep.subr.mxu0 0.0
  %87 = vmatpush1.msra.mxu0 0.0
  %88 = vmatprep.subr.mxu0 0.0
  %89 = vmatpush1.msra.mxu0 0.0
  %90 = vmatprep.subr.mxu0 0.0
  %91 = vmatpush1.msra.mxu0 0.0
  %92 = vmatprep.subr.mxu0 0.0
  %93 = vmatpush1.msra.mxu0 0.0
  %94 = vmatprep.subr.mxu0 0.0
  %95 = vmatpush1.msra.mxu0 0.0
  %96 = vmatprep.subr.mxu0 0.0
  %97 = vmatpush1.msra.mxu0 0.0
  %98 = vmatprep.subr.mxu0 0.0
  %99 = vmatpush1.msra.mxu0 0.0
  %100 = vmatprep.subr.mxu0 0.0
  %101 = vmatpush1.msra.mxu0 0.0
  %102 = vmatprep.subr.mxu0 0.0
  %103 = vmatpush1.msra.mxu0 0.0
  %104 = vmatprep.subr.mxu0 0.0
  %105 = vmatpush1.msra.mxu0 0.0
  %106 = vmatprep.subr.mxu0 0.0
  %107 = vmatpush1.msra.mxu0 0.0
  %108 = vmatprep.subr.mxu0 0.0
  %109 = vmatpush1.msra.mxu0 0.0
  %110 = vmatprep.subr.mxu0 0.0
  %111 = vmatpush1.msra.mxu0 0.0
  %112 = vmatprep.subr.mxu0 0.0
  %113 = vmatpush1.msra.mxu0 0.0
  %114 = vmatprep.subr.mxu0 0.0
  %115 = vmatpush1.msra.mxu0 0.0
  %116 = vmatprep.mubr.f32.mxu0 0.0
  %117 = vmatmul.mubr.f32.gmra.mrb[0].mxu0 %v47
  %v118 = vpop.f32.mrb[0].mxu0
  %v119 = vadd.f32 %v44, %v118
  %v120 = vpop.f32.mrb[0].mxu0
  %121 = vmatprep.mubr.f32.mxu0 0.0
  %122 = vmatmul.mubr.f32.gmra.mrb[0].mxu0 %v50
  %v123 = vpop.f32.mrb[0].mxu0
  %v124 = vadd.f32 %v44, %v123
  %v125 = vpop.f32.mrb[0].mxu0
  %126 = vdwg.mxu0
  %129 = vrot.lane.b32.xlu0 %v119, 112
  %v130 = vpop.permute.xlu0 %129
  %131 = vrot.lane.b32.xlu0 %v124, 112
  %v132 = vpop.permute.xlu0 %131
  %133 = vrot.lane.b32.xlu0 %v119, 96
  %v134 = vpop.permute.xlu0 %133
  %135 = vrot.lane.b32.xlu0 %v124, 96
  %v136 = vpop.permute.xlu0 %135
  %vm137 = vcmask 130048
  %v138 = vsel %vm137, %v119, 0
  %v140 = vsel %vm137, %v124, 0
  %v142 = vsel %vm137, %v134, 0
  %v144 = vsel %vm137, %v136, 0
  %146 = vmatprep.subr.mxu0 0.0
  %147 = vmatpush1.xpose.msra.mxu0 %v142
  %148 = vmatprep.subr.mxu0 0.0
  %149 = vmatpush1.xpose.msra.mxu0 %v144
  %150 = vmatprep.subr.mxu0 0.0
  %151 = vmatpush1.xpose.msra.mxu0 0.0
  %152 = vmatprep.subr.mxu0 0.0
  %153 = vmatpush1.xpose.msra.mxu0 0.0
  %154 = vmatprep.subr.mxu0 0.0
  %155 = vmatpush1.xpose.msra.mxu0 0.0
  %156 = vmatprep.subr.mxu0 0.0
  %157 = vmatpush1.xpose.msra.mxu0 0.0
  %158 = vmatprep.subr.mxu0 0.0
  %159 = vmatpush1.xpose.msra.mxu0 0.0
  %160 = vmatprep.subr.mxu0 0.0
  %161 = vmatpush1.xpose.msra.mxu0 0.0
  %162 = vmatprep.subr.mxu0 0.0
  %163 = vmatpush1.xpose.msra.mxu0 0.0
  %164 = vmatprep.subr.mxu0 0.0
  %165 = vmatpush1.xpose.msra.mxu0 0.0
  %166 = vmatprep.subr.mxu0 0.0
  %167 = vmatpush1.xpose.msra.mxu0 0.0
  %168 = vmatprep.subr.mxu0 0.0
  %169 = vmatpush1.xpose.msra.mxu0 0.0
  %170 = vmatprep.subr.mxu0 0.0
  %171 = vmatpush1.xpose.msra.mxu0 0.0
  %172 = vmatprep.subr.mxu0 0.0
  %173 = vmatpush1.xpose.msra.mxu0 0.0
  %174 = vmatprep.subr.mxu0 0.0
  %175 = vmatpush1.xpose.msra.mxu0 0.0
  %176 = vmatprep.subr.mxu0 0.0
  %177 = vmatpush1.xpose.msra.mxu0 0.0
  %178 = vmatprep.subr.mxu0 0.0
  %179 = vmatpush1.xpose.msra.mxu0 0.0
  %180 = vmatprep.subr.mxu0 0.0
  %181 = vmatpush1.xpose.msra.mxu0 0.0
  %182 = vmatprep.subr.mxu0 0.0
  %183 = vmatpush1.xpose.msra.mxu0 0.0
  %184 = vmatprep.subr.mxu0 0.0
  %185 = vmatpush1.xpose.msra.mxu0 0.0
  %186 = vmatprep.subr.mxu0 0.0
  %187 = vmatpush1.xpose.msra.mxu0 0.0
  %188 = vmatprep.subr.mxu0 0.0
  %189 = vmatpush1.xpose.msra.mxu0 0.0
  %190 = vmatprep.subr.mxu0 0.0
  %191 = vmatpush1.xpose.msra.mxu0 0.0
  %192 = vmatprep.subr.mxu0 0.0
  %193 = vmatpush1.xpose.msra.mxu0 0.0
  %194 = vmatprep.subr.mxu0 0.0
  %195 = vmatpush1.xpose.msra.mxu0 0.0
  %196 = vmatprep.subr.mxu0 0.0
  %197 = vmatpush1.xpose.msra.mxu0 0.0
  %198 = vmatprep.subr.mxu0 0.0
  %199 = vmatpush1.xpose.msra.mxu0 0.0
  %200 = vmatprep.subr.mxu0 0.0
  %201 = vmatpush1.xpose.msra.mxu0 0.0
  %202 = vmatprep.subr.mxu0 0.0
  %203 = vmatpush1.xpose.msra.mxu0 0.0
  %204 = vmatprep.subr.mxu0 0.0
  %205 = vmatpush1.xpose.msra.mxu0 0.0
  %206 = vmatprep.subr.mxu0 0.0
  %207 = vmatpush1.xpose.msra.mxu0 0.0
  %208 = vmatprep.subr.mxu0 0.0
  %209 = vmatpush1.xpose.msra.mxu0 0.0
  %210 = vmatprep.mubr.f32.mxu0 0.0
  %211 = vmatmul.mubr.f32.gmra.mrb[0].mxu0 %v138
  %v212 = vpop.f32.mrb[0].mxu0
  %v213 = vadd.f32 %v22, %v212
  %v214 = vpop.f32.mrb[0].mxu0
  %215 = vmatprep.mubr.f32.mxu0 0.0
  %216 = vmatmul.mubr.f32.gmra.mrb[0].mxu0 %v140
  %v217 = vpop.f32.mrb[0].mxu0
  %v218 = vadd.f32 %v23, %v217
  %v219 = vpop.f32.mrb[0].mxu0
  %220 = vdwg.mxu0
  %221 = vrot.lane.b32.xlu0 %v130, 96
  %v222 = vpop.permute.xlu0 %221
  %223 = vrot.lane.b32.xlu0 %v132, 96
  %v224 = vpop.permute.xlu0 %223
  %v225 = vsel %vm137, %v130, 0
  %v227 = vsel %vm137, %v132, 0
  %v229 = vsel %vm137, %v222, 0
  %v231 = vsel %vm137, %v224, 0
  %233 = vmatprep.subr.mxu0 0.0
  %234 = vmatpush1.xpose.msra.mxu0 %v229
  %235 = vmatprep.subr.mxu0 0.0
  %236 = vmatpush1.xpose.msra.mxu0 %v231
  %237 = vmatprep.subr.mxu0 0.0
  %238 = vmatpush1.xpose.msra.mxu0 0.0
  %239 = vmatprep.subr.mxu0 0.0
  %240 = vmatpush1.xpose.msra.mxu0 0.0
  %241 = vmatprep.subr.mxu0 0.0
  %242 = vmatpush1.xpose.msra.mxu0 0.0
  %243 = vmatprep.subr.mxu0 0.0
  %244 = vmatpush1.xpose.msra.mxu0 0.0
  %245 = vmatprep.subr.mxu0 0.0
  %246 = vmatpush1.xpose.msra.mxu0 0.0
  %247 = vmatprep.subr.mxu0 0.0
  %248 = vmatpush1.xpose.msra.mxu0 0.0
  %249 = vmatprep.subr.mxu0 0.0
  %250 = vmatpush1.xpose.msra.mxu0 0.0
  %251 = vmatprep.subr.mxu0 0.0
  %252 = vmatpush1.xpose.msra.mxu0 0.0
  %253 = vmatprep.subr.mxu0 0.0
  %254 = vmatpush1.xpose.msra.mxu0 0.0
  %255 = vmatprep.subr.mxu0 0.0
  %256 = vmatpush1.xpose.msra.mxu0 0.0
  %257 = vmatprep.subr.mxu0 0.0
  %258 = vmatpush1.xpose.msra.mxu0 0.0
  %259 = vmatprep.subr.mxu0 0.0
  %260 = vmatpush1.xpose.msra.mxu0 0.0
  %261 = vmatprep.subr.mxu0 0.0
  %262 = vmatpush1.xpose.msra.mxu0 0.0
  %263 = vmatprep.subr.mxu0 0.0
  %264 = vmatpush1.xpose.msra.mxu0 0.0
  %265 = vmatprep.subr.mxu0 0.0
  %266 = vmatpush1.xpose.msra.mxu0 0.0
  %267 = vmatprep.subr.mxu0 0.0
  %268 = vmatpush1.xpose.msra.mxu0 0.0
  %269 = vmatprep.subr.mxu0 0.0
  %270 = vmatpush1.xpose.msra.mxu0 0.0
  %271 = vmatprep.subr.mxu0 0.0
  %272 = vmatpush1.xpose.msra.mxu0 0.0
  %273 = vmatprep.subr.mxu0 0.0
  %274 = vmatpush1.xpose.msra.mxu0 0.0
  %275 = vmatprep.subr.mxu0 0.0
  %276 = vmatpush1.xpose.msra.mxu0 0.0
  %277 = vmatprep.subr.mxu0 0.0
  %278 = vmatpush1.xpose.msra.mxu0 0.0
  %279 = vmatprep.subr.mxu0 0.0
  %280 = vmatpush1.xpose.msra.mxu0 0.0
  %281 = vmatprep.subr.mxu0 0.0
  %282 = vmatpush1.xpose.msra.mxu0 0.0
  %283 = vmatprep.subr.mxu0 0.0
  %284 = vmatpush1.xpose.msra.mxu0 0.0
  %285 = vmatprep.subr.mxu0 0.0
  %286 = vmatpush1.xpose.msra.mxu0 0.0
  %287 = vmatprep.subr.mxu0 0.0
  %288 = vmatpush1.xpose.msra.mxu0 0.0
  %289 = vmatprep.subr.mxu0 0.0
  %290 = vmatpush1.xpose.msra.mxu0 0.0
  %291 = vmatprep.subr.mxu0 0.0
  %292 = vmatpush1.xpose.msra.mxu0 0.0
  %293 = vmatprep.subr.mxu0 0.0
  %294 = vmatpush1.xpose.msra.mxu0 0.0
  %295 = vmatprep.subr.mxu0 0.0
  %296 = vmatpush1.xpose.msra.mxu0 0.0
  %297 = vmatprep.mubr.f32.mxu0 0.0
  %298 = vmatmul.mubr.f32.gmra.mrb[0].mxu0 %v225
  %v299 = vpop.f32.mrb[0].mxu0
  %v300 = vadd.f32 %v22, %v299
  %v301 = vpop.f32.mrb[0].mxu0
  %302 = vmatprep.mubr.f32.mxu0 0.0
  %303 = vmatmul.mubr.f32.gmra.mrb[0].mxu0 %v227
  %v304 = vpop.f32.mrb[0].mxu0
  %v305 = vadd.f32 %v23, %v304
  %v306 = vpop.f32.mrb[0].mxu0
  %307 = vdwg.mxu0
  %v308 = vsel %vm137, %v213, -inf
  %309 = vmax.xlane.f32.xlu0 %v308
  %v310 = vpop.xlane.xlu0 %309
  %v311 = vsel %vm137, %v218, -inf
  %312 = vmax.xlane.f32.xlu0 %v311
  %v313 = vpop.xlane.xlu0 %312
  %v314 = vsel %vm137, %v300, -inf
  %315 = vmax.xlane.f32.xlu0 %v314
  %v316 = vpop.xlane.xlu0 %315
  %v317 = vsel %vm137, %v305, -inf
  %318 = vmax.xlane.f32.xlu0 %v317
  %v319 = vpop.xlane.xlu0 %318
  %v320 = vsub.f32 %v213, %v310
  %v321 = vsub.f32 %v218, %v313
  %v322 = vsub.f32 %v300, %v316
  %v323 = vsub.f32 %v305, %v319
  %v324 = vmul.f32 %v320, 1.442695
  %v325 = vpow.pop %v324
  %v326 = vmul.f32 %v321, 1.442695
  %v327 = vpow.pop %v326
  %v328 = vmul.f32 %v322, 1.442695
  %v329 = vpow.pop %v328
  %v330 = vmul.f32 %v323, 1.442695
  %v331 = vpow.pop %v330
  %v332 = vsel %vm137, %v325, 0.0
  %333 = vadd.xlane.f32.xlu0 %v332
  %v334 = vpop.xlane.xlu0 %333
  %v335 = vsel %vm137, %v327, 0.0
  %336 = vadd.xlane.f32.xlu0 %v335
  %v337 = vpop.xlane.xlu0 %336
  %v338 = vsel %vm137, %v329, 0.0
  %339 = vadd.xlane.f32.xlu0 %v338
  %v340 = vpop.xlane.xlu0 %339
  %v341 = vsel %vm137, %v331, 0.0
  %342 = vadd.xlane.f32.xlu0 %v341
  %v343 = vpop.xlane.xlu0 %342
  %v344 = vrcp.pop %v334
  %v345 = vrcp.pop %v337
  %v346 = vrcp.pop %v340
  %v347 = vrcp.pop %v343
  %v348 = vmul.f32 %v325, %v344
  %v349 = vmul.f32 %v327, %v345
  %v350 = vmul.f32 %v329, %v346
  %v351 = vmul.f32 %v331, %v347
  %352 = vrot.lane.b32.xlu0 %v119, 64
  %v353 = vpop.permute.xlu0 %352
  %354 = vrot.lane.b32.xlu0 %v124, 64
  %v355 = vpop.permute.xlu0 %354
  %v359 = vsel %vm137, %v348, 0
  %v362 = vsel %vm137, %v349, 0
  %364 = vmatprep.subr.mxu0 0.0
  %365 = vmatpush1.msra.mxu0 %v353
  %366 = vmatprep.subr.mxu0 0.0
  %367 = vmatpush1.msra.mxu0 %v355
  %368 = vmatprep.subr.mxu0 0.0
  %369 = vmatpush1.msra.mxu0 0.0
  %370 = vmatprep.subr.mxu0 0.0
  %371 = vmatpush1.msra.mxu0 0.0
  %372 = vmatprep.subr.mxu0 0.0
  %373 = vmatpush1.msra.mxu0 0.0
  %374 = vmatprep.subr.mxu0 0.0
  %375 = vmatpush1.msra.mxu0 0.0
  %376 = vmatprep.subr.mxu0 0.0
  %377 = vmatpush1.msra.mxu0 0.0
  %378 = vmatprep.subr.mxu0 0.0
  %379 = vmatpush1.msra.mxu0 0.0
  %380 = vmatprep.subr.mxu0 0.0
  %381 = vmatpush1.msra.mxu0 0.0
  %382 = vmatprep.subr.mxu0 0.0
  %383 = vmatpush1.msra.mxu0 0.0
  %384 = vmatprep.subr.mxu0 0.0
  %385 = vmatpush1.msra.mxu0 0.0
  %386 = vmatprep.subr.mxu0 0.0
  %387 = vmatpush1.msra.mxu0 0.0
  %388 = vmatprep.subr.mxu0 0.0
  %389 = vmatpush1.msra.mxu0 0.0
  %390 = vmatprep.subr.mxu0 0.0
  %391 = vmatpush1.msra.mxu0 0.0
  %392 = vmatprep.subr.mxu0 0.0
  %393 = vmatpush1.msra.mxu0 0.0
  %394 = vmatprep.subr.mxu0 0.0
  %395 = vmatpush1.msra.mxu0 0.0
  %396 = vmatprep.subr.mxu0 0.0
  %397 = vmatpush1.msra.mxu0 0.0
  %398 = vmatprep.subr.mxu0 0.0
  %399 = vmatpush1.msra.mxu0 0.0
  %400 = vmatprep.subr.mxu0 0.0
  %401 = vmatpush1.msra.mxu0 0.0
  %402 = vmatprep.subr.mxu0 0.0
  %403 = vmatpush1.msra.mxu0 0.0
  %404 = vmatprep.subr.mxu0 0.0
  %405 = vmatpush1.msra.mxu0 0.0
  %406 = vmatprep.subr.mxu0 0.0
  %407 = vmatpush1.msra.mxu0 0.0
  %408 = vmatprep.subr.mxu0 0.0
  %409 = vmatpush1.msra.mxu0 0.0
  %410 = vmatprep.subr.mxu0 0.0
  %411 = vmatpush1.msra.mxu0 0.0
  %412 = vmatprep.subr.mxu0 0.0
  %413 = vmatpush1.msra.mxu0 0.0
  %414 = vmatprep.subr.mxu0 0.0
  %415 = vmatpush1.msra.mxu0 0.0
  %416 = vmatprep.subr.mxu0 0.0
  %417 = vmatpush1.msra.mxu0 0.0
  %418 = vmatprep.subr.mxu0 0.0
  %419 = vmatpush1.msra.mxu0 0.0
  %420 = vmatprep.subr.mxu0 0.0
  %421 = vmatpush1.msra.mxu0 0.0
  %422 = vmatprep.subr.mxu0 0.0
  %423 = vmatpush1.msra.mxu0 0.0
  %424 = vmatprep.subr.mxu0 0.0
  %425 = vmatpush1.msra.mxu0 0.0
  %426 = vmatprep.subr.mxu0 0.0
  %427 = vmatpush1.msra.mxu0 0.0
  %428 = vmatprep.mubr.f32.mxu0 0.0
  %429 = vmatmul.mubr.f32.gmra.mrb[0].mxu0 %v359
  %v430 = vpop.f32.mrb[0].mxu0
  %v431 = vadd.f32 0.0, %v430
  %v432 = vpop.f32.mrb[0].mxu0
  %433 = vmatprep.mubr.f32.mxu0 0.0
  %434 = vmatmul.mubr.f32.gmra.mrb[0].mxu0 %v362
  %v435 = vpop.f32.mrb[0].mxu0
  %v436 = vadd.f32 0.0, %v435
  %v437 = vpop.f32.mrb[0].mxu0
  %438 = vdwg.mxu0
  %439 = vrot.lane.b32.xlu0 %v130, 64
  %v440 = vpop.permute.xlu0 %439
  %441 = vrot.lane.b32.xlu0 %v132, 64
  %v442 = vpop.permute.xlu0 %441
  %v446 = vsel %vm137, %v350, 0
  %v449 = vsel %vm137, %v351, 0
  %451 = vmatprep.subr.mxu0 0.0
  %452 = vmatpush1.msra.mxu0 %v440
  %453 = vmatprep.subr.mxu0 0.0
  %454 = vmatpush1.msra.mxu0 %v442
  %455 = vmatprep.subr.mxu0 0.0
  %456 = vmatpush1.msra.mxu0 0.0
  %457 = vmatprep.subr.mxu0 0.0
  %458 = vmatpush1.msra.mxu0 0.0
  %459 = vmatprep.subr.mxu0 0.0
  %460 = vmatpush1.msra.mxu0 0.0
  %461 = vmatprep.subr.mxu0 0.0
  %462 = vmatpush1.msra.mxu0 0.0
  %463 = vmatprep.subr.mxu0 0.0
  %464 = vmatpush1.msra.mxu0 0.0
  %465 = vmatprep.subr.mxu0 0.0
  %466 = vmatpush1.msra.mxu0 0.0
  %467 = vmatprep.subr.mxu0 0.0
  %468 = vmatpush1.msra.mxu0 0.0
  %469 = vmatprep.subr.mxu0 0.0
  %470 = vmatpush1.msra.mxu0 0.0
  %471 = vmatprep.subr.mxu0 0.0
  %472 = vmatpush1.msra.mxu0 0.0
  %473 = vmatprep.subr.mxu0 0.0
  %474 = vmatpush1.msra.mxu0 0.0
  %475 = vmatprep.subr.mxu0 0.0
  %476 = vmatpush1.msra.mxu0 0.0
  %477 = vmatprep.subr.mxu0 0.0
  %478 = vmatpush1.msra.mxu0 0.0
  %479 = vmatprep.subr.mxu0 0.0
  %480 = vmatpush1.msra.mxu0 0.0
  %481 = vmatprep.subr.mxu0 0.0
  %482 = vmatpush1.msra.mxu0 0.0
  %483 = vmatprep.subr.mxu0 0.0
  %484 = vmatpush1.msra.mxu0 0.0
  %485 = vmatprep.subr.mxu0 0.0
  %486 = vmatpush1.msra.mxu0 0.0
  %487 = vmatprep.subr.mxu0 0.0
  %488 = vmatpush1.msra.mxu0 0.0
  %489 = vmatprep.subr.mxu0 0.0
  %490 = vmatpush1.msra.mxu0 0.0
  %491 = vmatprep.subr.mxu0 0.0
  %492 = vmatpush1.msra.mxu0 0.0
  %493 = vmatprep.subr.mxu0 0.0
  %494 = vmatpush1.msra.mxu0 0.0
  %495 = vmatprep.subr.mxu0 0.0
  %496 = vmatpush1.msra.mxu0 0.0
  %497 = vmatprep.subr.mxu0 0.0
  %498 = vmatpush1.msra.mxu0 0.0
  %499 = vmatprep.subr.mxu0 0.0
  %500 = vmatpush1.msra.mxu0 0.0
  %501 = vmatprep.subr.mxu0 0.0
  %502 = vmatpush1.msra.mxu0 0.0
  %503 = vmatprep.subr.mxu0 0.0
  %504 = vmatpush1.msra.mxu0 0.0
  %505 = vmatprep.subr.mxu0 0.0
  %506 = vmatpush1.msra.mxu0 0.0
  %507 = vmatprep.subr.mxu0 0.0
  %508 = vmatpush1.msra.mxu0 0.0
  %509 = vmatprep.subr.mxu0 0.0
  %510 = vmatpush1.msra.mxu0 0.0
  %511 = vmatprep.subr.mxu0 0.0
  %512 = vmatpush1.msra.mxu0 0.0
  %513 = vmatprep.subr.mxu0 0.0
  %514 = vmatpush1.msra.mxu0 0.0
  %515 = vmatprep.mubr.f32.mxu0 0.0
  %516 = vmatmul.mubr.f32.gmra.mrb[0].mxu0 %v446
  %v517 = vpop.f32.mrb[0].mxu0
  %v518 = vadd.f32 0.0, %v517
  %v519 = vpop.f32.mrb[0].mxu0
  %520 = vmatprep.mubr.f32.mxu0 0.0
  %521 = vmatmul.mubr.f32.gmra.mrb[0].mxu0 %v449
  %v522 = vpop.f32.mrb[0].mxu0
  %v523 = vadd.f32 0.0, %v522
  %v524 = vpop.f32.mrb[0].mxu0
  %525 = vdwg.mxu0
  %528 = vrot.lane.b32.xlu0 %v518, 16
  %v529 = vpop.permute.xlu0 %528
  %530 = vrot.lane.b32.xlu0 %v523, 16
  %v531 = vpop.permute.xlu0 %530
  %v534 = vsel %vm137, %v431, %v529
  %v535 = vsel %vm137, %v436, %v531
  %v536 = vlaneseq
  %v537 = vshrl.u32 %v536, 7
  %v538 = vsub.s32 1, %v537
  %v539 = vrot.slane %v40, %v538
  %544 = vrot.lane.b32.xlu0 %v24, 32
  %v545 = vpop.permute.xlu0 %544
  %546 = vrot.lane.b32.xlu0 %v26, 32
  %v547 = vpop.permute.xlu0 %546
  %548 = vrot.lane.b32.xlu0 %v28, 32
  %v549 = vpop.permute.xlu0 %548
  %550 = vrot.lane.b32.xlu0 %v30, 32
  %v551 = vpop.permute.xlu0 %550
  %v557 = vsel %vm45, %v534, 0
  %v560 = vsel %vm45, %v535, 0
  %562 = vmatprep.subr.mxu0 0.0
  %563 = vmatpush1.msra.mxu0 %v545
  %564 = vmatprep.subr.mxu0 0.0
  %565 = vmatpush1.msra.mxu0 %v547
  %566 = vmatprep.subr.mxu0 0.0
  %567 = vmatpush1.msra.mxu0 %v549
  %568 = vmatprep.subr.mxu0 0.0
  %569 = vmatpush1.msra.mxu0 %v551
  %570 = vmatprep.subr.mxu0 0.0
  %571 = vmatpush1.msra.mxu0 0.0
  %572 = vmatprep.subr.mxu0 0.0
  %573 = vmatpush1.msra.mxu0 0.0
  %574 = vmatprep.subr.mxu0 0.0
  %575 = vmatpush1.msra.mxu0 0.0
  %576 = vmatprep.subr.mxu0 0.0
  %577 = vmatpush1.msra.mxu0 0.0
  %578 = vmatprep.subr.mxu0 0.0
  %579 = vmatpush1.msra.mxu0 0.0
  %580 = vmatprep.subr.mxu0 0.0
  %581 = vmatpush1.msra.mxu0 0.0
  %582 = vmatprep.subr.mxu0 0.0
  %583 = vmatpush1.msra.mxu0 0.0
  %584 = vmatprep.subr.mxu0 0.0
  %585 = vmatpush1.msra.mxu0 0.0
  %586 = vmatprep.subr.mxu0 0.0
  %587 = vmatpush1.msra.mxu0 0.0
  %588 = vmatprep.subr.mxu0 0.0
  %589 = vmatpush1.msra.mxu0 0.0
  %590 = vmatprep.subr.mxu0 0.0
  %591 = vmatpush1.msra.mxu0 0.0
  %592 = vmatprep.subr.mxu0 0.0
  %593 = vmatpush1.msra.mxu0 0.0
  %594 = vmatprep.subr.mxu0 0.0
  %595 = vmatpush1.msra.mxu0 0.0
  %596 = vmatprep.subr.mxu0 0.0
  %597 = vmatpush1.msra.mxu0 0.0
  %598 = vmatprep.subr.mxu0 0.0
  %599 = vmatpush1.msra.mxu0 0.0
  %600 = vmatprep.subr.mxu0 0.0
  %601 = vmatpush1.msra.mxu0 0.0
  %602 = vmatprep.subr.mxu0 0.0
  %603 = vmatpush1.msra.mxu0 0.0
  %604 = vmatprep.subr.mxu0 0.0
  %605 = vmatpush1.msra.mxu0 0.0
  %606 = vmatprep.subr.mxu0 0.0
  %607 = vmatpush1.msra.mxu0 0.0
  %608 = vmatprep.subr.mxu0 0.0
  %609 = vmatpush1.msra.mxu0 0.0
  %610 = vmatprep.subr.mxu0 0.0
  %611 = vmatpush1.msra.mxu0 0.0
  %612 = vmatprep.subr.mxu0 0.0
  %613 = vmatpush1.msra.mxu0 0.0
  %614 = vmatprep.subr.mxu0 0.0
  %615 = vmatpush1.msra.mxu0 0.0
  %616 = vmatprep.subr.mxu0 0.0
  %617 = vmatpush1.msra.mxu0 0.0
  %618 = vmatprep.subr.mxu0 0.0
  %619 = vmatpush1.msra.mxu0 0.0
  %620 = vmatprep.subr.mxu0 0.0
  %621 = vmatpush1.msra.mxu0 0.0
  %622 = vmatprep.subr.mxu0 0.0
  %623 = vmatpush1.msra.mxu0 0.0
  %624 = vmatprep.subr.mxu0 0.0
  %625 = vmatpush1.msra.mxu0 0.0
  %626 = vmatprep.mubr.f32.mxu0 0.0
  %627 = vmatmul.mubr.f32.gmra.mrb[0].mxu0 %v557
  %v628 = vpop.f32.mrb[0].mxu0
  %v629 = vadd.f32 %v539, %v628
  %v630 = vpop.f32.mrb[0].mxu0
  %631 = vmatprep.mubr.f32.mxu0 0.0
  %632 = vmatmul.mubr.f32.gmra.mrb[0].mxu0 %v560
  %v633 = vpop.f32.mrb[0].mxu0
  %v634 = vadd.f32 %v539, %v633
  %v635 = vpop.f32.mrb[0].mxu0
  %636 = vdwg.mxu0
  %v637 = vadd.f32 %v20, %v629
  %v638 = vadd.f32 %v21, %v634
  %v639 = vsel %vm45, %v637, 0.0
  %640 = vadd.xlane.f32.xlu0 %v639
  %v641 = vpop.xlane.xlu0 %640
  %v642 = vsel %vm45, %v638, 0.0
  %643 = vadd.xlane.f32.xlu0 %v642
  %v644 = vpop.xlane.xlu0 %643
  %v645 = vrcp.pop 32.0
  %v646 = vmul.f32 %v641, %v645
  %v647 = vmul.f32 %v644, %v645
  %v648 = vsub.f32 %v637, %v646
  %v649 = vsub.f32 %v638, %v647
  %v650 = vmul.f32 %v648, %v648
  %v651 = vmul.f32 %v649, %v649
  %v652 = vsel %vm45, %v650, 0.0
  %653 = vadd.xlane.f32.xlu0 %v652
  %v654 = vpop.xlane.xlu0 %653
  %v655 = vsel %vm45, %v651, 0.0
  %656 = vadd.xlane.f32.xlu0 %v655
  %v657 = vpop.xlane.xlu0 %656
  %v658 = vmul.f32 %v654, %v645
  %v659 = vmul.f32 %v657, %v645
  %v660 = vadd.f32 %v658, 1e-12
  %v661 = vadd.f32 %v659, 1e-12
  %v662 = vrsqrt.pop %v660
  %v663 = vrsqrt.pop %v661
  %v664 = vmul.f32 %v648, %v662
  %v665 = vmul.f32 %v649, %v663
  %v666 = vlaneseq
  %v667 = vshrl.u32 %v666, 7
  %v668 = vsub.s32 2, %v667
  %v669 = vrot.slane %v40, %v668
  %v670 = vmul.f32 %v664, %v669
  %v671 = vmul.f32 %v665, %v669
  %v672 = vlaneseq
  %v673 = vshrl.u32 %v672, 7
  %v674 = vsub.s32 3, %v673
  %v675 = vrot.slane %v40, %v674
  %v676 = vadd.f32 %v670, %v675
  %v677 = vadd.f32 %v671, %v675
  %v678 = vlaneseq
  %v679 = vshrl.u32 %v678, 7
  %v680 = vsub.s32 4, %v679
  %v681 = vrot.slane %v40, %v680
  %v683 = vsel %vm45, %v676, 0
  %v686 = vsel %vm45, %v677, 0
  %688 = vmatprep.subr.mxu0 0.0
  %689 = vmatpush1.msra.mxu0 %v25
  %690 = vmatprep.subr.mxu0 0.0
  %691 = vmatpush1.msra.mxu0 %v27
  %692 = vmatprep.subr.mxu0 0.0
  %693 = vmatpush1.msra.mxu0 %v29
  %694 = vmatprep.subr.mxu0 0.0
  %695 = vmatpush1.msra.mxu0 %v31
  %696 = vmatprep.subr.mxu0 0.0
  %697 = vmatpush1.msra.mxu0 0.0
  %698 = vmatprep.subr.mxu0 0.0
  %699 = vmatpush1.msra.mxu0 0.0
  %700 = vmatprep.subr.mxu0 0.0
  %701 = vmatpush1.msra.mxu0 0.0
  %702 = vmatprep.subr.mxu0 0.0
  %703 = vmatpush1.msra.mxu0 0.0
  %704 = vmatprep.subr.mxu0 0.0
  %705 = vmatpush1.msra.mxu0 0.0
  %706 = vmatprep.subr.mxu0 0.0
  %707 = vmatpush1.msra.mxu0 0.0
  %708 = vmatprep.subr.mxu0 0.0
  %709 = vmatpush1.msra.mxu0 0.0
  %710 = vmatprep.subr.mxu0 0.0
  %711 = vmatpush1.msra.mxu0 0.0
  %712 = vmatprep.subr.mxu0 0.0
  %713 = vmatpush1.msra.mxu0 0.0
  %714 = vmatprep.subr.mxu0 0.0
  %715 = vmatpush1.msra.mxu0 0.0
  %716 = vmatprep.subr.mxu0 0.0
  %717 = vmatpush1.msra.mxu0 0.0
  %718 = vmatprep.subr.mxu0 0.0
  %719 = vmatpush1.msra.mxu0 0.0
  %720 = vmatprep.subr.mxu0 0.0
  %721 = vmatpush1.msra.mxu0 0.0
  %722 = vmatprep.subr.mxu0 0.0
  %723 = vmatpush1.msra.mxu0 0.0
  %724 = vmatprep.subr.mxu0 0.0
  %725 = vmatpush1.msra.mxu0 0.0
  %726 = vmatprep.subr.mxu0 0.0
  %727 = vmatpush1.msra.mxu0 0.0
  %728 = vmatprep.subr.mxu0 0.0
  %729 = vmatpush1.msra.mxu0 0.0
  %730 = vmatprep.subr.mxu0 0.0
  %731 = vmatpush1.msra.mxu0 0.0
  %732 = vmatprep.subr.mxu0 0.0
  %733 = vmatpush1.msra.mxu0 0.0
  %734 = vmatprep.subr.mxu0 0.0
  %735 = vmatpush1.msra.mxu0 0.0
  %736 = vmatprep.subr.mxu0 0.0
  %737 = vmatpush1.msra.mxu0 0.0
  %738 = vmatprep.subr.mxu0 0.0
  %739 = vmatpush1.msra.mxu0 0.0
  %740 = vmatprep.subr.mxu0 0.0
  %741 = vmatpush1.msra.mxu0 0.0
  %742 = vmatprep.subr.mxu0 0.0
  %743 = vmatpush1.msra.mxu0 0.0
  %744 = vmatprep.subr.mxu0 0.0
  %745 = vmatpush1.msra.mxu0 0.0
  %746 = vmatprep.subr.mxu0 0.0
  %747 = vmatpush1.msra.mxu0 0.0
  %748 = vmatprep.subr.mxu0 0.0
  %749 = vmatpush1.msra.mxu0 0.0
  %750 = vmatprep.subr.mxu0 0.0
  %751 = vmatpush1.msra.mxu0 0.0
  %752 = vmatprep.mubr.f32.mxu0 0.0
  %753 = vmatmul.mubr.f32.gmra.mrb[0].mxu0 %v683
  %v754 = vpop.f32.mrb[0].mxu0
  %v755 = vadd.f32 %v681, %v754
  %v756 = vpop.f32.mrb[0].mxu0
  %757 = vmatprep.mubr.f32.mxu0 0.0
  %758 = vmatmul.mubr.f32.gmra.mrb[0].mxu0 %v686
  %v759 = vpop.f32.mrb[0].mxu0
  %v760 = vadd.f32 %v681, %v759
  %v761 = vpop.f32.mrb[0].mxu0
  %762 = vdwg.mxu0
  %v763 = vmul.f32 %v755, %v755
  %v764 = vmul.f32 %v760, %v760
  %v765 = vmul.f32 %v755, %v763
  %v766 = vmul.f32 %v760, %v764
  %v767 = vmul.f32 %v765, 0.044715
  %v768 = vmul.f32 %v766, 0.044715
  %v769 = vadd.f32 %v755, %v767
  %v770 = vadd.f32 %v760, %v768
  %v771 = vmul.f32 %v769, 0.7978846
  %v772 = vmul.f32 %v770, 0.7978846
  %v773 = vtanh.pop %v771
  %v774 = vtanh.pop %v772
  %v775 = vadd.f32 %v773, 1.0
  %v776 = vadd.f32 %v774, 1.0
  %v777 = vmul.f32 %v775, 0.5
  %v778 = vmul.f32 %v776, 0.5
  %v779 = vmul.f32 %v755, %v777
  %v780 = vmul.f32 %v760, %v778
  %v781 = vlaneseq
  %v782 = vshrl.u32 %v781, 7
  %v783 = vsub.s32 5, %v782
  %v784 = vrot.slane %v40, %v783
  %vm785 = vcmask 523264
  %v787 = vsel %vm785, %v779, 0
  %v790 = vsel %vm785, %v780, 0
  %792 = vmatprep.subr.mxu0 0.0
  %793 = vmatpush1.msra.mxu0 %v32
  %794 = vmatprep.subr.mxu0 0.0
  %795 = vmatpush1.msra.mxu0 %v33
  %796 = vmatprep.subr.mxu0 0.0
  %797 = vmatpush1.msra.mxu0 %v34
  %798 = vmatprep.subr.mxu0 0.0
  %799 = vmatpush1.msra.mxu0 %v35
  %800 = vmatprep.subr.mxu0 0.0
  %801 = vmatpush1.msra.mxu0 %v36
  %802 = vmatprep.subr.mxu0 0.0
  %803 = vmatpush1.msra.mxu0 %v37
  %804 = vmatprep.subr.mxu0 0.0
  %805 = vmatpush1.msra.mxu0 %v38
  %806 = vmatprep.subr.mxu0 0.0
  %807 = vmatpush1.msra.mxu0 %v39
  %808 = vmatprep.subr.mxu0 0.0
  %809 = vmatpush1.msra.mxu0 0.0
  %810 = vmatprep.subr.mxu0 0.0
  %811 = vmatpush1.msra.mxu0 0.0
  %812 = vmatprep.subr.mxu0 0.0
  %813 = vmatpush1.msra.mxu0 0.0
  %814 = vmatprep.subr.mxu0 0.0
  %815 = vmatpush1.msra.mxu0 0.0
  %816 = vmatprep.subr.mxu0 0.0
  %817 = vmatpush1.msra.mxu0 0.0
  %818 = vmatprep.subr.mxu0 0.0
  %819 = vmatpush1.msra.mxu0 0.0
  %820 = vmatprep.subr.mxu0 0.0
  %821 = vmatpush1.msra.mxu0 0.0
  %822 = vmatprep.subr.mxu0 0.0
  %823 = vmatpush1.msra.mxu0 0.0
  %824 = vmatprep.subr.mxu0 0.0
  %825 = vmatpush1.msra.mxu0 0.0
  %826 = vmatprep.subr.mxu0 0.0
  %827 = vmatpush1.msra.mxu0 0.0
  %828 = vmatprep.subr.mxu0 0.0
  %829 = vmatpush1.msra.mxu0 0.0
  %830 = vmatprep.subr.mxu0 0.0
  %831 = vmatpush1.msra.mxu0 0.0
  %832 = vmatprep.subr.mxu0 0.0
  %833 = vmatpush1.msra.mxu0 0.0
  %834 = vmatprep.subr.mxu0 0.0
  %835 = vmatpush1.msra.mxu0 0.0
  %836 = vmatprep.subr.mxu0 0.0
  %837 = vmatpush1.msra.mxu0 0.0
  %838 = vmatprep.subr.mxu0 0.0
  %839 = vmatpush1.msra.mxu0 0.0
  %840 = vmatprep.subr.mxu0 0.0
  %841 = vmatpush1.msra.mxu0 0.0
  %842 = vmatprep.subr.mxu0 0.0
  %843 = vmatpush1.msra.mxu0 0.0
  %844 = vmatprep.subr.mxu0 0.0
  %845 = vmatpush1.msra.mxu0 0.0
  %846 = vmatprep.subr.mxu0 0.0
  %847 = vmatpush1.msra.mxu0 0.0
  %848 = vmatprep.subr.mxu0 0.0
  %849 = vmatpush1.msra.mxu0 0.0
  %850 = vmatprep.subr.mxu0 0.0
  %851 = vmatpush1.msra.mxu0 0.0
  %852 = vmatprep.subr.mxu0 0.0
  %853 = vmatpush1.msra.mxu0 0.0
  %854 = vmatprep.subr.mxu0 0.0
  %855 = vmatpush1.msra.mxu0 0.0
  %856 = vmatprep.mubr.f32.mxu0 0.0
  %857 = vmatmul.mubr.f32.gmra.mrb[0].mxu0 %v787
  %v858 = vpop.f32.mrb[0].mxu0
  %v859 = vadd.f32 %v784, %v858
  %v860 = vpop.f32.mrb[0].mxu0
  %861 = vmatprep.mubr.f32.mxu0 0.0
  %862 = vmatmul.mubr.f32.gmra.mrb[0].mxu0 %v790
  %v863 = vpop.f32.mrb[0].mxu0
  %v864 = vadd.f32 %v784, %v863
  %v865 = vpop.f32.mrb[0].mxu0
  %866 = vdwg.mxu0
  %v867 = vadd.f32 %v676, %v859
  %v868 = vadd.f32 %v677, %v864
  %v869 = vsel %vm45, %v867, 0.0
  %870 = vadd.xlane.f32.xlu0 %v869
  %v871 = vpop.xlane.xlu0 %870
  %v872 = vsel %vm45, %v868, 0.0
  %873 = vadd.xlane.f32.xlu0 %v872
  %v874 = vpop.xlane.xlu0 %873
  %v875 = vmul.f32 %v871, %v645
  %v876 = vmul.f32 %v874, %v645
  %v877 = vsub.f32 %v867, %v875
  %v878 = vsub.f32 %v868, %v876
  %v879 = vmul.f32 %v877, %v877
  %v880 = vmul.f32 %v878, %v878
  %v881 = vsel %vm45, %v879, 0.0
  %882 = vadd.xlane.f32.xlu0 %v881
  %v883 = vpop.xlane.xlu0 %882
  %v884 = vsel %vm45, %v880, 0.0
  %885 = vadd.xlane.f32.xlu0 %v884
  %v886 = vpop.xlane.xlu0 %885
  %v887 = vmul.f32 %v883, %v645
  %v888 = vmul.f32 %v886, %v645
  %v889 = vadd.f32 %v887, 1e-12
  %v890 = vadd.f32 %v888, 1e-12
  %v891 = vrsqrt.pop %v889
  %v892 = vrsqrt.pop %v890
  %v893 = vmul.f32 %v877, %v891
  %v894 = vmul.f32 %v878, %v892
  %v895 = vlaneseq
  %v896 = vshrl.u32 %v895, 7
  %v897 = vsub.s32 6, %v896
  %v898 = vrot.slane %v40, %v897
  %v899 = vmul.f32 %v893, %v898
  %v900 = vmul.f32 %v894, %v898
  %v901 = vlaneseq
  %v902 = vshrl.u32 %v901, 7
  %v903 = vsub.s32 7, %v902
  %v904 = vrot.slane %v40, %v903
  %v905 = vadd.f32 %v899, %v904
  %v906 = vadd.f32 %v900, %v904
  %s907 = scalar_lea.vmem %s2, 64
  %v908 = vld [vmem:[%s907] sm:$0xff]
  %v909 = vld [vmem:[%s907 + $0x8] sm:$0xff]
  %v910 = vld [vmem:[%s907 + $0x10] sm:$0xff]
  %v911 = vld [vmem:[%s907 + $0x18] sm:$0xff]
  %v912 = vld [vmem:[%s907 + $0x20] sm:$0xff]
  %v913 = vld [vmem:[%s907 + $0x28] sm:$0xff]
  %v914 = vld [vmem:[%s907 + $0x30] sm:$0xff]
  %v915 = vld [vmem:[%s907 + $0x38] sm:$0xff]
  %s916 = scalar_lea.vmem %s3, 64
  %v917 = vld [vmem:[%s916] sm:$0xff]
  %v918 = vld [vmem:[%s916 + $0x8] sm:$0xff]
  %v919 = vld [vmem:[%s916 + $0x10] sm:$0xff]
  %v920 = vld [vmem:[%s916 + $0x18] sm:$0xff]
  %v921 = vld [vmem:[%s916 + $0x20] sm:$0xff]
  %v922 = vld [vmem:[%s916 + $0x28] sm:$0xff]
  %v923 = vld [vmem:[%s916 + $0x30] sm:$0xff]
  %v924 = vld [vmem:[%s916 + $0x38] sm:$0xff]
  %s925 = scalar_lea.vmem %s4, 8
  %v926 = vld [vmem:[%s925] sm:$0xff]
  %v927 = vlaneseq
  %v928 = vshrl.u32 %v927, 7
  %v929 = vsub.s32 0, %v928
  %v930 = vrot.slane %v926, %v929
  %v932 = vsel %vm45, %v905, 0
  %v935 = vsel %vm45, %v906, 0
  %937 = vmatprep.subr.mxu0 0.0
  %938 = vmatpush1.msra.mxu0 %v908
  %939 = vmatprep.subr.mxu0 0.0
  %940 = vmatpush1.msra.mxu0 %v910
  %941 = vmatprep.subr.mxu0 0.0
  %942 = vmatpush1.msra.mxu0 %v912
  %943 = vmatprep.subr.mxu0 0.0
  %944 = vmatpush1.msra.mxu0 %v914
  %945 = vmatprep.subr.mxu0 0.0
  %946 = vmatpush1.msra.mxu0 0.0
  %947 = vmatprep.subr.mxu0 0.0
  %948 = vmatpush1.msra.mxu0 0.0
  %949 = vmatprep.subr.mxu0 0.0
  %950 = vmatpush1.msra.mxu0 0.0
  %951 = vmatprep.subr.mxu0 0.0
  %952 = vmatpush1.msra.mxu0 0.0
  %953 = vmatprep.subr.mxu0 0.0
  %954 = vmatpush1.msra.mxu0 0.0
  %955 = vmatprep.subr.mxu0 0.0
  %956 = vmatpush1.msra.mxu0 0.0
  %957 = vmatprep.subr.mxu0 0.0
  %958 = vmatpush1.msra.mxu0 0.0
  %959 = vmatprep.subr.mxu0 0.0
  %960 = vmatpush1.msra.mxu0 0.0
  %961 = vmatprep.subr.mxu0 0.0
  %962 = vmatpush1.msra.mxu0 0.0
  %963 = vmatprep.subr.mxu0 0.0
  %964 = vmatpush1.msra.mxu0 0.0
  %965 = vmatprep.subr.mxu0 0.0
  %966 = vmatpush1.msra.mxu0 0.0
  %967 = vmatprep.subr.mxu0 0.0
  %968 = vmatpush1.msra.mxu0 0.0
  %969 = vmatprep.subr.mxu0 0.0
  %970 = vmatpush1.msra.mxu0 0.0
  %971 = vmatprep.subr.mxu0 0.0
  %972 = vmatpush1.msra.mxu0 0.0
  %973 = vmatprep.subr.mxu0 0.0
  %974 = vmatpush1.msra.mxu0 0.0
  %975 = vmatprep.subr.mxu0 0.0
  %976 = vmatpush1.msra.mxu0 0.0
  %977 = vmatprep.subr.mxu0 0.0
  %978 = vmatpush1.msra.mxu0 0.0
  %979 = vmatprep.subr.mxu0 0.0
  %980 = vmatpush1.msra.mxu0 0.0
  %981 = vmatprep.subr.mxu0 0.0
  %982 = vmatpush1.msra.mxu0 0.0
  %983 = vmatprep.subr.mxu0 0.0
  %984 = vmatpush1.msra.mxu0 0.0
  %985 = vmatprep.subr.mxu0 0.0
  %986 = vmatpush1.msra.mxu0 0.0
  %987 = vmatprep.subr.mxu0 0.0
  %988 = vmatpush1.msra.mxu0 0.0
  %989 = vmatprep.subr.mxu0 0.0
  %990 = vmatpush1.msra.mxu0 0.0
  %991 = vmatprep.subr.mxu0 0.0
  %992 = vmatpush1.msra.mxu0 0.0
  %993 = vmatprep.subr.mxu0 0.0
  %994 = vmatpush1.msra.mxu0 0.0
  %995 = vmatprep.subr.mxu0 0.0
  %996 = vmatpush1.msra.mxu0 0.0
  %997 = vmatprep.subr.mxu0 0.0
  %998 = vmatpush1.msra.mxu0 0.0
  %999 = vmatprep.subr.mxu0 0.0
  %1000 = vmatpush1.msra.mxu0 0.0
  %1001 = vmatprep.mubr.f32.mxu0 0.0
  %1002 = vmatmul.mubr.f32.gmra.mrb[0].mxu0 %v932
  %v1003 = vpop.f32.mrb[0].mxu0
  %v1004 = vadd.f32 %v930, %v1003
  %v1005 = vpop.f32.mrb[0].mxu0
  %1006 = vmatprep.mubr.f32.mxu0 0.0
  %1007 = vmatmul.mubr.f32.gmra.mrb[0].mxu0 %v935
  %v1008 = vpop.f32.mrb[0].mxu0
  %v1009 = vadd.f32 %v930, %v1008
  %v1010 = vpop.f32.mrb[0].mxu0
  %1011 = vdwg.mxu0
  %1014 = vrot.lane.b32.xlu0 %v1004, 112
  %v1015 = vpop.permute.xlu0 %1014
  %1016 = vrot.lane.b32.xlu0 %v1009, 112
  %v1017 = vpop.permute.xlu0 %1016
  %1018 = vrot.lane.b32.xlu0 %v1004, 96
  %v1019 = vpop.permute.xlu0 %1018
  %1020 = vrot.lane.b32.xlu0 %v1009, 96
  %v1021 = vpop.permute.xlu0 %1020
  %v1022 = vsel %vm137, %v1004, 0
  %v1024 = vsel %vm137, %v1009, 0
  %v1026 = vsel %vm137, %v1019, 0
  %v1028 = vsel %vm137, %v1021, 0
  %1030 = vmatprep.subr.mxu0 0.0
  %1031 = vmatpush1.xpose.msra.mxu0 %v1026
  %1032 = vmatprep.subr.mxu0 0.0
  %1033 = vmatpush1.xpose.msra.mxu0 %v1028
  %1034 = vmatprep.subr.mxu0 0.0
  %1035 = vmatpush1.xpose.msra.mxu0 0.0
  %1036 = vmatprep.subr.mxu0 0.0
  %1037 = vmatpush1.xpose.msra.mxu0 0.0
  %1038 = vmatprep.subr.mxu0 0.0
  %1039 = vmatpush1.xpose.msra.mxu0 0.0
  %1040 = vmatprep.subr.mxu0 0.0
  %1041 = vmatpush1.xpose.msra.mxu0 0.0
  %1042 = vmatprep.subr.mxu0 0.0
  %1043 = vmatpush1.xpose.msra.mxu0 0.0
  %1044 = vmatprep.subr.mxu0 0.0
  %1045 = vmatpush1.xpose.msra.mxu0 0.0
  %1046 = vmatprep.subr.mxu0 0.0
  %1047 = vmatpush1.xpose.msra.mxu0 0.0
  %1048 = vmatprep.subr.mxu0 0.0
  %1049 = vmatpush1.xpose.msra.mxu0 0.0
  %1050 = vmatprep.subr.mxu0 0.0
  %1051 = vmatpush1.xpose.msra.mxu0 0.0
  %1052 = vmatprep.subr.mxu0 0.0
  %1053 = vmatpush1.xpose.msra.mxu0 0.0
  %1054 = vmatprep.subr.mxu0 0.0
  %1055 = vmatpush1.xpose.msra.mxu0 0.0
  %1056 = vmatprep.subr.mxu0 0.0
  %1057 = vmatpush1.xpose.msra.mxu0 0.0
  %1058 = vmatprep.subr.mxu0 0.0
  %1059 = vmatpush1.xpose.msra.mxu0 0.0
  %1060 = vmatprep.subr.mxu0 0.0
  %1061 = vmatpush1.xpose.msra.mxu0 0.0
  %1062 = vmatprep.subr.mxu0 0.0
  %1063 = vmatpush1.xpose.msra.mxu0 0.0
  %1064 = vmatprep.subr.mxu0 0.0
  %1065 = vmatpush1.xpose.msra.mxu0 0.0
  %1066 = vmatprep.subr.mxu0 0.0
  %1067 = vmatpush1.xpose.msra.mxu0 0.0
  %1068 = vmatprep.subr.mxu0 0.0
  %1069 = vmatpush1.xpose.msra.mxu0 0.0
  %1070 = vmatprep.subr.mxu0 0.0
  %1071 = vmatpush1.xpose.msra.mxu0 0.0
  %1072 = vmatprep.subr.mxu0 0.0
  %1073 = vmatpush1.xpose.msra.mxu0 0.0
  %1074 = vmatprep.subr.mxu0 0.0
  %1075 = vmatpush1.xpose.msra.mxu0 0.0
  %1076 = vmatprep.subr.mxu0 0.0
  %1077 = vmatpush1.xpose.msra.mxu0 0.0
  %1078 = vmatprep.subr.mxu0 0.0
  %1079 = vmatpush1.xpose.msra.mxu0 0.0
  %1080 = vmatprep.subr.mxu0 0.0
  %1081 = vmatpush1.xpose.msra.mxu0 0.0
  %1082 = vmatprep.subr.mxu0 0.0
  %1083 = vmatpush1.xpose.msra.mxu0 0.0
  %1084 = vmatprep.subr.mxu0 0.0
  %1085 = vmatpush1.xpose.msra.mxu0 0.0
  %1086 = vmatprep.subr.mxu0 0.0
  %1087 = vmatpush1.xpose.msra.mxu0 0.0
  %1088 = vmatprep.subr.mxu0 0.0
  %1089 = vmatpush1.xpose.msra.mxu0 0.0
  %1090 = vmatprep.subr.mxu0 0.0
  %1091 = vmatpush1.xpose.msra.mxu0 0.0
  %1092 = vmatprep.subr.mxu0 0.0
  %1093 = vmatpush1.xpose.msra.mxu0 0.0
  %1094 = vmatprep.mubr.f32.mxu0 0.0
  %1095 = vmatmul.mubr.f32.gmra.mrb[0].mxu0 %v1022
  %v1096 = vpop.f32.mrb[0].mxu0
  %v1097 = vadd.f32 %v22, %v1096
  %v1098 = vpop.f32.mrb[0].mxu0
  %1099 = vmatprep.mubr.f32.mxu0 0.0
  %1100 = vmatmul.mubr.f32.gmra.mrb[0].mxu0 %v1024
  %v1101 = vpop.f32.mrb[0].mxu0
  %v1102 = vadd.f32 %v23, %v1101
  %v1103 = vpop.f32.mrb[0].mxu0
  %1104 = vdwg.mxu0
  %1105 = vrot.lane.b32.xlu0 %v1015, 96
  %v1106 = vpop.permute.xlu0 %1105
  %1107 = vrot.lane.b32.xlu0 %v1017, 96
  %v1108 = vpop.permute.xlu0 %1107
  %v1109 = vsel %vm137, %v1015, 0
  %v1111 = vsel %vm137, %v1017, 0
  %v1113 = vsel %vm137, %v1106, 0
  %v1115 = vsel %vm137, %v1108, 0
  %1117 = vmatprep.subr.mxu0 0.0
  %1118 = vmatpush1.xpose.msra.mxu0 %v1113
  %1119 = vmatprep.subr.mxu0 0.0
  %1120 = vmatpush1.xpose.msra.mxu0 %v1115
  %1121 = vmatprep.subr.mxu0 0.0
  %1122 = vmatpush1.xpose.msra.mxu0 0.0
  %1123 = vmatprep.subr.mxu0 0.0
  %1124 = vmatpush1.xpose.msra.mxu0 0.0
  %1125 = vmatprep.subr.mxu0 0.0
  %1126 = vmatpush1.xpose.msra.mxu0 0.0
  %1127 = vmatprep.subr.mxu0 0.0
  %1128 = vmatpush1.xpose.msra.mxu0 0.0
  %1129 = vmatprep.subr.mxu0 0.0
  %1130 = vmatpush1.xpose.msra.mxu0 0.0
  %1131 = vmatprep.subr.mxu0 0.0
  %1132 = vmatpush1.xpose.msra.mxu0 0.0
  %1133 = vmatprep.subr.mxu0 0.0
  %1134 = vmatpush1.xpose.msra.mxu0 0.0
  %1135 = vmatprep.subr.mxu0 0.0
  %1136 = vmatpush1.xpose.msra.mxu0 0.0
  %1137 = vmatprep.subr.mxu0 0.0
  %1138 = vmatpush1.xpose.msra.mxu0 0.0
  %1139 = vmatprep.subr.mxu0 0.0
  %1140 = vmatpush1.xpose.msra.mxu0 0.0
  %1141 = vmatprep.subr.mxu0 0.0
  %1142 = vmatpush1.xpose.msra.mxu0 0.0
  %1143 = vmatprep.subr.mxu0 0.0
  %1144 = vmatpush1.xpose.msra.mxu0 0.0
  %1145 = vmatprep.subr.mxu0 0.0
  %1146 = vmatpush1.xpose.msra.mxu0 0.0
  %1147 = vmatprep.subr.mxu0 0.0
  %1148 = vmatpush1.xpose.msra.mxu0 0.0
  %1149 = vmatprep.subr.mxu0 0.0
  %1150 = vmatpush1.xpose.msra.mxu0 0.0
  %1151 = vmatprep.subr.mxu0 0.0
  %1152 = vmatpush1.xpose.msra.mxu0 0.0
  %1153 = vmatprep.subr.mxu0 0.0
  %1154 = vmatpush1.xpose.msra.mxu0 0.0
  %1155 = vmatprep.subr.mxu0 0.0
  %1156 = vmatpush1.xpose.msra.mxu0 0.0
  %1157 = vmatprep.subr.mxu0 0.0
  %1158 = vmatpush1.xpose.msra.mxu0 0.0
  %1159 = vmatprep.subr.mxu0 0.0
  %1160 = vmatpush1.xpose.msra.mxu0 0.0
  %1161 = vmatprep.subr.mxu0 0.0
  %1162 = vmatpush1.xpose.msra.mxu0 0.0
  %1163 = vmatprep.subr.mxu0 0.0
  %1164 = vmatpush1.xpose.msra.mxu0 0.0
  %1165 = vmatprep.subr.mxu0 0.0
  %1166 = vmatpush1.xpose.msra.mxu0 0.0
  %1167 = vmatprep.subr.mxu0 0.0
  %1168 = vmatpush1.xpose.msra.mxu0 0.0
  %1169 = vmatprep.subr.mxu0 0.0
  %1170 = vmatpush1.xpose.msra.mxu0 0.0
  %1171 = vmatprep.subr.mxu0 0.0
  %1172 = vmatpush1.xpose.msra.mxu0 0.0
  %1173 = vmatprep.subr.mxu0 0.0
  %1174 = vmatpush1.xpose.msra.mxu0 0.0
  %1175 = vmatprep.subr.mxu0 0.0
  %1176 = vmatpush1.xpose.msra.mxu0 0.0
  %1177 = vmatprep.subr.mxu0 0.0
  %1178 = vmatpush1.xpose.msra.mxu0 0.0
  %1179 = vmatprep.subr.mxu0 0.0
  %1180 = vmatpush1.xpose.msra.mxu0 0.0
  %1181 = vmatprep.mubr.f32.mxu0 0.0
  %1182 = vmatmul.mubr.f32.gmra.mrb[0].mxu0 %v1109
  %v1183 = vpop.f32.mrb[0].mxu0
  %v1184 = vadd.f32 %v22, %v1183
  %v1185 = vpop.f32.mrb[0].mxu0
  %1186 = vmatprep.mubr.f32.mxu0 0.0
  %1187 = vmatmul.mubr.f32.gmra.mrb[0].mxu0 %v1111
  %v1188 = vpop.f32.mrb[0].mxu0
  %v1189 = vadd.f32 %v23, %v1188
  %v1190 = vpop.f32.mrb[0].mxu0
  %1191 = vdwg.mxu0
  %v1192 = vsel %vm137, %v1097, -inf
  %1193 = vmax.xlane.f32.xlu0 %v1192
  %v1194 = vpop.xlane.xlu0 %1193
  %v1195 = vsel %vm137, %v1102, -inf
  %1196 = vmax.xlane.f32.xlu0 %v1195
  %v1197 = vpop.xlane.xlu0 %1196
  %v1198 = vsel %vm137, %v1184, -inf
  %1199 = vmax.xlane.f32.xlu0 %v1198
  %v1200 = vpop.xlane.xlu0 %1199
  %v1201 = vsel %vm137, %v1189, -inf
  %1202 = vmax.xlane.f32.xlu0 %v1201
  %v1203 = vpop.xlane.xlu0 %1202
  %v1204 = vsub.f32 %v1097, %v1194
  %v1205 = vsub.f32 %v1102, %v1197
  %v1206 = vsub.f32 %v1184, %v1200
  %v1207 = vsub.f32 %v1189, %v1203
  %v1208 = vmul.f32 %v1204, 1.442695
  %v1209 = vpow.pop %v1208
  %v1210 = vmul.f32 %v1205, 1.442695
  %v1211 = vpow.pop %v1210
  %v1212 = vmul.f32 %v1206, 1.442695
  %v1213 = vpow.pop %v1212
  %v1214 = vmul.f32 %v1207, 1.442695
  %v1215 = vpow.pop %v1214
  %v1216 = vsel %vm137, %v1209, 0.0
  %1217 = vadd.xlane.f32.xlu0 %v1216
  %v1218 = vpop.xlane.xlu0 %1217
  %v1219 = vsel %vm137, %v1211, 0.0
  %1220 = vadd.xlane.f32.xlu0 %v1219
  %v1221 = vpop.xlane.xlu0 %1220
  %v1222 = vsel %vm137, %v1213, 0.0
  %1223 = vadd.xlane.f32.xlu0 %v1222
  %v1224 = vpop.xlane.xlu0 %1223
  %v1225 = vsel %vm137, %v1215, 0.0
  %1226 = vadd.xlane.f32.xlu0 %v1225
  %v1227 = vpop.xlane.xlu0 %1226
  %v1228 = vrcp.pop %v1218
  %v1229 = vrcp.pop %v1221
  %v1230 = vrcp.pop %v1224
  %v1231 = vrcp.pop %v1227
  %v1232 = vmul.f32 %v1209, %v1228
  %v1233 = vmul.f32 %v1211, %v1229
  %v1234 = vmul.f32 %v1213, %v1230
  %v1235 = vmul.f32 %v1215, %v1231
  %1236 = vrot.lane.b32.xlu0 %v1004, 64
  %v1237 = vpop.permute.xlu0 %1236
  %1238 = vrot.lane.b32.xlu0 %v1009, 64
  %v1239 = vpop.permute.xlu0 %1238
  %v1243 = vsel %vm137, %v1232, 0
  %v1246 = vsel %vm137, %v1233, 0
  %1248 = vmatprep.subr.mxu0 0.0
  %1249 = vmatpush1.msra.mxu0 %v1237
  %1250 = vmatprep.subr.mxu0 0.0
  %1251 = vmatpush1.msra.mxu0 %v1239
  %1252 = vmatprep.subr.mxu0 0.0
  %1253 = vmatpush1.msra.mxu0 0.0
  %1254 = vmatprep.subr.mxu0 0.0
  %1255 = vmatpush1.msra.mxu0 0.0
  %1256 = vmatprep.subr.mxu0 0.0
  %1257 = vmatpush1.msra.mxu0 0.0
  %1258 = vmatprep.subr.mxu0 0.0
  %1259 = vmatpush1.msra.mxu0 0.0
  %1260 = vmatprep.subr.mxu0 0.0
  %1261 = vmatpush1.msra.mxu0 0.0
  %1262 = vmatprep.subr.mxu0 0.0
  %1263 = vmatpush1.msra.mxu0 0.0
  %1264 = vmatprep.subr.mxu0 0.0
  %1265 = vmatpush1.msra.mxu0 0.0
  %1266 = vmatprep.subr.mxu0 0.0
  %1267 = vmatpush1.msra.mxu0 0.0
  %1268 = vmatprep.subr.mxu0 0.0
  %1269 = vmatpush1.msra.mxu0 0.0
  %1270 = vmatprep.subr.mxu0 0.0
  %1271 = vmatpush1.msra.mxu0 0.0
  %1272 = vmatprep.subr.mxu0 0.0
  %1273 = vmatpush1.msra.mxu0 0.0
  %1274 = vmatprep.subr.mxu0 0.0
  %1275 = vmatpush1.msra.mxu0 0.0
  %1276 = vmatprep.subr.mxu0 0.0
  %1277 = vmatpush1.msra.mxu0 0.0
  %1278 = vmatprep.subr.mxu0 0.0
  %1279 = vmatpush1.msra.mxu0 0.0
  %1280 = vmatprep.subr.mxu0 0.0
  %1281 = vmatpush1.msra.mxu0 0.0
  %1282 = vmatprep.subr.mxu0 0.0
  %1283 = vmatpush1.msra.mxu0 0.0
  %1284 = vmatprep.subr.mxu0 0.0
  %1285 = vmatpush1.msra.mxu0 0.0
  %1286 = vmatprep.subr.mxu0 0.0
  %1287 = vmatpush1.msra.mxu0 0.0
  %1288 = vmatprep.subr.mxu0 0.0
  %1289 = vmatpush1.msra.mxu0 0.0
  %1290 = vmatprep.subr.mxu0 0.0
  %1291 = vmatpush1.msra.mxu0 0.0
  %1292 = vmatprep.subr.mxu0 0.0
  %1293 = vmatpush1.msra.mxu0 0.0
  %1294 = vmatprep.subr.mxu0 0.0
  %1295 = vmatpush1.msra.mxu0 0.0
  %1296 = vmatprep.subr.mxu0 0.0
  %1297 = vmatpush1.msra.mxu0 0.0
  %1298 = vmatprep.subr.mxu0 0.0
  %1299 = vmatpush1.msra.mxu0 0.0
  %1300 = vmatprep.subr.mxu0 0.0
  %1301 = vmatpush1.msra.mxu0 0.0
  %1302 = vmatprep.subr.mxu0 0.0
  %1303 = vmatpush1.msra.mxu0 0.0
  %1304 = vmatprep.subr.mxu0 0.0
  %1305 = vmatpush1.msra.mxu0 0.0
  %1306 = vmatprep.subr.mxu0 0.0
  %1307 = vmatpush1.msra.mxu0 0.0
  %1308 = vmatprep.subr.mxu0 0.0
  %1309 = vmatpush1.msra.mxu0 0.0
  %1310 = vmatprep.subr.mxu0 0.0
  %1311 = vmatpush1.msra.mxu0 0.0
  %1312 = vmatprep.mubr.f32.mxu0 0.0
  %1313 = vmatmul.mubr.f32.gmra.mrb[0].mxu0 %v1243
  %v1314 = vpop.f32.mrb[0].mxu0
  %v1315 = vadd.f32 0.0, %v1314
  %v1316 = vpop.f32.mrb[0].mxu0
  %1317 = vmatprep.mubr.f32.mxu0 0.0
  %1318 = vmatmul.mubr.f32.gmra.mrb[0].mxu0 %v1246
  %v1319 = vpop.f32.mrb[0].mxu0
  %v1320 = vadd.f32 0.0, %v1319
  %v1321 = vpop.f32.mrb[0].mxu0
  %1322 = vdwg.mxu0
  %1323 = vrot.lane.b32.xlu0 %v1015, 64
  %v1324 = vpop.permute.xlu0 %1323
  %1325 = vrot.lane.b32.xlu0 %v1017, 64
  %v1326 = vpop.permute.xlu0 %1325
  %v1330 = vsel %vm137, %v1234, 0
  %v1333 = vsel %vm137, %v1235, 0
  %1335 = vmatprep.subr.mxu0 0.0
  %1336 = vmatpush1.msra.mxu0 %v1324
  %1337 = vmatprep.subr.mxu0 0.0
  %1338 = vmatpush1.msra.mxu0 %v1326
  %1339 = vmatprep.subr.mxu0 0.0
  %1340 = vmatpush1.msra.mxu0 0.0
  %1341 = vmatprep.subr.mxu0 0.0
  %1342 = vmatpush1.msra.mxu0 0.0
  %1343 = vmatprep.subr.mxu0 0.0
  %1344 = vmatpush1.msra.mxu0 0.0
  %1345 = vmatprep.subr.mxu0 0.0
  %1346 = vmatpush1.msra.mxu0 0.0
  %1347 = vmatprep.subr.mxu0 0.0
  %1348 = vmatpush1.msra.mxu0 0.0
  %1349 = vmatprep.subr.mxu0 0.0
  %1350 = vmatpush1.msra.mxu0 0.0
  %1351 = vmatprep.subr.mxu0 0.0
  %1352 = vmatpush1.msra.mxu0 0.0
  %1353 = vmatprep.subr.mxu0 0.0
  %1354 = vmatpush1.msra.mxu0 0.0
  %1355 = vmatprep.subr.mxu0 0.0
  %1356 = vmatpush1.msra.mxu0 0.0
  %1357 = vmatprep.subr.mxu0 0.0
  %1358 = vmatpush1.msra.mxu0 0.0
  %1359 = vmatprep.subr.mxu0 0.0
  %1360 = vmatpush1.msra.mxu0 0.0
  %1361 = vmatprep.subr.mxu0 0.0
  %1362 = vmatpush1.msra.mxu0 0.0
  %1363 = vmatprep.subr.mxu0 0.0
  %1364 = vmatpush1.msra.mxu0 0.0
  %1365 = vmatprep.subr.mxu0 0.0
  %1366 = vmatpush1.msra.mxu0 0.0
  %1367 = vmatprep.subr.mxu0 0.0
  %1368 = vmatpush1.msra.mxu0 0.0
  %1369 = vmatprep.subr.mxu0 0.0
  %1370 = vmatpush1.msra.mxu0 0.0
  %1371 = vmatprep.subr.mxu0 0.0
  %1372 = vmatpush1.msra.mxu0 0.0
  %1373 = vmatprep.subr.mxu0 0.0
  %1374 = vmatpush1.msra.mxu0 0.0
  %1375 = vmatprep.subr.mxu0 0.0
  %1376 = vmatpush1.msra.mxu0 0.0
  %1377 = vmatprep.subr.mxu0 0.0
  %1378 = vmatpush1.msra.mxu0 0.0
  %1379 = vmatprep.subr.mxu0 0.0
  %1380 = vmatpush1.msra.mxu0 0.0
  %1381 = vmatprep.subr.mxu0 0.0
  %1382 = vmatpush1.msra.mxu0 0.0
  %1383 = vmatprep.subr.mxu0 0.0
  %1384 = vmatpush1.msra.mxu0 0.0
  %1385 = vmatprep.subr.mxu0 0.0
  %1386 = vmatpush1.msra.mxu0 0.0
  %1387 = vmatprep.subr.mxu0 0.0
  %1388 = vmatpush1.msra.mxu0 0.0
  %1389 = vmatprep.subr.mxu0 0.0
  %1390 = vmatpush1.msra.mxu0 0.0
  %1391 = vmatprep.subr.mxu0 0.0
  %1392 = vmatpush1.msra.mxu0 0.0
  %1393 = vmatprep.subr.mxu0 0.0
  %1394 = vmatpush1.msra.mxu0 0.0
  %1395 = vmatprep.subr.mxu0 0.0
  %1396 = vmatpush1.msra.mxu0 0.0
  %1397 = vmatprep.subr.mxu0 0.0
  %1398 = vmatpush1.msra.mxu0 0.0
  %1399 = vmatprep.mubr.f32.mxu0 0.0
  %1400 = vmatmul.mubr.f32.gmra.mrb[0].mxu0 %v1330
  %v1401 = vpop.f32.mrb[0].mxu0
  %v1402 = vadd.f32 0.0, %v1401
  %v1403 = vpop.f32.mrb[0].mxu0
  %1404 = vmatprep.mubr.f32.mxu0 0.0
  %1405 = vmatmul.mubr.f32.gmra.mrb[0].mxu0 %v1333
  %v1406 = vpop.f32.mrb[0].mxu0
  %v1407 = vadd.f32 0.0, %v1406
  %v1408 = vpop.f32.mrb[0].mxu0
  %1409 = vdwg.mxu0
  %1412 = vrot.lane.b32.xlu0 %v1402, 16
  %v1413 = vpop.permute.xlu0 %1412
  %1414 = vrot.lane.b32.xlu0 %v1407, 16
  %v1415 = vpop.permute.xlu0 %1414
  %v1418 = vsel %vm137, %v1315, %v1413
  %v1419 = vsel %vm137, %v1320, %v1415
  %v1420 = vlaneseq
  %v1421 = vshrl.u32 %v1420, 7
  %v1422 = vsub.s32 1, %v1421
  %v1423 = vrot.slane %v926, %v1422
  %1428 = vrot.lane.b32.xlu0 %v908, 32
  %v1429 = vpop.permute.xlu0 %1428
  %1430 = vrot.lane.b32.xlu0 %v910, 32
  %v1431 = vpop.permute.xlu0 %1430
  %1432 = vrot.lane.b32.xlu0 %v912, 32
  %v1433 = vpop.permute.xlu0 %1432
  %1434 = vrot.lane.b32.xlu0 %v914, 32
  %v1435 = vpop.permute.xlu0 %1434
  %v1441 = vsel %vm45, %v1418, 0
  %v1444 = vsel %vm45, %v1419, 0
  %1446 = vmatprep.subr.mxu0 0.0
  %1447 = vmatpush1.msra.mxu0 %v1429
  %1448 = vmatprep.subr.mxu0 0.0
  %1449 = vmatpush1.msra.mxu0 %v1431
  %1450 = vmatprep.subr.mxu0 0.0
  %1451 = vmatpush1.msra.mxu0 %v1433
  %1452 = vmatprep.subr.mxu0 0.0
  %1453 = vmatpush1.msra.mxu0 %v1435
  %1454 = vmatprep.subr.mxu0 0.0
  %1455 = vmatpush1.msra.mxu0 0.0
  %1456 = vmatprep.subr.mxu0 0.0
  %1457 = vmatpush1.msra.mxu0 0.0
  %1458 = vmatprep.subr.mxu0 0.0
  %1459 = vmatpush1.msra.mxu0 0.0
  %1460 = vmatprep.subr.mxu0 0.0
  %1461 = vmatpush1.msra.mxu0 0.0
  %1462 = vmatprep.subr.mxu0 0.0
  %1463 = vmatpush1.msra.mxu0 0.0
  %1464 = vmatprep.subr.mxu0 0.0
  %1465 = vmatpush1.msra.mxu0 0.0
  %1466 = vmatprep.subr.mxu0 0.0
  %1467 = vmatpush1.msra.mxu0 0.0
  %1468 = vmatprep.subr.mxu0 0.0
  %1469 = vmatpush1.msra.mxu0 0.0
  %1470 = vmatprep.subr.mxu0 0.0
  %1471 = vmatpush1.msra.mxu0 0.0
  %1472 = vmatprep.subr.mxu0 0.0
  %1473 = vmatpush1.msra.mxu0 0.0
  %1474 = vmatprep.subr.mxu0 0.0
  %1475 = vmatpush1.msra.mxu0 0.0
  %1476 = vmatprep.subr.mxu0 0.0
  %1477 = vmatpush1.msra.mxu0 0.0
  %1478 = vmatprep.subr.mxu0 0.0
  %1479 = vmatpush1.msra.mxu0 0.0
  %1480 = vmatprep.subr.mxu0 0.0
  %1481 = vmatpush1.msra.mxu0 0.0
  %1482 = vmatprep.subr.mxu0 0.0
  %1483 = vmatpush1.msra.mxu0 0.0
  %1484 = vmatprep.subr.mxu0 0.0
  %1485 = vmatpush1.msra.mxu0 0.0
  %1486 = vmatprep.subr.mxu0 0.0
  %1487 = vmatpush1.msra.mxu0 0.0
  %1488 = vmatprep.subr.mxu0 0.0
  %1489 = vmatpush1.msra.mxu0 0.0
  %1490 = vmatprep.subr.mxu0 0.0
  %1491 = vmatpush1.msra.mxu0 0.0
  %1492 = vmatprep.subr.mxu0 0.0
  %1493 = vmatpush1.msra.mxu0 0.0
  %1494 = vmatprep.subr.mxu0 0.0
  %1495 = vmatpush1.msra.mxu0 0.0
  %1496 = vmatprep.subr.mxu0 0.0
  %1497 = vmatpush1.msra.mxu0 0.0
  %1498 = vmatprep.subr.mxu0 0.0
  %1499 = vmatpush1.msra.mxu0 0.0
  %1500 = vmatprep.subr.mxu0 0.0
  %1501 = vmatpush1.msra.mxu0 0.0
  %1502 = vmatprep.subr.mxu0 0.0
  %1503 = vmatpush1.msra.mxu0 0.0
  %1504 = vmatprep.subr.mxu0 0.0
  %1505 = vmatpush1.msra.mxu0 0.0
  %1506 = vmatprep.subr.mxu0 0.0
  %1507 = vmatpush1.msra.mxu0 0.0
  %1508 = vmatprep.subr.mxu0 0.0
  %1509 = vmatpush1.msra.mxu0 0.0
  %1510 = vmatprep.mubr.f32.mxu0 0.0
  %1511 = vmatmul.mubr.f32.gmra.mrb[0].mxu0 %v1441
  %v1512 = vpop.f32.mrb[0].mxu0
  %v1513 = vadd.f32 %v1423, %v1512
  %v1514 = vpop.f32.mrb[0].mxu0
  %1515 = vmatprep.mubr.f32.mxu0 0.0
  %1516 = vmatmul.mubr.f32.gmra.mrb[0].mxu0 %v1444
  %v1517 = vpop.f32.mrb[0].mxu0
  %v1518 = vadd.f32 %v1423, %v1517
  %v1519 = vpop.f32.mrb[0].mxu0
  %1520 = vdwg.mxu0
  %v1521 = vadd.f32 %v905, %v1513
  %v1522 = vadd.f32 %v906, %v1518
  %v1523 = vsel %vm45, %v1521, 0.0
  %1524 = vadd.xlane.f32.xlu0 %v1523
  %v1525 = vpop.xlane.xlu0 %1524
  %v1526 = vsel %vm45, %v1522, 0.0
  %1527 = vadd.xlane.f32.xlu0 %v1526
  %v1528 = vpop.xlane.xlu0 %1527
  %v1529 = vmul.f32 %v1525, %v645
  %v1530 = vmul.f32 %v1528, %v645
  %v1531 = vsub.f32 %v1521, %v1529
  %v1532 = vsub.f32 %v1522, %v1530
  %v1533 = vmul.f32 %v1531, %v1531
  %v1534 = vmul.f32 %v1532, %v1532
  %v1535 = vsel %vm45, %v1533, 0.0
  %1536 = vadd.xlane.f32.xlu0 %v1535
  %v1537 = vpop.xlane.xlu0 %1536
  %v1538 = vsel %vm45, %v1534, 0.0
  %1539 = vadd.xlane.f32.xlu0 %v1538
  %v1540 = vpop.xlane.xlu0 %1539
  %v1541 = vmul.f32 %v1537, %v645
  %v1542 = vmul.f32 %v1540, %v645
  %v1543 = vadd.f32 %v1541, 1e-12
  %v1544 = vadd.f32 %v1542, 1e-12
  %v1545 = vrsqrt.pop %v1543
  %v1546 = vrsqrt.pop %v1544
  %v1547 = vmul.f32 %v1531, %v1545
  %v1548 = vmul.f32 %v1532, %v1546
  %v1549 = vlaneseq
  %v1550 = vshrl.u32 %v1549, 7
  %v1551 = vsub.s32 2, %v1550
  %v1552 = vrot.slane %v926, %v1551
  %v1553 = vmul.f32 %v1547, %v1552
  %v1554 = vmul.f32 %v1548, %v1552
  %v1555 = vlaneseq
  %v1556 = vshrl.u32 %v1555, 7
  %v1557 = vsub.s32 3, %v1556
  %v1558 = vrot.slane %v926, %v1557
  %v1559 = vadd.f32 %v1553, %v1558
  %v1560 = vadd.f32 %v1554, %v1558
  %v1561 = vlaneseq
  %v1562 = vshrl.u32 %v1561, 7
  %v1563 = vsub.s32 4, %v1562
  %v1564 = vrot.slane %v926, %v1563
  %v1566 = vsel %vm45, %v1559, 0
  %v1569 = vsel %vm45, %v1560, 0
  %1571 = vmatprep.subr.mxu0 0.0
  %1572 = vmatpush1.msra.mxu0 %v909
  %1573 = vmatprep.subr.mxu0 0.0
  %1574 = vmatpush1.msra.mxu0 %v911
  %1575 = vmatprep.subr.mxu0 0.0
  %1576 = vmatpush1.msra.mxu0 %v913
  %1577 = vmatprep.subr.mxu0 0.0
  %1578 = vmatpush1.msra.mxu0 %v915
  %1579 = vmatprep.subr.mxu0 0.0
  %1580 = vmatpush1.msra.mxu0 0.0
  %1581 = vmatprep.subr.mxu0 0.0
  %1582 = vmatpush1.msra.mxu0 0.0
  %1583 = vmatprep.subr.mxu0 0.0
  %1584 = vmatpush1.msra.mxu0 0.0
  %1585 = vmatprep.subr.mxu0 0.0
  %1586 = vmatpush1.msra.mxu0 0.0
  %1587 = vmatprep.subr.mxu0 0.0
  %1588 = vmatpush1.msra.mxu0 0.0
  %1589 = vmatprep.subr.mxu0 0.0
  %1590 = vmatpush1.msra.mxu0 0.0
  %1591 = vmatprep.subr.mxu0 0.0
  %1592 = vmatpush1.msra.mxu0 0.0
  %1593 = vmatprep.subr.mxu0 0.0
  %1594 = vmatpush1.msra.mxu0 0.0
  %1595 = vmatprep.subr.mxu0 0.0
  %1596 = vmatpush1.msra.mxu0 0.0
  %1597 = vmatprep.subr.mxu0 0.0
  %1598 = vmatpush1.msra.mxu0 0.0
  %1599 = vmatprep.subr.mxu0 0.0
  %1600 = vmatpush1.msra.mxu0 0.0
  %1601 = vmatprep.subr.mxu0 0.0
  %1602 = vmatpush1.msra.mxu0 0.0
  %1603 = vmatprep.subr.mxu0 0.0
  %1604 = vmatpush1.msra.mxu0 0.0
  %1605 = vmatprep.subr.mxu0 0.0
  %1606 = vmatpush1.msra.mxu0 0.0
  %1607 = vmatprep.subr.mxu0 0.0
  %1608 = vmatpush1.msra.mxu0 0.0
  %1609 = vmatprep.subr.mxu0 0.0
  %1610 = vmatpush1.msra.mxu0 0.0
  %1611 = vmatprep.subr.mxu0 0.0
  %1612 = vmatpush1.msra.mxu0 0.0
  %1613 = vmatprep.subr.mxu0 0.0
  %1614 = vmatpush1.msra.mxu0 0.0
  %1615 = vmatprep.subr.mxu0 0.0
  %1616 = vmatpush1.msra.mxu0 0.0
  %1617 = vmatprep.subr.mxu0 0.0
  %1618 = vmatpush1.msra.mxu0 0.0
  %1619 = vmatprep.subr.mxu0 0.0
  %1620 = vmatpush1.msra.mxu0 0.0
  %1621 = vmatprep.subr.mxu0 0.0
  %1622 = vmatpush1.msra.mxu0 0.0
  %1623 = vmatprep.subr.mxu0 0.0
  %1624 = vmatpush1.msra.mxu0 0.0
  %1625 = vmatprep.subr.mxu0 0.0
  %1626 = vmatpush1.msra.mxu0 0.0
  %1627 = vmatprep.subr.mxu0 0.0
  %1628 = vmatpush1.msra.mxu0 0.0
  %1629 = vmatprep.subr.mxu0 0.0
  %1630 = vmatpush1.msra.mxu0 0.0
  %1631 = vmatprep.subr.mxu0 0.0
  %1632 = vmatpush1.msra.mxu0 0.0
  %1633 = vmatprep.subr.mxu0 0.0
  %1634 = vmatpush1.msra.mxu0 0.0
  %1635 = vmatprep.mubr.f32.mxu0 0.0
  %1636 = vmatmul.mubr.f32.gmra.mrb[0].mxu0 %v1566
  %v1637 = vpop.f32.mrb[0].mxu0
  %v1638 = vadd.f32 %v1564, %v1637
  %v1639 = vpop.f32.mrb[0].mxu0
  %1640 = vmatprep.mubr.f32.mxu0 0.0
  %1641 = vmatmul.mubr.f32.gmra.mrb[0].mxu0 %v1569
  %v1642 = vpop.f32.mrb[0].mxu0
  %v1643 = vadd.f32 %v1564, %v1642
  %v1644 = vpop.f32.mrb[0].mxu0
  %1645 = vdwg.mxu0
  %v1646 = vmul.f32 %v1638, %v1638
  %v1647 = vmul.f32 %v1643, %v1643
  %v1648 = vmul.f32 %v1638, %v1646
  %v1649 = vmul.f32 %v1643, %v1647
  %v1650 = vmul.f32 %v1648, 0.044715
  %v1651 = vmul.f32 %v1649, 0.044715
  %v1652 = vadd.f32 %v1638, %v1650
  %v1653 = vadd.f32 %v1643, %v1651
  %v1654 = vmul.f32 %v1652, 0.7978846
  %v1655 = vmul.f32 %v1653, 0.7978846
  %v1656 = vtanh.pop %v1654
  %v1657 = vtanh.pop %v1655
  %v1658 = vadd.f32 %v1656, 1.0
  %v1659 = vadd.f32 %v1657, 1.0
  %v1660 = vmul.f32 %v1658, 0.5
  %v1661 = vmul.f32 %v1659, 0.5
  %v1662 = vmul.f32 %v1638, %v1660
  %v1663 = vmul.f32 %v1643, %v1661
  %v1664 = vlaneseq
  %v1665 = vshrl.u32 %v1664, 7
  %v1666 = vsub.s32 5, %v1665
  %v1667 = vrot.slane %v926, %v1666
  %v1669 = vsel %vm785, %v1662, 0
  %v1672 = vsel %vm785, %v1663, 0
  %1674 = vmatprep.subr.mxu0 0.0
  %1675 = vmatpush1.msra.mxu0 %v917
  %1676 = vmatprep.subr.mxu0 0.0
  %1677 = vmatpush1.msra.mxu0 %v918
  %1678 = vmatprep.subr.mxu0 0.0
  %1679 = vmatpush1.msra.mxu0 %v919
  %1680 = vmatprep.subr.mxu0 0.0
  %1681 = vmatpush1.msra.mxu0 %v920
  %1682 = vmatprep.subr.mxu0 0.0
  %1683 = vmatpush1.msra.mxu0 %v921
  %1684 = vmatprep.subr.mxu0 0.0
  %1685 = vmatpush1.msra.mxu0 %v922
  %1686 = vmatprep.subr.mxu0 0.0
  %1687 = vmatpush1.msra.mxu0 %v923
  %1688 = vmatprep.subr.mxu0 0.0
  %1689 = vmatpush1.msra.mxu0 %v924
  %1690 = vmatprep.subr.mxu0 0.0
  %1691 = vmatpush1.msra.mxu0 0.0
  %1692 = vmatprep.subr.mxu0 0.0
  %1693 = vmatpush1.msra.mxu0 0.0
  %1694 = vmatprep.subr.mxu0 0.0
  %1695 = vmatpush1.msra.mxu0 0.0
  %1696 = vmatprep.subr.mxu0 0.0
  %1697 = vmatpush1.msra.mxu0 0.0
  %1698 = vmatprep.subr.mxu0 0.0
  %1699 = vmatpush1.msra.mxu0 0.0
  %1700 = vmatprep.subr.mxu0 0.0
  %1701 = vmatpush1.msra.mxu0 0.0
  %1702 = vmatprep.subr.mxu0 0.0
  %1703 = vmatpush1.msra.mxu0 0.0
  %1704 = vmatprep.subr.mxu0 0.0
  %1705 = vmatpush1.msra.mxu0 0.0
  %1706 = vmatprep.subr.mxu0 0.0
  %1707 = vmatpush1.msra.mxu0 0.0
  %1708 = vmatprep.subr.mxu0 0.0
  %1709 = vmatpush1.msra.mxu0 0.0
  %1710 = vmatprep.subr.mxu0 0.0
  %1711 = vmatpush1.msra.mxu0 0.0
  %1712 = vmatprep.subr.mxu0 0.0
  %1713 = vmatpush1.msra.mxu0 0.0
  %1714 = vmatprep.subr.mxu0 0.0
  %1715 = vmatpush1.msra.mxu0 0.0
  %1716 = vmatprep.subr.mxu0 0.0
  %1717 = vmatpush1.msra.mxu0 0.0
  %1718 = vmatprep.subr.mxu0 0.0
  %1719 = vmatpush1.msra.mxu0 0.0
  %1720 = vmatprep.subr.mxu0 0.0
  %1721 = vmatpush1.msra.mxu0 0.0
  %1722 = vmatprep.subr.mxu0 0.0
  %1723 = vmatpush1.msra.mxu0 0.0
  %1724 = vmatprep.subr.mxu0 0.0
  %1725 = vmatpush1.msra.mxu0 0.0
  %1726 = vmatprep.subr.mxu0 0.0
  %1727 = vmatpush1.msra.mxu0 0.0
  %1728 = vmatprep.subr.mxu0 0.0
  %1729 = vmatpush1.msra.mxu0 0.0
  %1730 = vmatprep.subr.mxu0 0.0
  %1731 = vmatpush1.msra.mxu0 0.0
  %1732 = vmatprep.subr.mxu0 0.0
  %1733 = vmatpush1.msra.mxu0 0.0
  %1734 = vmatprep.subr.mxu0 0.0
  %1735 = vmatpush1.msra.mxu0 0.0
  %1736 = vmatprep.subr.mxu0 0.0
  %1737 = vmatpush1.msra.mxu0 0.0
  %1738 = vmatprep.mubr.f32.mxu0 0.0
  %1739 = vmatmul.mubr.f32.gmra.mrb[0].mxu0 %v1669
  %v1740 = vpop.f32.mrb[0].mxu0
  %v1741 = vadd.f32 %v1667, %v1740
  %v1742 = vpop.f32.mrb[0].mxu0
  %1743 = vmatprep.mubr.f32.mxu0 0.0
  %1744 = vmatmul.mubr.f32.gmra.mrb[0].mxu0 %v1672
  %v1745 = vpop.f32.mrb[0].mxu0
  %v1746 = vadd.f32 %v1667, %v1745
  %v1747 = vpop.f32.mrb[0].mxu0
  %1748 = vdwg.mxu0
  %v1749 = vadd.f32 %v1559, %v1741
  %v1750 = vadd.f32 %v1560, %v1746
  %v1751 = vsel %vm45, %v1749, 0.0
  %1752 = vadd.xlane.f32.xlu0 %v1751
  %v1753 = vpop.xlane.xlu0 %1752
  %v1754 = vsel %vm45, %v1750, 0.0
  %1755 = vadd.xlane.f32.xlu0 %v1754
  %v1756 = vpop.xlane.xlu0 %1755
  %v1757 = vmul.f32 %v1753, %v645
  %v1758 = vmul.f32 %v1756, %v645
  %v1759 = vsub.f32 %v1749, %v1757
  %v1760 = vsub.f32 %v1750, %v1758
  %v1761 = vmul.f32 %v1759, %v1759
  %v1762 = vmul.f32 %v1760, %v1760
  %v1763 = vsel %vm45, %v1761, 0.0
  %1764 = vadd.xlane.f32.xlu0 %v1763
  %v1765 = vpop.xlane.xlu0 %1764
  %v1766 = vsel %vm45, %v1762, 0.0
  %1767 = vadd.xlane.f32.xlu0 %v1766
  %v1768 = vpop.xlane.xlu0 %1767
  %v1769 = vmul.f32 %v1765, %v645
  %v1770 = vmul.f32 %v1768, %v645
  %v1771 = vadd.f32 %v1769, 1e-12
  %v1772 = vadd.f32 %v1770, 1e-12
  %v1773 = vrsqrt.pop %v1771
  %v1774 = vrsqrt.pop %v1772
  %v1775 = vmul.f32 %v1759, %v1773
  %v1776 = vmul.f32 %v1760, %v1774
  %v1777 = vlaneseq
  %v1778 = vshrl.u32 %v1777, 7
  %v1779 = vsub.s32 6, %v1778
  %v1780 = vrot.slane %v926, %v1779
  %v1781 = vmul.f32 %v1775, %v1780
  %v1782 = vmul.f32 %v1776, %v1780
  %v1783 = vlaneseq
  %v1784 = vshrl.u32 %v1783, 7
  %v1785 = vsub.s32 7, %v1784
  %v1786 = vrot.slane %v926, %v1785
  %v1787 = vadd.f32 %v1781, %v1786
  %v1788 = vadd.f32 %v1782, %v1786
  %1789 = vst.msk [vmem:[%s5] sm:$0xff] %vm45, %v1787
  %1790 = vst.msk [vmem:[%s5 + $0x8] sm:$0xff] %vm45, %v1788
  %s1791 = scalar_lea.vmem %s0, 16
  %v1792 = vld [vmem:[%s1791] sm:$0xff]
  %v1793 = vld [vmem:[%s1791 + $0x8] sm:$0xff]
  %s1794 = scalar_lea.vmem %s1, 16
  %v1795 = vld [vmem:[%s1794] sm:$0xff]
  %v1796 = vld [vmem:[%s1794 + $0x8] sm:$0xff]
  %s1797 = scalar_lea.vmem %s2, 128
  %v1798 = vld [vmem:[%s1797] sm:$0xff]
  %v1799 = vld [vmem:[%s1797 + $0x8] sm:$0xff]
  %v1800 = vld [vmem:[%s1797 + $0x10] sm:$0xff]
  %v1801 = vld [vmem:[%s1797 + $0x18] sm:$0xff]
  %v1802 = vld [vmem:[%s1797 + $0x20] sm:$0xff]
  %v1803 = vld [vmem:[%s1797 + $0x28] sm:$0xff]
  %v1804 = vld [vmem:[%s1797 + $0x30] sm:$0xff]
  %v1805 = vld [vmem:[%s1797 + $0x38] sm:$0xff]
  %s1806 = scalar_lea.vmem %s3, 128
  %v1807 = vld [vmem:[%s1806] sm:$0xff]
  %v1808 = vld [vmem:[%s1806 + $0x8] sm:$0xff]
  %v1809 = vld [vmem:[%s1806 + $0x10] sm:$0xff]
  %v1810 = vld [vmem:[%s1806 + $0x18] sm:$0xff]
  %v1811 = vld [vmem:[%s1806 + $0x20] sm:$0xff]
  %v1812 = vld [vmem:[%s1806 + $0x28] sm:$0xff]
  %v1813 = vld [vmem:[%s1806 + $0x30] sm:$0xff]
  %v1814 = vld [vmem:[%s1806 + $0x38] sm:$0xff]
  %s1815 = scalar_lea.vmem %s4, 16
  %v1816 = vld [vmem:[%s1815] sm:$0xff]
  %v1817 = vlaneseq
  %v1818 = vshrl.u32 %v1817, 7
  %v1819 = vsub.s32 0, %v1818
  %v1820 = vrot.slane %v1816, %v1819
  %v1822 = vsel %vm45, %v1792, 0
  %v1825 = vsel %vm45, %v1793, 0
  %1827 = vmatprep.subr.mxu0 0.0
  %1828 = vmatpush1.msra.mxu0 %v1798
  %1829 = vmatprep.subr.mxu0 0.0
  %1830 = vmatpush1.msra.mxu0 %v1800
  %1831 = vmatprep.subr.mxu0 0.0
  %1832 = vmatpush1.msra.mxu0 %v1802
  %1833 = vmatprep.subr.mxu0 0.0
  %1834 = vmatpush1.msra.mxu0 %v1804
  %1835 = vmatprep.subr.mxu0 0.0
  %1836 = vmatpush1.msra.mxu0 0.0
  %1837 = vmatprep.subr.mxu0 0.0
  %1838 = vmatpush1.msra.mxu0 0.0
  %1839 = vmatprep.subr.mxu0 0.0
  %1840 = vmatpush1.msra.mxu0 0.0
  %1841 = vmatprep.subr.mxu0 0.0
  %1842 = vmatpush1.msra.mxu0 0.0
  %1843 = vmatprep.subr.mxu0 0.0
  %1844 = vmatpush1.msra.mxu0 0.0
  %1845 = vmatprep.subr.mxu0 0.0
  %1846 = vmatpush1.msra.mxu0 0.0
  %1847 = vmatprep.subr.mxu0 0.0
  %1848 = vmatpush1.msra.mxu0 0.0
  %1849 = vmatprep.subr.mxu0 0.0
  %1850 = vmatpush1.msra.mxu0 0.0
  %1851 = vmatprep.subr.mxu0 0.0
  %1852 = vmatpush1.msra.mxu0 0.0
  %1853 = vmatprep.subr.mxu0 0.0
  %1854 = vmatpush1.msra.mxu0 0.0
  %1855 = vmatprep.subr.mxu0 0.0
  %1856 = vmatpush1.msra.mxu0 0.0
  %1857 = vmatprep.subr.mxu0 0.0
  %1858 = vmatpush1.msra.mxu0 0.0
  %1859 = vmatprep.subr.mxu0 0.0
  %1860 = vmatpush1.msra.mxu0 0.0
  %1861 = vmatprep.subr.mxu0 0.0
  %1862 = vmatpush1.msra.mxu0 0.0
  %1863 = vmatprep.subr.mxu0 0.0
  %1864 = vmatpush1.msra.mxu0 0.0
  %1865 = vmatprep.subr.mxu0 0.0
  %1866 = vmatpush1.msra.mxu0 0.0
  %1867 = vmatprep.subr.mxu0 0.0
  %1868 = vmatpush1.msra.mxu0 0.0
  %1869 = vmatprep.subr.mxu0 0.0
  %1870 = vmatpush1.msra.mxu0 0.0
  %1871 = vmatprep.subr.mxu0 0.0
  %1872 = vmatpush1.msra.mxu0 0.0
  %1873 = vmatprep.subr.mxu0 0.0
  %1874 = vmatpush1.msra.mxu0 0.0
  %1875 = vmatprep.subr.mxu0 0.0
  %1876 = vmatpush1.msra.mxu0 0.0
  %1877 = vmatprep.subr.mxu0 0.0
  %1878 = vmatpush1.msra.mxu0 0.0
  %1879 = vmatprep.subr.mxu0 0.0
  %1880 = vmatpush1.msra.mxu0 0.0
  %1881 = vmatprep.subr.mxu0 0.0
  %1882 = vmatpush1.msra.mxu0 0.0
  %1883 = vmatprep.subr.mxu0 0.0
  %1884 = vmatpush1.msra.mxu0 0.0
  %1885 = vmatprep.subr.mxu0 0.0
  %1886 = vmatpush1.msra.mxu0 0.0
  %1887 = vmatprep.subr.mxu0 0.0
  %1888 = vmatpush1.msra.mxu0 0.0
  %1889 = vmatprep.subr.mxu0 0.0
  %1890 = vmatpush1.msra.mxu0 0.0
  %1891 = vmatprep.mubr.f32.mxu0 0.0
  %1892 = vmatmul.mubr.f32.gmra.mrb[0].mxu0 %v1822
  %v1893 = vpop.f32.mrb[0].mxu0
  %v1894 = vadd.f32 %v1820, %v1893
  %v1895 = vpop.f32.mrb[0].mxu0
  %1896 = vmatprep.mubr.f32.mxu0 0.0
  %1897 = vmatmul.mubr.f32.gmra.mrb[0].mxu0 %v1825
  %v1898 = vpop.f32.mrb[0].mxu0
  %v1899 = vadd.f32 %v1820, %v1898
  %v1900 = vpop.f32.mrb[0].mxu0
  %1901 = vdwg.mxu0
  %1904 = vrot.lane.b32.xlu0 %v1894, 112
  %v1905 = vpop.permute.xlu0 %1904
  %1906 = vrot.lane.b32.xlu0 %v1899, 112
  %v1907 = vpop.permute.xlu0 %1906
  %1908 = vrot.lane.b32.xlu0 %v1894, 96
  %v1909 = vpop.permute.xlu0 %1908
  %1910 = vrot.lane.b32.xlu0 %v1899, 96
  %v1911 = vpop.permute.xlu0 %1910
  %v1912 = vsel %vm137, %v1894, 0
  %v1914 = vsel %vm137, %v1899, 0
  %v1916 = vsel %vm137, %v1909, 0
  %v1918 = vsel %vm137, %v1911, 0
  %1920 = vmatprep.subr.mxu0 0.0
  %1921 = vmatpush1.xpose.msra.mxu0 %v1916
  %1922 = vmatprep.subr.mxu0 0.0
  %1923 = vmatpush1.xpose.msra.mxu0 %v1918
  %1924 = vmatprep.subr.mxu0 0.0
  %1925 = vmatpush1.xpose.msra.mxu0 0.0
  %1926 = vmatprep.subr.mxu0 0.0
  %1927 = vmatpush1.xpose.msra.mxu0 0.0
  %1928 = vmatprep.subr.mxu0 0.0
  %1929 = vmatpush1.xpose.msra.mxu0 0.0
  %1930 = vmatprep.subr.mxu0 0.0
  %1931 = vmatpush1.xpose.msra.mxu0 0.0
  %1932 = vmatprep.subr.mxu0 0.0
  %1933 = vmatpush1.xpose.msra.mxu0 0.0
  %1934 = vmatprep.subr.mxu0 0.0
  %1935 = vmatpush1.xpose.msra.mxu0 0.0
  %1936 = vmatprep.subr.mxu0 0.0
  %1937 = vmatpush1.xpose.msra.mxu0 0.0
  %1938 = vmatprep.subr.mxu0 0.0
  %1939 = vmatpush1.xpose.msra.mxu0 0.0
  %1940 = vmatprep.subr.mxu0 0.0
  %1941 = vmatpush1.xpose.msra.mxu0 0.0
  %1942 = vmatprep.subr.mxu0 0.0
  %1943 = vmatpush1.xpose.msra.mxu0 0.0
  %1944 = vmatprep.subr.mxu0 0.0
  %1945 = vmatpush1.xpose.msra.mxu0 0.0
  %1946 = vmatprep.subr.mxu0 0.0
  %1947 = vmatpush1.xpose.msra.mxu0 0.0
  %1948 = vmatprep.subr.mxu0 0.0
  %1949 = vmatpush1.xpose.msra.mxu0 0.0
  %1950 = vmatprep.subr.mxu0 0.0
  %1951 = vmatpush1.xpose.msra.mxu0 0.0
  %1952 = vmatprep.subr.mxu0 0.0
  %1953 = vmatpush1.xpose.msra.mxu0 0.0
  %1954 = vmatprep.subr.mxu0 0.0
  %1955 = vmatpush1.xpose.msra.mxu0 0.0
  %1956 = vmatprep.subr.mxu0 0.0
  %1957 = vmatpush1.xpose.msra.mxu0 0.0
  %1958 = vmatprep.subr.mxu0 0.0
  %1959 = vmatpush1.xpose.msra.mxu0 0.0
  %1960 = vmatprep.subr.mxu0 0.0
  %1961 = vmatpush1.xpose.msra.mxu0 0.0
  %1962 = vmatprep.subr.mxu0 0.0
  %1963 = vmatpush1.xpose.msra.mxu0 0.0
  %1964 = vmatprep.subr.mxu0 0.0
  %1965 = vmatpush1.xpose.msra.mxu0 0.0
  %1966 = vmatprep.subr.mxu0 0.0
  %1967 = vmatpush1.xpose.msra.mxu0 0.0
  %1968 = vmatprep.subr.mxu0 0.0
  %1969 = vmatpush1.xpose.msra.mxu0 0.0
  %1970 = vmatprep.subr.mxu0 0.0
  %1971 = vmatpush1.xpose.msra.mxu0 0.0
  %1972 = vmatprep.subr.mxu0 0.0
  %1973 = vmatpush1.xpose.msra.mxu0 0.0
  %1974 = vmatprep.subr.mxu0 0.0
  %1975 = vmatpush1.xpose.msra.mxu0 0.0
  %1976 = vmatprep.subr.mxu0 0.0
  %1977 = vmatpush1.xpose.msra.mxu0 0.0
  %1978 = vmatprep.subr.mxu0 0.0
  %1979 = vmatpush1.xpose.msra.mxu0 0.0
  %1980 = vmatprep.subr.mxu0 0.0
  %1981 = vmatpush1.xpose.msra.mxu0 0.0
  %1982 = vmatprep.subr.mxu0 0.0
  %1983 = vmatpush1.xpose.msra.mxu0 0.0
  %1984 = vmatprep.mubr.f32.mxu0 0.0
  %1985 = vmatmul.mubr.f32.gmra.mrb[0].mxu0 %v1912
  %v1986 = vpop.f32.mrb[0].mxu0
  %v1987 = vadd.f32 %v1795, %v1986
  %v1988 = vpop.f32.mrb[0].mxu0
  %1989 = vmatprep.mubr.f32.mxu0 0.0
  %1990 = vmatmul.mubr.f32.gmra.mrb[0].mxu0 %v1914
  %v1991 = vpop.f32.mrb[0].mxu0
  %v1992 = vadd.f32 %v1796, %v1991
  %v1993 = vpop.f32.mrb[0].mxu0
  %1994 = vdwg.mxu0
  %1995 = vrot.lane.b32.xlu0 %v1905, 96
  %v1996 = vpop.permute.xlu0 %1995
  %1997 = vrot.lane.b32.xlu0 %v1907, 96
  %v1998 = vpop.permute.xlu0 %1997
  %v1999 = vsel %vm137, %v1905, 0
  %v2001 = vsel %vm137, %v1907, 0
  %v2003 = vsel %vm137, %v1996, 0
  %v2005 = vsel %vm137, %v1998, 0
  %2007 = vmatprep.subr.mxu0 0.0
  %2008 = vmatpush1.xpose.msra.mxu0 %v2003
  %2009 = vmatprep.subr.mxu0 0.0
  %2010 = vmatpush1.xpose.msra.mxu0 %v2005
  %2011 = vmatprep.subr.mxu0 0.0
  %2012 = vmatpush1.xpose.msra.mxu0 0.0
  %2013 = vmatprep.subr.mxu0 0.0
  %2014 = vmatpush1.xpose.msra.mxu0 0.0
  %2015 = vmatprep.subr.mxu0 0.0
  %2016 = vmatpush1.xpose.msra.mxu0 0.0
  %2017 = vmatprep.subr.mxu0 0.0
  %2018 = vmatpush1.xpose.msra.mxu0 0.0
  %2019 = vmatprep.subr.mxu0 0.0
  %2020 = vmatpush1.xpose.msra.mxu0 0.0
  %2021 = vmatprep.subr.mxu0 0.0
  %2022 = vmatpush1.xpose.msra.mxu0 0.0
  %2023 = vmatprep.subr.mxu0 0.0
  %2024 = vmatpush1.xpose.msra.mxu0 0.0
  %2025 = vmatprep.subr.mxu0 0.0
  %2026 = vmatpush1.xpose.msra.mxu0 0.0
  %2027 = vmatprep.subr.mxu0 0.0
  %2028 = vmatpush1.xpose.msra.mxu0 0.0
  %2029 = vmatprep.subr.mxu0 0.0
  %2030 = vmatpush1.xpose.msra.mxu0 0.0
  %2031 = vmatprep.subr.mxu0 0.0
  %2032 = vmatpush1.xpose.msra.mxu0 0.0
  %2033 = vmatprep.subr.mxu0 0.0
  %2034 = vmatpush1.xpose.msra.mxu0 0.0
  %2035 = vmatprep.subr.mxu0 0.0
  %2036 = vmatpush1.xpose.msra.mxu0 0.0
  %2037 = vmatprep.subr.mxu0 0.0
  %2038 = vmatpush1.xpose.msra.mxu0 0.0
  %2039 = vmatprep.subr.mxu0 0.0
  %2040 = vmatpush1.xpose.msra.mxu0 0.0
  %2041 = vmatprep.subr.mxu0 0.0
  %2042 = vmatpush1.xpose.msra.mxu0 0.0
  %2043 = vmatprep.subr.mxu0 0.0
  %2044 = vmatpush1.xpose.msra.mxu0 0.0
  %2045 = vmatprep.subr.mxu0 0.0
  %2046 = vmatpush1.xpose.msra.mxu0 0.0
  %2047 = vmatprep.subr.mxu0 0.0
  %2048 = vmatpush1.xpose.msra.mxu0 0.0
  %2049 = vmatprep.subr.mxu0 0.0
  %2050 = vmatpush1.xpose.msra.mxu0 0.0
  %2051 = vmatprep.subr.mxu0 0.0
  %2052 = vmatpush1.xpose.msra.mxu0 0.0
  %2053 = vmatprep.subr.mxu0 0.0
  %2054 = vmatpush1.xpose.msra.mxu0 0.0
  %2055 = vmatprep.subr.mxu0 0.0
  %2056 = vmatpush1.xpose.msra.mxu0 0.0
  %2057 = vmatprep.subr.mxu0 0.0
  %2058 = vmatpush1.xpose.msra.mxu0 0.0
  %2059 = vmatprep.subr.mxu0 0.0
  %2060 = vmatpush1.xpose.msra.mxu0 0.0
  %2061 = vmatprep.subr.mxu0 0.0
  %2062 = vmatpush1.xpose.msra.mxu0 0.0
  %2063 = vmatprep.subr.mxu0 0.0
  %2064 = vmatpush1.xpose.msra.mxu0 0.0
  %2065 = vmatprep.subr.mxu0 0.0
  %2066 = vmatpush1.xpose.msra.mxu0 0.0
  %2067 = vmatprep.subr.mxu0 0.0
  %2068 = vmatpush1.xpose.msra.mxu0 0.0
  %2069 = vmatprep.subr.mxu0 0.0
  %2070 = vmatpush1.xpose.msra.mxu0 0.0
  %2071 = vmatprep.mubr.f32.mxu0 0.0
  %2072 = vmatmul.mubr.f32.gmra.mrb[0].mxu0 %v1999
  %v2073 = vpop.f32.mrb[0].mxu0
  %v2074 = vadd.f32 %v1795, %v2073
  %v2075 = vpop.f32.mrb[0].mxu0
  %2076 = vmatprep.mubr.f32.mxu0 0.0
  %2077 = vmatmul.mubr.f32.gmra.mrb[0].mxu0 %v2001
  %v2078 = vpop.f32.mrb[0].mxu0
  %v2079 = vadd.f32 %v1796, %v2078
  %v2080 = vpop.f32.mrb[0].mxu0
  %2081 = vdwg.mxu0
  %v2082 = vsel %vm137, %v1987, -inf
  %2083 = vmax.xlane.f32.xlu0 %v2082
  %v2084 = vpop.xlane.xlu0 %2083
  %v2085 = vsel %vm137, %v1992, -inf
  %2086 = vmax.xlane.f32.xlu0 %v2085
  %v2087 = vpop.xlane.xlu0 %2086
  %v2088 = vsel %vm137, %v2074, -inf
  %2089 = vmax.xlane.f32.xlu0 %v2088
  %v2090 = vpop.xlane.xlu0 %2089
  %v2091 = vsel %vm137, %v2079, -inf
  %2092 = vmax.xlane.f32.xlu0 %v2091
  %v2093 = vpop.xlane.xlu0 %2092
  %v2094 = vsub.f32 %v1987, %v2084
  %v2095 = vsub.f32 %v1992, %v2087
  %v2096 = vsub.f32 %v2074, %v2090
  %v2097 = vsub.f32 %v2079, %v2093
  %v2098 = vmul.f32 %v2094, 1.442695
  %v2099 = vpow.pop %v2098
  %v2100 = vmul.f32 %v2095, 1.442695
  %v2101 = vpow.pop %v2100
  %v2102 = vmul.f32 %v2096, 1.442695
  %v2103 = vpow.pop %v2102
  %v2104 = vmul.f32 %v2097, 1.442695
  %v2105 = vpow.pop %v2104
  %v2106 = vsel %vm137, %v2099, 0.0
  %2107 = vadd.xlane.f32.xlu0 %v2106
  %v2108 = vpop.xlane.xlu0 %2107
  %v2109 = vsel %vm137, %v2101, 0.0
  %2110 = vadd.xlane.f32.xlu0 %v2109
  %v2111 = vpop.xlane.xlu0 %2110
  %v2112 = vsel %vm137, %v2103, 0.0
  %2113 = vadd.xlane.f32.xlu0 %v2112
  %v2114 = vpop.xlane.xlu0 %2113
  %v2115 = vsel %vm137, %v2105, 0.0
  %2116 = vadd.xlane.f32.xlu0 %v2115
  %v2117 = vpop.xlane.xlu0 %2116
  %v2118 = vrcp.pop %v2108
  %v2119 = vrcp.pop %v2111
  %v2120 = vrcp.pop %v2114
  %v2121 = vrcp.pop %v2117
  %v2122 = vmul.f32 %v2099, %v2118
  %v2123 = vmul.f32 %v2101, %v2119
  %v2124 = vmul.f32 %v2103, %v2120
  %v2125 = vmul.f32 %v2105, %v2121
  %2126 = vrot.lane.b32.xlu0 %v1894, 64
  %v2127 = vpop.permute.xlu0 %2126
  %2128 = vrot.lane.b32.xlu0 %v1899, 64
  %v2129 = vpop.permute.xlu0 %2128
  %v2133 = vsel %vm137, %v2122, 0
  %v2136 = vsel %vm137, %v2123, 0
  %2138 = vmatprep.subr.mxu0 0.0
  %2139 = vmatpush1.msra.mxu0 %v2127
  %2140 = vmatprep.subr.mxu0 0.0
  %2141 = vmatpush1.msra.mxu0 %v2129
  %2142 = vmatprep.subr.mxu0 0.0
  %2143 = vmatpush1.msra.mxu0 0.0
  %2144 = vmatprep.subr.mxu0 0.0
  %2145 = vmatpush1.msra.mxu0 0.0
  %2146 = vmatprep.subr.mxu0 0.0
  %2147 = vmatpush1.msra.mxu0 0.0
  %2148 = vmatprep.subr.mxu0 0.0
  %2149 = vmatpush1.msra.mxu0 0.0
  %2150 = vmatprep.subr.mxu0 0.0
  %2151 = vmatpush1.msra.mxu0 0.0
  %2152 = vmatprep.subr.mxu0 0.0
  %2153 = vmatpush1.msra.mxu0 0.0
  %2154 = vmatprep.subr.mxu0 0.0
  %2155 = vmatpush1.msra.mxu0 0.0
  %2156 = vmatprep.subr.mxu0 0.0
  %2157 = vmatpush1.msra.mxu0 0.0
  %2158 = vmatprep.subr.mxu0 0.0
  %2159 = vmatpush1.msra.mxu0 0.0
  %2160 = vmatprep.subr.mxu0 0.0
  %2161 = vmatpush1.msra.mxu0 0.0
  %2162 = vmatprep.subr.mxu0 0.0
  %2163 = vmatpush1.msra.mxu0 0.0
  %2164 = vmatprep.subr.mxu0 0.0
  %2165 = vmatpush1.msra.mxu0 0.0
  %2166 = vmatprep.subr.mxu0 0.0
  %2167 = vmatpush1.msra.mxu0 0.0
  %2168 = vmatprep.subr.mxu0 0.0
  %2169 = vmatpush1.msra.mxu0 0.0
  %2170 = vmatprep.subr.mxu0 0.0
  %2171 = vmatpush1.msra.mxu0 0.0
  %2172 = vmatprep.subr.mxu0 0.0
  %2173 = vmatpush1.msra.mxu0 0.0
  %2174 = vmatprep.subr.mxu0 0.0
  %2175 = vmatpush1.msra.mxu0 0.0
  %2176 = vmatprep.subr.mxu0 0.0
  %2177 = vmatpush1.msra.mxu0 0.0
  %2178 = vmatprep.subr.mxu0 0.0
  %2179 = vmatpush1.msra.mxu0 0.0
  %2180 = vmatprep.subr.mxu0 0.0
  %2181 = vmatpush1.msra.mxu0 0.0
  %2182 = vmatprep.subr.mxu0 0.0
  %2183 = vmatpush1.msra.mxu0 0.0
  %2184 = vmatprep.subr.mxu0 0.0
  %2185 = vmatpush1.msra.mxu0 0.0
  %2186 = vmatprep.subr.mxu0 0.0
  %2187 = vmatpush1.msra.mxu0 0.0
  %2188 = vmatprep.subr.mxu0 0.0
  %2189 = vmatpush1.msra.mxu0 0.0
  %2190 = vmatprep.subr.mxu0 0.0
  %2191 = vmatpush1.msra.mxu0 0.0
  %2192 = vmatprep.subr.mxu0 0.0
  %2193 = vmatpush1.msra.mxu0 0.0
  %2194 = vmatprep.subr.mxu0 0.0
  %2195 = vmatpush1.msra.mxu0 0.0
  %2196 = vmatprep.subr.mxu0 0.0
  %2197 = vmatpush1.msra.mxu0 0.0
  %2198 = vmatprep.subr.mxu0 0.0
  %2199 = vmatpush1.msra.mxu0 0.0
  %2200 = vmatprep.subr.mxu0 0.0
  %2201 = vmatpush1.msra.mxu0 0.0
  %2202 = vmatprep.mubr.f32.mxu0 0.0
  %2203 = vmatmul.mubr.f32.gmra.mrb[0].mxu0 %v2133
  %v2204 = vpop.f32.mrb[0].mxu0
  %v2205 = vadd.f32 0.0, %v2204
  %v2206 = vpop.f32.mrb[0].mxu0
  %2207 = vmatprep.mubr.f32.mxu0 0.0
  %2208 = vmatmul.mubr.f32.gmra.mrb[0].mxu0 %v2136
  %v2209 = vpop.f32.mrb[0].mxu0
  %v2210 = vadd.f32 0.0, %v2209
  %v2211 = vpop.f32.mrb[0].mxu0
  %2212 = vdwg.mxu0
  %2213 = vrot.lane.b32.xlu0 %v1905, 64
  %v2214 = vpop.permute.xlu0 %2213
  %2215 = vrot.lane.b32.xlu0 %v1907, 64
  %v2216 = vpop.permute.xlu0 %2215
  %v2220 = vsel %vm137, %v2124, 0
  %v2223 = vsel %vm137, %v2125, 0
  %2225 = vmatprep.subr.mxu0 0.0
  %2226 = vmatpush1.msra.mxu0 %v2214
  %2227 = vmatprep.subr.mxu0 0.0
  %2228 = vmatpush1.msra.mxu0 %v2216
  %2229 = vmatprep.subr.mxu0 0.0
  %2230 = vmatpush1.msra.mxu0 0.0
  %2231 = vmatprep.subr.mxu0 0.0
  %2232 = vmatpush1.msra.mxu0 0.0
  %2233 = vmatprep.subr.mxu0 0.0
  %2234 = vmatpush1.msra.mxu0 0.0
  %2235 = vmatprep.subr.mxu0 0.0
  %2236 = vmatpush1.msra.mxu0 0.0
  %2237 = vmatprep.subr.mxu0 0.0
  %2238 = vmatpush1.msra.mxu0 0.0
  %2239 = vmatprep.subr.mxu0 0.0
  %2240 = vmatpush1.msra.mxu0 0.0
  %2241 = vmatprep.subr.mxu0 0.0
  %2242 = vmatpush1.msra.mxu0 0.0
  %2243 = vmatprep.subr.mxu0 0.0
  %2244 = vmatpush1.msra.mxu0 0.0
  %2245 = vmatprep.subr.mxu0 0.0
  %2246 = vmatpush1.msra.mxu0 0.0
  %2247 = vmatprep.subr.mxu0 0.0
  %2248 = vmatpush1.msra.mxu0 0.0
  %2249 = vmatprep.subr.mxu0 0.0
  %2250 = vmatpush1.msra.mxu0 0.0
  %2251 = vmatprep.subr.mxu0 0.0
  %2252 = vmatpush1.msra.mxu0 0.0
  %2253 = vmatprep.subr.mxu0 0.0
  %2254 = vmatpush1.msra.mxu0 0.0
  %2255 = vmatprep.subr.mxu0 0.0
  %2256 = vmatpush1.msra.mxu0 0.0
  %2257 = vmatprep.subr.mxu0 0.0
  %2258 = vmatpush1.msra.mxu0 0.0
  %2259 = vmatprep.subr.mxu0 0.0
  %2260 = vmatpush1.msra.mxu0 0.0
  %2261 = vmatprep.subr.mxu0 0.0
  %2262 = vmatpush1.msra.mxu0 0.0
  %2263 = vmatprep.subr.mxu0 0.0
  %2264 = vmatpush1.msra.mxu0 0.0
  %2265 = vmatprep.subr.mxu0 0.0
  %2266 = vmatpush1.msra.mxu0 0.0
  %2267 = vmatprep.subr.mxu0 0.0
  %2268 = vmatpush1.msra.mxu0 0.0
  %2269 = vmatprep.subr.mxu0 0.0
  %2270 = vmatpush1.msra.mxu0 0.0
  %2271 = vmatprep.subr.mxu0 0.0
  %2272 = vmatpush1.msra.mxu0 0.0
  %2273 = vmatprep.subr.mxu0 0.0
  %2274 = vmatpush1.msra.mxu0 0.0
  %2275 = vmatprep.subr.mxu0 0.0
  %2276 = vmatpush1.msra.mxu0 0.0
  %2277 = vmatprep.subr.mxu0 0.0
  %2278 = vmatpush1.msra.mxu0 0.0
  %2279 = vmatprep.subr.mxu0 0.0
  %2280 = vmatpush1.msra.mxu0 0.0
  %2281 = vmatprep.subr.mxu0 0.0
  %2282 = vmatpush1.msra.mxu0 0.0
  %2283 = vmatprep.subr.mxu0 0.0
  %2284 = vmatpush1.msra.mxu0 0.0
  %2285 = vmatprep.subr.mxu0 0.0
  %2286 = vmatpush1.msra.mxu0 0.0
  %2287 = vmatprep.subr.mxu0 0.0
  %2288 = vmatpush1.msra.mxu0 0.0
  %2289 = vmatprep.mubr.f32.mxu0 0.0
  %2290 = vmatmul.mubr.f32.gmra.mrb[0].mxu0 %v2220
  %v2291 = vpop.f32.mrb[0].mxu0
  %v2292 = vadd.f32 0.0, %v2291
  %v2293 = vpop.f32.mrb[0].mxu0
  %2294 = vmatprep.mubr.f32.mxu0 0.0
  %2295 = vmatmul.mubr.f32.gmra.mrb[0].mxu0 %v2223
  %v2296 = vpop.f32.mrb[0].mxu0
  %v2297 = vadd.f32 0.0, %v2296
  %v2298 = vpop.f32.mrb[0].mxu0
  %2299 = vdwg.mxu0
  %2302 = vrot.lane.b32.xlu0 %v2292, 16
  %v2303 = vpop.permute.xlu0 %2302
  %2304 = vrot.lane.b32.xlu0 %v2297, 16
  %v2305 = vpop.permute.xlu0 %2304
  %v2308 = vsel %vm137, %v2205, %v2303
  %v2309 = vsel %vm137, %v2210, %v2305
  %v2310 = vlaneseq
  %v2311 = vshrl.u32 %v2310, 7
  %v2312 = vsub.s32 1, %v2311
  %v2313 = vrot.slane %v1816, %v2312
  %2318 = vrot.lane.b32.xlu0 %v1798, 32
  %v2319 = vpop.permute.xlu0 %2318
  %2320 = vrot.lane.b32.xlu0 %v1800, 32
  %v2321 = vpop.permute.xlu0 %2320
  %2322 = vrot.lane.b32.xlu0 %v1802, 32
  %v2323 = vpop.permute.xlu0 %2322
  %2324 = vrot.lane.b32.xlu0 %v1804, 32
  %v2325 = vpop.permute.xlu0 %2324
  %v2331 = vsel %vm45, %v2308, 0
  %v2334 = vsel %vm45, %v2309, 0
  %2336 = vmatprep.subr.mxu0 0.0
  %2337 = vmatpush1.msra.mxu0 %v2319
  %2338 = vmatprep.subr.mxu0 0.0
  %2339 = vmatpush1.msra.mxu0 %v2321
  %2340 = vmatprep.subr.mxu0 0.0
  %2341 = vmatpush1.msra.mxu0 %v2323
  %2342 = vmatprep.subr.mxu0 0.0
  %2343 = vmatpush1.msra.mxu0 %v2325
  %2344 = vmatprep.subr.mxu0 0.0
  %2345 = vmatpush1.msra.mxu0 0.0
  %2346 = vmatprep.subr.mxu0 0.0
  %2347 = vmatpush1.msra.mxu0 0.0
  %2348 = vmatprep.subr.mxu0 0.0
  %2349 = vmatpush1.msra.mxu0 0.0
  %2350 = vmatprep.subr.mxu0 0.0
  %2351 = vmatpush1.msra.mxu0 0.0
  %2352 = vmatprep.subr.mxu0 0.0
  %2353 = vmatpush1.msra.mxu0 0.0
  %2354 = vmatprep.subr.mxu0 0.0
  %2355 = vmatpush1.msra.mxu0 0.0
  %2356 = vmatprep.subr.mxu0 0.0
  %2357 = vmatpush1.msra.mxu0 0.0
  %2358 = vmatprep.subr.mxu0 0.0
  %2359 = vmatpush1.msra.mxu0 0.0
  %2360 = vmatprep.subr.mxu0 0.0
  %2361 = vmatpush1.msra.mxu0 0.0
  %2362 = vmatprep.subr.mxu0 0.0
  %2363 = vmatpush1.msra.mxu0 0.0
  %2364 = vmatprep.subr.mxu0 0.0
  %2365 = vmatpush1.msra.mxu0 0.0
  %2366 = vmatprep.subr.mxu0 0.0
  %2367 = vmatpush1.msra.mxu0 0.0
  %2368 = vmatprep.subr.mxu0 0.0
  %2369 = vmatpush1.msra.mxu0 0.0
  %2370 = vmatprep.subr.mxu0 0.0
  %2371 = vmatpush1.msra.mxu0 0.0
  %2372 = vmatprep.subr.mxu0 0.0
  %2373 = vmatpush1.msra.mxu0 0.0
  %2374 = vmatprep.subr.mxu0 0.0
  %2375 = vmatpush1.msra.mxu0 0.0
  %2376 = vmatprep.subr.mxu0 0.0
  %2377 = vmatpush1.msra.mxu0 0.0
  %2378 = vmatprep.subr.mxu0 0.0
  %2379 = vmatpush1.msra.mxu0 0.0
  %2380 = vmatprep.subr.mxu0 0.0
  %2381 = vmatpush1.msra.mxu0 0.0
  %2382 = vmatprep.subr.mxu0 0.0
  %2383 = vmatpush1.msra.mxu0 0.0
  %2384 = vmatprep.subr.mxu0 0.0
  %2385 = vmatpush1.msra.mxu0 0.0
  %2386 = vmatprep.subr.mxu0 0.0
  %2387 = vmatpush1.msra.mxu0 0.0
  %2388 = vmatprep.subr.mxu0 0.0
  %2389 = vmatpush1.msra.mxu0 0.0
  %2390 = vmatprep.subr.mxu0 0.0
  %2391 = vmatpush1.msra.mxu0 0.0
  %2392 = vmatprep.subr.mxu0 0.0
  %2393 = vmatpush1.msra.mxu0 0.0
  %2394 = vmatprep.subr.mxu0 0.0
  %2395 = vmatpush1.msra.mxu0 0.0
  %2396 = vmatprep.subr.mxu0 0.0
  %2397 = vmatpush1.msra.mxu0 0.0
  %2398 = vmatprep.subr.mxu0 0.0
  %2399 = vmatpush1.msra.mxu0 0.0
  %2400 = vmatprep.mubr.f32.mxu0 0.0
  %2401 = vmatmul.mubr.f32.gmra.mrb[0].mxu0 %v2331
  %v2402 = vpop.f32.mrb[0].mxu0
  %v2403 = vadd.f32 %v2313, %v2402
  %v2404 = vpop.f32.mrb[0].mxu0
  %2405 = vmatprep.mubr.f32.mxu0 0.0
  %2406 = vmatmul.mubr.f32.gmra.mrb[0].mxu0 %v2334
  %v2407 = vpop.f32.mrb[0].mxu0
  %v2408 = vadd.f32 %v2313, %v2407
  %v2409 = vpop.f32.mrb[0].mxu0
  %2410 = vdwg.mxu0
  %v2411 = vadd.f32 %v1792, %v2403
  %v2412 = vadd.f32 %v1793, %v2408
  %v2413 = vsel %vm45, %v2411, 0.0
  %2414 = vadd.xlane.f32.xlu0 %v2413
  %v2415 = vpop.xlane.xlu0 %2414
  %v2416 = vsel %vm45, %v2412, 0.0
  %2417 = vadd.xlane.f32.xlu0 %v2416
  %v2418 = vpop.xlane.xlu0 %2417
  %v2419 = vmul.f32 %v2415, %v645
  %v2420 = vmul.f32 %v2418, %v645
  %v2421 = vsub.f32 %v2411, %v2419
  %v2422 = vsub.f32 %v2412, %v2420
  %v2423 = vmul.f32 %v2421, %v2421
  %v2424 = vmul.f32 %v2422, %v2422
  %v2425 = vsel %vm45, %v2423, 0.0
  %2426 = vadd.xlane.f32.xlu0 %v2425
  %v2427 = vpop.xlane.xlu0 %2426
  %v2428 = vsel %vm45, %v2424, 0.0
  %2429 = vadd.xlane.f32.xlu0 %v2428
  %v2430 = vpop.xlane.xlu0 %2429
  %v2431 = vmul.f32 %v2427, %v645
  %v2432 = vmul.f32 %v2430, %v645
  %v2433 = vadd.f32 %v2431, 1e-12
  %v2434 = vadd.f32 %v2432, 1e-12
  %v2435 = vrsqrt.pop %v2433
  %v2436 = vrsqrt.pop %v2434
  %v2437 = vmul.f32 %v2421, %v2435
  %v2438 = vmul.f32 %v2422, %v2436
  %v2439 = vlaneseq
  %v2440 = vshrl.u32 %v2439, 7
  %v2441 = vsub.s32 2, %v2440
  %v2442 = vrot.slane %v1816, %v2441
  %v2443 = vmul.f32 %v2437, %v2442
  %v2444 = vmul.f32 %v2438, %v2442
  %v2445 = vlaneseq
  %v2446 = vshrl.u32 %v2445, 7
  %v2447 = vsub.s32 3, %v2446
  %v2448 = vrot.slane %v1816, %v2447
  %v2449 = vadd.f32 %v2443, %v2448
  %v2450 = vadd.f32 %v2444, %v2448
  %v2451 = vlaneseq
  %v2452 = vshrl.u32 %v2451, 7
  %v2453 = vsub.s32 4, %v2452
  %v2454 = vrot.slane %v1816, %v2453
  %v2456 = vsel %vm45, %v2449, 0
  %v2459 = vsel %vm45, %v2450, 0
  %2461 = vmatprep.subr.mxu0 0.0
  %2462 = vmatpush1.msra.mxu0 %v1799
  %2463 = vmatprep.subr.mxu0 0.0
  %2464 = vmatpush1.msra.mxu0 %v1801
  %2465 = vmatprep.subr.mxu0 0.0
  %2466 = vmatpush1.msra.mxu0 %v1803
  %2467 = vmatprep.subr.mxu0 0.0
  %2468 = vmatpush1.msra.mxu0 %v1805
  %2469 = vmatprep.subr.mxu0 0.0
  %2470 = vmatpush1.msra.mxu0 0.0
  %2471 = vmatprep.subr.mxu0 0.0
  %2472 = vmatpush1.msra.mxu0 0.0
  %2473 = vmatprep.subr.mxu0 0.0
  %2474 = vmatpush1.msra.mxu0 0.0
  %2475 = vmatprep.subr.mxu0 0.0
  %2476 = vmatpush1.msra.mxu0 0.0
  %2477 = vmatprep.subr.mxu0 0.0
  %2478 = vmatpush1.msra.mxu0 0.0
  %2479 = vmatprep.subr.mxu0 0.0
  %2480 = vmatpush1.msra.mxu0 0.0
  %2481 = vmatprep.subr.mxu0 0.0
  %2482 = vmatpush1.msra.mxu0 0.0
  %2483 = vmatprep.subr.mxu0 0.0
  %2484 = vmatpush1.msra.mxu0 0.0
  %2485 = vmatprep.subr.mxu0 0.0
  %2486 = vmatpush1.msra.mxu0 0.0
  %2487 = vmatprep.subr.mxu0 0.0
  %2488 = vmatpush1.msra.mxu0 0.0
  %2489 = vmatprep.subr.mxu0 0.0
  %2490 = vmatpush1.msra.mxu0 0.0
  %2491 = vmatprep.subr.mxu0 0.0
  %2492 = vmatpush1.msra.mxu0 0.0
  %2493 = vmatprep.subr.mxu0 0.0
  %2494 = vmatpush1.msra.mxu0 0.0
  %2495 = vmatprep.subr.mxu0 0.0
  %2496 = vmatpush1.msra.mxu0 0.0
  %2497 = vmatprep.subr.mxu0 0.0
  %2498 = vmatpush1.msra.mxu0 0.0
  %2499 = vmatprep.subr.mxu0 0.0
  %2500 = vmatpush1.msra.mxu0 0.0
  %2501 = vmatprep.subr.mxu0 0.0
  %2502 = vmatpush1.msra.mxu0 0.0
  %2503 = vmatprep.subr.mxu0 0.0
  %2504 = vmatpush1.msra.mxu0 0.0
  %2505 = vmatprep.subr.mxu0 0.0
  %2506 = vmatpush1.msra.mxu0 0.0
  %2507 = vmatprep.subr.mxu0 0.0
  %2508 = vmatpush1.msra.mxu0 0.0
  %2509 = vmatprep.subr.mxu0 0.0
  %2510 = vmatpush1.msra.mxu0 0.0
  %2511 = vmatprep.subr.mxu0 0.0
  %2512 = vmatpush1.msra.mxu0 0.0
  %2513 = vmatprep.subr.mxu0 0.0
  %2514 = vmatpush1.msra.mxu0 0.0
  %2515 = vmatprep.subr.mxu0 0.0
  %2516 = vmatpush1.msra.mxu0 0.0
  %2517 = vmatprep.subr.mxu0 0.0
  %2518 = vmatpush1.msra.mxu0 0.0
  %2519 = vmatprep.subr.mxu0 0.0
  %2520 = vmatpush1.msra.mxu0 0.0
  %2521 = vmatprep.subr.mxu0 0.0
  %2522 = vmatpush1.msra.mxu0 0.0
  %2523 = vmatprep.subr.mxu0 0.0
  %2524 = vmatpush1.msra.mxu0 0.0
  %2525 = vmatprep.mubr.f32.mxu0 0.0
  %2526 = vmatmul.mubr.f32.gmra.mrb[0].mxu0 %v2456
  %v2527 = vpop.f32.mrb[0].mxu0
  %v2528 = vadd.f32 %v2454, %v2527
  %v2529 = vpop.f32.mrb[0].mxu0
  %2530 = vmatprep.mubr.f32.mxu0 0.0
  %2531 = vmatmul.mubr.f32.gmra.mrb[0].mxu0 %v2459
  %v2532 = vpop.f32.mrb[0].mxu0
  %v2533 = vadd.f32 %v2454, %v2532
  %v2534 = vpop.f32.mrb[0].mxu0
  %2535 = vdwg.mxu0
  %v2536 = vmul.f32 %v2528, %v2528
  %v2537 = vmul.f32 %v2533, %v2533
  %v2538 = vmul.f32 %v2528, %v2536
  %v2539 = vmul.f32 %v2533, %v2537
  %v2540 = vmul.f32 %v2538, 0.044715
  %v2541 = vmul.f32 %v2539, 0.044715
  %v2542 = vadd.f32 %v2528, %v2540
  %v2543 = vadd.f32 %v2533, %v2541
  %v2544 = vmul.f32 %v2542, 0.7978846
  %v2545 = vmul.f32 %v2543, 0.7978846
  %v2546 = vtanh.pop %v2544
  %v2547 = vtanh.pop %v2545
  %v2548 = vadd.f32 %v2546, 1.0
  %v2549 = vadd.f32 %v2547, 1.0
  %v2550 = vmul.f32 %v2548, 0.5
  %v2551 = vmul.f32 %v2549, 0.5
  %v2552 = vmul.f32 %v2528, %v2550
  %v2553 = vmul.f32 %v2533, %v2551
  %v2554 = vlaneseq
  %v2555 = vshrl.u32 %v2554, 7
  %v2556 = vsub.s32 5, %v2555
  %v2557 = vrot.slane %v1816, %v2556
  %v2559 = vsel %vm785, %v2552, 0
  %v2562 = vsel %vm785, %v2553, 0
  %2564 = vmatprep.subr.mxu0 0.0
  %2565 = vmatpush1.msra.mxu0 %v1807
  %2566 = vmatprep.subr.mxu0 0.0
  %2567 = vmatpush1.msra.mxu0 %v1808
  %2568 = vmatprep.subr.mxu0 0.0
  %2569 = vmatpush1.msra.mxu0 %v1809
  %2570 = vmatprep.subr.mxu0 0.0
  %2571 = vmatpush1.msra.mxu0 %v1810
  %2572 = vmatprep.subr.mxu0 0.0
  %2573 = vmatpush1.msra.mxu0 %v1811
  %2574 = vmatprep.subr.mxu0 0.0
  %2575 = vmatpush1.msra.mxu0 %v1812
  %2576 = vmatprep.subr.mxu0 0.0
  %2577 = vmatpush1.msra.mxu0 %v1813
  %2578 = vmatprep.subr.mxu0 0.0
  %2579 = vmatpush1.msra.mxu0 %v1814
  %2580 = vmatprep.subr.mxu0 0.0
  %2581 = vmatpush1.msra.mxu0 0.0
  %2582 = vmatprep.subr.mxu0 0.0
  %2583 = vmatpush1.msra.mxu0 0.0
  %2584 = vmatprep.subr.mxu0 0.0
  %2585 = vmatpush1.msra.mxu0 0.0
  %2586 = vmatprep.subr.mxu0 0.0
  %2587 = vmatpush1.msra.mxu0 0.0
  %2588 = vmatprep.subr.mxu0 0.0
  %2589 = vmatpush1.msra.mxu0 0.0
  %2590 = vmatprep.subr.mxu0 0.0
  %2591 = vmatpush1.msra.mxu0 0.0
  %2592 = vmatprep.subr.mxu0 0.0
  %2593 = vmatpush1.msra.mxu0 0.0
  %2594 = vmatprep.subr.mxu0 0.0
  %2595 = vmatpush1.msra.mxu0 0.0
  %2596 = vmatprep.subr.mxu0 0.0
  %2597 = vmatpush1.msra.mxu0 0.0
  %2598 = vmatprep.subr.mxu0 0.0
  %2599 = vmatpush1.msra.mxu0 0.0
  %2600 = vmatprep.subr.mxu0 0.0
  %2601 = vmatpush1.msra.mxu0 0.0
  %2602 = vmatprep.subr.mxu0 0.0
  %2603 = vmatpush1.msra.mxu0 0.0
  %2604 = vmatprep.subr.mxu0 0.0
  %2605 = vmatpush1.msra.mxu0 0.0
  %2606 = vmatprep.subr.mxu0 0.0
  %2607 = vmatpush1.msra.mxu0 0.0
  %2608 = vmatprep.subr.mxu0 0.0
  %2609 = vmatpush1.msra.mxu0 0.0
  %2610 = vmatprep.subr.mxu0 0.0
  %2611 = vmatpush1.msra.mxu0 0.0
  %2612 = vmatprep.subr.mxu0 0.0
  %2613 = vmatpush1.msra.mxu0 0.0
  %2614 = vmatprep.subr.mxu0 0.0
  %2615 = vmatpush1.msra.mxu0 0.0
  %2616 = vmatprep.subr.mxu0 0.0
  %2617 = vmatpush1.msra.mxu0 0.0
  %2618 = vmatprep.subr.mxu0 0.0
  %2619 = vmatpush1.msra.mxu0 0.0
  %2620 = vmatprep.subr.mxu0 0.0
  %2621 = vmatpush1.msra.mxu0 0.0
  %2622 = vmatprep.subr.mxu0 0.0
  %2623 = vmatpush1.msra.mxu0 0.0
  %2624 = vmatprep.subr.mxu0 0.0
  %2625 = vmatpush1.msra.mxu0 0.0
  %2626 = vmatprep.subr.mxu0 0.0
  %2627 = vmatpush1.msra.mxu0 0.0
  %2628 = vmatprep.mubr.f32.mxu0 0.0
  %2629 = vmatmul.mubr.f32.gmra.mrb[0].mxu0 %v2559
  %v2630 = vpop.f32.mrb[0].mxu0
  %v2631 = vadd.f32 %v2557, %v2630
  %v2632 = vpop.f32.mrb[0].mxu0
  %2633 = vmatprep.mubr.f32.mxu0 0.0
  %2634 = vmatmul.mubr.f32.gmra.mrb[0].mxu0 %v2562
  %v2635 = vpop.f32.mrb[0].mxu0
  %v2636 = vadd.f32 %v2557, %v2635
  %v2637 = vpop.f32.mrb[0].mxu0
  %2638 = vdwg.mxu0
  %v2639 = vadd.f32 %v2449, %v2631
  %v2640 = vadd.f32 %v2450, %v2636
  %v2641 = vsel %vm45, %v2639, 0.0
  %2642 = vadd.xlane.f32.xlu0 %v2641
  %v2643 = vpop.xlane.xlu0 %2642
  %v2644 = vsel %vm45, %v2640, 0.0
  %2645 = vadd.xlane.f32.xlu0 %v2644
  %v2646 = vpop.xlane.xlu0 %2645
  %v2647 = vmul.f32 %v2643, %v645
  %v2648 = vmul.f32 %v2646, %v645
  %v2649 = vsub.f32 %v2639, %v2647
  %v2650 = vsub.f32 %v2640, %v2648
  %v2651 = vmul.f32 %v2649, %v2649
  %v2652 = vmul.f32 %v2650, %v2650
  %v2653 = vsel %vm45, %v2651, 0.0
  %2654 = vadd.xlane.f32.xlu0 %v2653
  %v2655 = vpop.xlane.xlu0 %2654
  %v2656 = vsel %vm45, %v2652, 0.0
  %2657 = vadd.xlane.f32.xlu0 %v2656
  %v2658 = vpop.xlane.xlu0 %2657
  %v2659 = vmul.f32 %v2655, %v645
  %v2660 = vmul.f32 %v2658, %v645
  %v2661 = vadd.f32 %v2659, 1e-12
  %v2662 = vadd.f32 %v2660, 1e-12
  %v2663 = vrsqrt.pop %v2661
  %v2664 = vrsqrt.pop %v2662
  %v2665 = vmul.f32 %v2649, %v2663
  %v2666 = vmul.f32 %v2650, %v2664
  %v2667 = vlaneseq
  %v2668 = vshrl.u32 %v2667, 7
  %v2669 = vsub.s32 6, %v2668
  %v2670 = vrot.slane %v1816, %v2669
  %v2671 = vmul.f32 %v2665, %v2670
  %v2672 = vmul.f32 %v2666, %v2670
  %v2673 = vlaneseq
  %v2674 = vshrl.u32 %v2673, 7
  %v2675 = vsub.s32 7, %v2674
  %v2676 = vrot.slane %v1816, %v2675
  %v2677 = vadd.f32 %v2671, %v2676
  %v2678 = vadd.f32 %v2672, %v2676
  %s2679 = scalar_lea.vmem %s2, 192
  %v2680 = vld [vmem:[%s2679] sm:$0xff]
  %v2681 = vld [vmem:[%s2679 + $0x8] sm:$0xff]
  %v2682 = vld [vmem:[%s2679 + $0x10] sm:$0xff]
  %v2683 = vld [vmem:[%s2679 + $0x18] sm:$0xff]
  %v2684 = vld [vmem:[%s2679 + $0x20] sm:$0xff]
  %v2685 = vld [vmem:[%s2679 + $0x28] sm:$0xff]
  %v2686 = vld [vmem:[%s2679 + $0x30] sm:$0xff]
  %v2687 = vld [vmem:[%s2679 + $0x38] sm:$0xff]
  %s2688 = scalar_lea.vmem %s3, 192
  %v2689 = vld [vmem:[%s2688] sm:$0xff]
  %v2690 = vld [vmem:[%s2688 + $0x8] sm:$0xff]
  %v2691 = vld [vmem:[%s2688 + $0x10] sm:$0xff]
  %v2692 = vld [vmem:[%s2688 + $0x18] sm:$0xff]
  %v2693 = vld [vmem:[%s2688 + $0x20] sm:$0xff]
  %v2694 = vld [vmem:[%s2688 + $0x28] sm:$0xff]
  %v2695 = vld [vmem:[%s2688 + $0x30] sm:$0xff]
  %v2696 = vld [vmem:[%s2688 + $0x38] sm:$0xff]
  %s2697 = scalar_lea.vmem %s4, 24
  %v2698 = vld [vmem:[%s2697] sm:$0xff]
  %v2699 = vlaneseq
  %v2700 = vshrl.u32 %v2699, 7
  %v2701 = vsub.s32 0, %v2700
  %v2702 = vrot.slane %v2698, %v2701
  %v2704 = vsel %vm45, %v2677, 0
  %v2707 = vsel %vm45, %v2678, 0
  %2709 = vmatprep.subr.mxu0 0.0
  %2710 = vmatpush1.msra.mxu0 %v2680
  %2711 = vmatprep.subr.mxu0 0.0
  %2712 = vmatpush1.msra.mxu0 %v2682
  %2713 = vmatprep.subr.mxu0 0.0
  %2714 = vmatpush1.msra.mxu0 %v2684
  %2715 = vmatprep.subr.mxu0 0.0
  %2716 = vmatpush1.msra.mxu0 %v2686
  %2717 = vmatprep.subr.mxu0 0.0
  %2718 = vmatpush1.msra.mxu0 0.0
  %2719 = vmatprep.subr.mxu0 0.0
  %2720 = vmatpush1.msra.mxu0 0.0
  %2721 = vmatprep.subr.mxu0 0.0
  %2722 = vmatpush1.msra.mxu0 0.0
  %2723 = vmatprep.subr.mxu0 0.0
  %2724 = vmatpush1.msra.mxu0 0.0
  %2725 = vmatprep.subr.mxu0 0.0
  %2726 = vmatpush1.msra.mxu0 0.0
  %2727 = vmatprep.subr.mxu0 0.0
  %2728 = vmatpush1.msra.mxu0 0.0
  %2729 = vmatprep.subr.mxu0 0.0
  %2730 = vmatpush1.msra.mxu0 0.0
  %2731 = vmatprep.subr.mxu0 0.0
  %2732 = vmatpush1.msra.mxu0 0.0
  %2733 = vmatprep.subr.mxu0 0.0
  %2734 = vmatpush1.msra.mxu0 0.0
  %2735 = vmatprep.subr.mxu0 0.0
  %2736 = vmatpush1.msra.mxu0 0.0
  %2737 = vmatprep.subr.mxu0 0.0
  %2738 = vmatpush1.msra.mxu0 0.0
  %2739 = vmatprep.subr.mxu0 0.0
  %2740 = vmatpush1.msra.mxu0 0.0
  %2741 = vmatprep.subr.mxu0 0.0
  %2742 = vmatpush1.msra.mxu0 0.0
  %2743 = vmatprep.subr.mxu0 0.0
  %2744 = vmatpush1.msra.mxu0 0.0
  %2745 = vmatprep.subr.mxu0 0.0
  %2746 = vmatpush1.msra.mxu0 0.0
  %2747 = vmatprep.subr.mxu0 0.0
  %2748 = vmatpush1.msra.mxu0 0.0
  %2749 = vmatprep.subr.mxu0 0.0
  %2750 = vmatpush1.msra.mxu0 0.0
  %2751 = vmatprep.subr.mxu0 0.0
  %2752 = vmatpush1.msra.mxu0 0.0
  %2753 = vmatprep.subr.mxu0 0.0
  %2754 = vmatpush1.msra.mxu0 0.0
  %2755 = vmatprep.subr.mxu0 0.0
  %2756 = vmatpush1.msra.mxu0 0.0
  %2757 = vmatprep.subr.mxu0 0.0
  %2758 = vmatpush1.msra.mxu0 0.0
  %2759 = vmatprep.subr.mxu0 0.0
  %2760 = vmatpush1.msra.mxu0 0.0
  %2761 = vmatprep.subr.mxu0 0.0
  %2762 = vmatpush1.msra.mxu0 0.0
  %2763 = vmatprep.subr.mxu0 0.0
  %2764 = vmatpush1.msra.mxu0 0.0
  %2765 = vmatprep.subr.mxu0 0.0
  %2766 = vmatpush1.msra.mxu0 0.0
  %2767 = vmatprep.subr.mxu0 0.0
  %2768 = vmatpush1.msra.mxu0 0.0
  %2769 = vmatprep.subr.mxu0 0.0
  %2770 = vmatpush1.msra.mxu0 0.0
  %2771 = vmatprep.subr.mxu0 0.0
  %2772 = vmatpush1.msra.mxu0 0.0
  %2773 = vmatprep.mubr.f32.mxu0 0.0
  %2774 = vmatmul.mubr.f32.gmra.mrb[0].mxu0 %v2704
  %v2775 = vpop.f32.mrb[0].mxu0
  %v2776 = vadd.f32 %v2702, %v2775
  %v2777 = vpop.f32.mrb[0].mxu0
  %2778 = vmatprep.mubr.f32.mxu0 0.0
  %2779 = vmatmul.mubr.f32.gmra.mrb[0].mxu0 %v2707
  %v2780 = vpop.f32.mrb[0].mxu0
  %v2781 = vadd.f32 %v2702, %v2780
  %v2782 = vpop.f32.mrb[0].mxu0
  %2783 = vdwg.mxu0
  %2786 = vrot.lane.b32.xlu0 %v2776, 112
  %v2787 = vpop.permute.xlu0 %2786
  %2788 = vrot.lane.b32.xlu0 %v2781, 112
  %v2789 = vpop.permute.xlu0 %2788
  %2790 = vrot.lane.b32.xlu0 %v2776, 96
  %v2791 = vpop.permute.xlu0 %2790
  %2792 = vrot.lane.b32.xlu0 %v2781, 96
  %v2793 = vpop.permute.xlu0 %2792
  %v2794 = vsel %vm137, %v2776, 0
  %v2796 = vsel %vm137, %v2781, 0
  %v2798 = vsel %vm137, %v2791, 0
  %v2800 = vsel %vm137, %v2793, 0
  %2802 = vmatprep.subr.mxu0 0.0
  %2803 = vmatpush1.xpose.msra.mxu0 %v2798
  %2804 = vmatprep.subr.mxu0 0.0
  %2805 = vmatpush1.xpose.msra.mxu0 %v2800
  %2806 = vmatprep.subr.mxu0 0.0
  %2807 = vmatpush1.xpose.msra.mxu0 0.0
  %2808 = vmatprep.subr.mxu0 0.0
  %2809 = vmatpush1.xpose.msra.mxu0 0.0
  %2810 = vmatprep.subr.mxu0 0.0
  %2811 = vmatpush1.xpose.msra.mxu0 0.0
  %2812 = vmatprep.subr.mxu0 0.0
  %2813 = vmatpush1.xpose.msra.mxu0 0.0
  %2814 = vmatprep.subr.mxu0 0.0
  %2815 = vmatpush1.xpose.msra.mxu0 0.0
  %2816 = vmatprep.subr.mxu0 0.0
  %2817 = vmatpush1.xpose.msra.mxu0 0.0
  %2818 = vmatprep.subr.mxu0 0.0
  %2819 = vmatpush1.xpose.msra.mxu0 0.0
  %2820 = vmatprep.subr.mxu0 0.0
  %2821 = vmatpush1.xpose.msra.mxu0 0.0
  %2822 = vmatprep.subr.mxu0 0.0
  %2823 = vmatpush1.xpose.msra.mxu0 0.0
  %2824 = vmatprep.subr.mxu0 0.0
  %2825 = vmatpush1.xpose.msra.mxu0 0.0
  %2826 = vmatprep.subr.mxu0 0.0
  %2827 = vmatpush1.xpose.msra.mxu0 0.0
  %2828 = vmatprep.subr.mxu0 0.0
  %2829 = vmatpush1.xpose.msra.mxu0 0.0
  %2830 = vmatprep.subr.mxu0 0.0
  %2831 = vmatpush1.xpose.msra.mxu0 0.0
  %2832 = vmatprep.subr.mxu0 0.0
  %2833 = vmatpush1.xpose.msra.mxu0 0.0
  %2834 = vmatprep.subr.mxu0 0.0
  %2835 = vmatpush1.xpose.msra.mxu0 0.0
  %2836 = vmatprep.subr.mxu0 0.0
  %2837 = vmatpush1.xpose.msra.mxu0 0.0
  %2838 = vmatprep.subr.mxu0 0.0
  %2839 = vmatpush1.xpose.msra.mxu0 0.0
  %2840 = vmatprep.subr.mxu0 0.0
  %2841 = vmatpush1.xpose.msra.mxu0 0.0
  %2842 = vmatprep.subr.mxu0 0.0
  %2843 = vmatpush1.xpose.msra.mxu0 0.0
  %2844 = vmatprep.subr.mxu0 0.0
  %2845 = vmatpush1.xpose.msra.mxu0 0.0
  %2846 = vmatprep.subr.mxu0 0.0
  %2847 = vmatpush1.xpose.msra.mxu0 0.0
  %2848 = vmatprep.subr.mxu0 0.0
  %2849 = vmatpush1.xpose.msra.mxu0 0.0
  %2850 = vmatprep.subr.mxu0 0.0
  %2851 = vmatpush1.xpose.msra.mxu0 0.0
  %2852 = vmatprep.subr.mxu0 0.0
  %2853 = vmatpush1.xpose.msra.mxu0 0.0
  %2854 = vmatprep.subr.mxu0 0.0
  %2855 = vmatpush1.xpose.msra.mxu0 0.0
  %2856 = vmatprep.subr.mxu0 0.0
  %2857 = vmatpush1.xpose.msra.mxu0 0.0
  %2858 = vmatprep.subr.mxu0 0.0
  %2859 = vmatpush1.xpose.msra.mxu0 0.0
  %2860 = vmatprep.subr.mxu0 0.0
  %2861 = vmatpush1.xpose.msra.mxu0 0.0
  %2862 = vmatprep.subr.mxu0 0.0
  %2863 = vmatpush1.xpose.msra.mxu0 0.0
  %2864 = vmatprep.subr.mxu0 0.0
  %2865 = vmatpush1.xpose.msra.mxu0 0.0
  %2866 = vmatprep.mubr.f32.mxu0 0.0
  %2867 = vmatmul.mubr.f32.gmra.mrb[0].mxu0 %v2794
  %v2868 = vpop.f32.mrb[0].mxu0
  %v2869 = vadd.f32 %v1795, %v2868
  %v2870 = vpop.f32.mrb[0].mxu0
  %2871 = vmatprep.mubr.f32.mxu0 0.0
  %2872 = vmatmul.mubr.f32.gmra.mrb[0].mxu0 %v2796
  %v2873 = vpop.f32.mrb[0].mxu0
  %v2874 = vadd.f32 %v1796, %v2873
  %v2875 = vpop.f32.mrb[0].mxu0
  %2876 = vdwg.mxu0
  %2877 = vrot.lane.b32.xlu0 %v2787, 96
  %v2878 = vpop.permute.xlu0 %2877
  %2879 = vrot.lane.b32.xlu0 %v2789, 96
  %v2880 = vpop.permute.xlu0 %2879
  %v2881 = vsel %vm137, %v2787, 0
  %v2883 = vsel %vm137, %v2789, 0
  %v2885 = vsel %vm137, %v2878, 0
  %v2887 = vsel %vm137, %v2880, 0
  %2889 = vmatprep.subr.mxu0 0.0
  %2890 = vmatpush1.xpose.msra.mxu0 %v2885
  %2891 = vmatprep.subr.mxu0 0.0
  %2892 = vmatpush1.xpose.msra.mxu0 %v2887
  %2893 = vmatprep.subr.mxu0 0.0
  %2894 = vmatpush1.xpose.msra.mxu0 0.0
  %2895 = vmatprep.subr.mxu0 0.0
  %2896 = vmatpush1.xpose.msra.mxu0 0.0
  %2897 = vmatprep.subr.mxu0 0.0
  %2898 = vmatpush1.xpose.msra.mxu0 0.0
  %2899 = vmatprep.subr.mxu0 0.0
  %2900 = vmatpush1.xpose.msra.mxu0 0.0
  %2901 = vmatprep.subr.mxu0 0.0
  %2902 = vmatpush1.xpose.msra.mxu0 0.0
  %2903 = vmatprep.subr.mxu0 0.0
  %2904 = vmatpush1.xpose.msra.mxu0 0.0
  %2905 = vmatprep.subr.mxu0 0.0
  %2906 = vmatpush1.xpose.msra.mxu0 0.0
  %2907 = vmatprep.subr.mxu0 0.0
  %2908 = vmatpush1.xpose.msra.mxu0 0.0
  %2909 = vmatprep.subr.mxu0 0.0
  %2910 = vmatpush1.xpose.msra.mxu0 0.0
  %2911 = vmatprep.subr.mxu0 0.0
  %2912 = vmatpush1.xpose.msra.mxu0 0.0
  %2913 = vmatprep.subr.mxu0 0.0
  %2914 = vmatpush1.xpose.msra.mxu0 0.0
  %2915 = vmatprep.subr.mxu0 0.0
  %2916 = vmatpush1.xpose.msra.mxu0 0.0
  %2917 = vmatprep.subr.mxu0 0.0
  %2918 = vmatpush1.xpose.msra.mxu0 0.0
  %2919 = vmatprep.subr.mxu0 0.0
  %2920 = vmatpush1.xpose.msra.mxu0 0.0
  %2921 = vmatprep.subr.mxu0 0.0
  %2922 = vmatpush1.xpose.msra.mxu0 0.0
  %2923 = vmatprep.subr.mxu0 0.0
  %2924 = vmatpush1.xpose.msra.mxu0 0.0
  %2925 = vmatprep.subr.mxu0 0.0
  %2926 = vmatpush1.xpose.msra.mxu0 0.0
  %2927 = vmatprep.subr.mxu0 0.0
  %2928 = vmatpush1.xpose.msra.mxu0 0.0
  %2929 = vmatprep.subr.mxu0 0.0
  %2930 = vmatpush1.xpose.msra.mxu0 0.0
  %2931 = vmatprep.subr.mxu0 0.0
  %2932 = vmatpush1.xpose.msra.mxu0 0.0
  %2933 = vmatprep.subr.mxu0 0.0
  %2934 = vmatpush1.xpose.msra.mxu0 0.0
  %2935 = vmatprep.subr.mxu0 0.0
  %2936 = vmatpush1.xpose.msra.mxu0 0.0
  %2937 = vmatprep.subr.mxu0 0.0
  %2938 = vmatpush1.xpose.msra.mxu0 0.0
  %2939 = vmatprep.subr.mxu0 0.0
  %2940 = vmatpush1.xpose.msra.mxu0 0.0
  %2941 = vmatprep.subr.mxu0 0.0
  %2942 = vmatpush1.xpose.msra.mxu0 0.0
  %2943 = vmatprep.subr.mxu0 0.0
  %2944 = vmatpush1.xpose.msra.mxu0 0.0
  %2945 = vmatprep.subr.mxu0 0.0
  %2946 = vmatpush1.xpose.msra.mxu0 0.0
  %2947 = vmatprep.subr.mxu0 0.0
  %2948 = vmatpush1.xpose.msra.mxu0 0.0
  %2949 = vmatprep.subr.mxu0 0.0
  %2950 = vmatpush1.xpose.msra.mxu0 0.0
  %2951 = vmatprep.subr.mxu0 0.0
  %2952 = vmatpush1.xpose.msra.mxu0 0.0
  %2953 = vmatprep.mubr.f32.mxu0 0.0
  %2954 = vmatmul.mubr.f32.gmra.mrb[0].mxu0 %v2881
  %v2955 = vpop.f32.mrb[0].mxu0
  %v2956 = vadd.f32 %v1795, %v2955
  %v2957 = vpop.f32.mrb[0].mxu0
  %2958 = vmatprep.mubr.f32.mxu0 0.0
  %2959 = vmatmul.mubr.f32.gmra.mrb[0].mxu0 %v2883
  %v2960 = vpop.f32.mrb[0].mxu0
  %v2961 = vadd.f32 %v1796, %v2960
  %v2962 = vpop.f32.mrb[0].mxu0
  %2963 = vdwg.mxu0
  %v2964 = vsel %vm137, %v2869, -inf
  %2965 = vmax.xlane.f32.xlu0 %v2964
  %v2966 = vpop.xlane.xlu0 %2965
  %v2967 = vsel %vm137, %v2874, -inf
  %2968 = vmax.xlane.f32.xlu0 %v2967
  %v2969 = vpop.xlane.xlu0 %2968
  %v2970 = vsel %vm137, %v2956, -inf
  %2971 = vmax.xlane.f32.xlu0 %v2970
  %v2972 = vpop.xlane.xlu0 %2971
  %v2973 = vsel %vm137, %v2961, -inf
  %2974 = vmax.xlane.f32.xlu0 %v2973
  %v2975 = vpop.xlane.xlu0 %2974
  %v2976 = vsub.f32 %v2869, %v2966
  %v2977 = vsub.f32 %v2874, %v2969
  %v2978 = vsub.f32 %v2956, %v2972
  %v2979 = vsub.f32 %v2961, %v2975
  %v2980 = vmul.f32 %v2976, 1.442695
  %v2981 = vpow.pop %v2980
  %v2982 = vmul.f32 %v2977, 1.442695
  %v2983 = vpow.pop %v2982
  %v2984 = vmul.f32 %v2978, 1.442695
  %v2985 = vpow.pop %v2984
  %v2986 = vmul.f32 %v2979, 1.442695
  %v2987 = vpow.pop %v2986
  %v2988 = vsel %vm137, %v2981, 0.0
  %2989 = vadd.xlane.f32.xlu0 %v2988
  %v2990 = vpop.xlane.xlu0 %2989
  %v2991 = vsel %vm137, %v2983, 0.0
  %2992 = vadd.xlane.f32.xlu0 %v2991
  %v2993 = vpop.xlane.xlu0 %2992
  %v2994 = vsel %vm137, %v2985, 0.0
  %2995 = vadd.xlane.f32.xlu0 %v2994
  %v2996 = vpop.xlane.xlu0 %2995
  %v2997 = vsel %vm137, %v2987, 0.0
  %2998 = vadd.xlane.f32.xlu0 %v2997
  %v2999 = vpop.xlane.xlu0 %2998
  %v3000 = vrcp.pop %v2990
  %v3001 = vrcp.pop %v2993
  %v3002 = vrcp.pop %v2996
  %v3003 = vrcp.pop %v2999
  %v3004 = vmul.f32 %v2981, %v3000
  %v3005 = vmul.f32 %v2983, %v3001
  %v3006 = vmul.f32 %v2985, %v3002
  %v3007 = vmul.f32 %v2987, %v3003
  %3008 = vrot.lane.b32.xlu0 %v2776, 64
  %v3009 = vpop.permute.xlu0 %3008
  %3010 = vrot.lane.b32.xlu0 %v2781, 64
  %v3011 = vpop.permute.xlu0 %3010
  %v3015 = vsel %vm137, %v3004, 0
  %v3018 = vsel %vm137, %v3005, 0
  %3020 = vmatprep.subr.mxu0 0.0
  %3021 = vmatpush1.msra.mxu0 %v3009
  %3022 = vmatprep.subr.mxu0 0.0
  %3023 = vmatpush1.msra.mxu0 %v3011
  %3024 = vmatprep.subr.mxu0 0.0
  %3025 = vmatpush1.msra.mxu0 0.0
  %3026 = vmatprep.subr.mxu0 0.0
  %3027 = vmatpush1.msra.mxu0 0.0
  %3028 = vmatprep.subr.mxu0 0.0
  %3029 = vmatpush1.msra.mxu0 0.0
  %3030 = vmatprep.subr.mxu0 0.0
  %3031 = vmatpush1.msra.mxu0 0.0
  %3032 = vmatprep.subr.mxu0 0.0
  %3033 = vmatpush1.msra.mxu0 0.0
  %3034 = vmatprep.subr.mxu0 0.0
  %3035 = vmatpush1.msra.mxu0 0.0
  %3036 = vmatprep.subr.mxu0 0.0
  %3037 = vmatpush1.msra.mxu0 0.0
  %3038 = vmatprep.subr.mxu0 0.0
  %3039 = vmatpush1.msra.mxu0 0.0
  %3040 = vmatprep.subr.mxu0 0.0
  %3041 = vmatpush1.msra.mxu0 0.0
  %3042 = vmatprep.subr.mxu0 0.0
  %3043 = vmatpush1.msra.mxu0 0.0
  %3044 = vmatprep.subr.mxu0 0.0
  %3045 = vmatpush1.msra.mxu0 0.0
  %3046 = vmatprep.subr.mxu0 0.0
  %3047 = vmatpush1.msra.mxu0 0.0
  %3048 = vmatprep.subr.mxu0 0.0
  %3049 = vmatpush1.msra.mxu0 0.0
  %3050 = vmatprep.subr.mxu0 0.0
  %3051 = vmatpush1.msra.mxu0 0.0
  %3052 = vmatprep.subr.mxu0 0.0
  %3053 = vmatpush1.msra.mxu0 0.0
  %3054 = vmatprep.subr.mxu0 0.0
  %3055 = vmatpush1.msra.mxu0 0.0
  %3056 = vmatprep.subr.mxu0 0.0
  %3057 = vmatpush1.msra.mxu0 0.0
  %3058 = vmatprep.subr.mxu0 0.0
  %3059 = vmatpush1.msra.mxu0 0.0
  %3060 = vmatprep.subr.mxu0 0.0
  %3061 = vmatpush1.msra.mxu0 0.0
  %3062 = vmatprep.subr.mxu0 0.0
  %3063 = vmatpush1.msra.mxu0 0.0
  %3064 = vmatprep.subr.mxu0 0.0
  %3065 = vmatpush1.msra.mxu0 0.0
  %3066 = vmatprep.subr.mxu0 0.0
  %3067 = vmatpush1.msra.mxu0 0.0
  %3068 = vmatprep.subr.mxu0 0.0
  %3069 = vmatpush1.msra.mxu0 0.0
  %3070 = vmatprep.subr.mxu0 0.0
  %3071 = vmatpush1.msra.mxu0 0.0
  %3072 = vmatprep.subr.mxu0 0.0
  %3073 = vmatpush1.msra.mxu0 0.0
  %3074 = vmatprep.subr.mxu0 0.0
  %3075 = vmatpush1.msra.mxu0 0.0
  %3076 = vmatprep.subr.mxu0 0.0
  %3077 = vmatpush1.msra.mxu0 0.0
  %3078 = vmatprep.subr.mxu0 0.0
  %3079 = vmatpush1.msra.mxu0 0.0
  %3080 = vmatprep.subr.mxu0 0.0
  %3081 = vmatpush1.msra.mxu0 0.0
  %3082 = vmatprep.subr.mxu0 0.0
  %3083 = vmatpush1.msra.mxu0 0.0
  %3084 = vmatprep.mubr.f32.mxu0 0.0
  %3085 = vmatmul.mubr.f32.gmra.mrb[0].mxu0 %v3015
  %v3086 = vpop.f32.mrb[0].mxu0
  %v3087 = vadd.f32 0.0, %v3086
  %v3088 = vpop.f32.mrb[0].mxu0
  %3089 = vmatprep.mubr.f32.mxu0 0.0
  %3090 = vmatmul.mubr.f32.gmra.mrb[0].mxu0 %v3018
  %v3091 = vpop.f32.mrb[0].mxu0
  %v3092 = vadd.f32 0.0, %v3091
  %v3093 = vpop.f32.mrb[0].mxu0
  %3094 = vdwg.mxu0
  %3095 = vrot.lane.b32.xlu0 %v2787, 64
  %v3096 = vpop.permute.xlu0 %3095
  %3097 = vrot.lane.b32.xlu0 %v2789, 64
  %v3098 = vpop.permute.xlu0 %3097
  %v3102 = vsel %vm137, %v3006, 0
  %v3105 = vsel %vm137, %v3007, 0
  %3107 = vmatprep.subr.mxu0 0.0
  %3108 = vmatpush1.msra.mxu0 %v3096
  %3109 = vmatprep.subr.mxu0 0.0
  %3110 = vmatpush1.msra.mxu0 %v3098
  %3111 = vmatprep.subr.mxu0 0.0
  %3112 = vmatpush1.msra.mxu0 0.0
  %3113 = vmatprep.subr.mxu0 0.0
  %3114 = vmatpush1.msra.mxu0 0.0
  %3115 = vmatprep.subr.mxu0 0.0
  %3116 = vmatpush1.msra.mxu0 0.0
  %3117 = vmatprep.subr.mxu0 0.0
  %3118 = vmatpush1.msra.mxu0 0.0
  %3119 = vmatprep.subr.mxu0 0.0
  %3120 = vmatpush1.msra.mxu0 0.0
  %3121 = vmatprep.subr.mxu0 0.0
  %3122 = vmatpush1.msra.mxu0 0.0
  %3123 = vmatprep.subr.mxu0 0.0
  %3124 = vmatpush1.msra.mxu0 0.0
  %3125 = vmatprep.subr.mxu0 0.0
  %3126 = vmatpush1.msra.mxu0 0.0
  %3127 = vmatprep.subr.mxu0 0.0
  %3128 = vmatpush1.msra.mxu0 0.0
  %3129 = vmatprep.subr.mxu0 0.0
  %3130 = vmatpush1.msra.mxu0 0.0
  %3131 = vmatprep.subr.mxu0 0.0
  %3132 = vmatpush1.msra.mxu0 0.0
  %3133 = vmatprep.subr.mxu0 0.0
  %3134 = vmatpush1.msra.mxu0 0.0
  %3135 = vmatprep.subr.mxu0 0.0
  %3136 = vmatpush1.msra.mxu0 0.0
  %3137 = vmatprep.subr.mxu0 0.0
  %3138 = vmatpush1.msra.mxu0 0.0
  %3139 = vmatprep.subr.mxu0 0.0
  %3140 = vmatpush1.msra.mxu0 0.0
  %3141 = vmatprep.subr.mxu0 0.0
  %3142 = vmatpush1.msra.mxu0 0.0
  %3143 = vmatprep.subr.mxu0 0.0
  %3144 = vmatpush1.msra.mxu0 0.0
  %3145 = vmatprep.subr.mxu0 0.0
  %3146 = vmatpush1.msra.mxu0 0.0
  %3147 = vmatprep.subr.mxu0 0.0
  %3148 = vmatpush1.msra.mxu0 0.0
  %3149 = vmatprep.subr.mxu0 0.0
  %3150 = vmatpush1.msra.mxu0 0.0
  %3151 = vmatprep.subr.mxu0 0.0
  %3152 = vmatpush1.msra.mxu0 0.0
  %3153 = vmatprep.subr.mxu0 0.0
  %3154 = vmatpush1.msra.mxu0 0.0
  %3155 = vmatprep.subr.mxu0 0.0
  %3156 = vmatpush1.msra.mxu0 0.0
  %3157 = vmatprep.subr.mxu0 0.0
  %3158 = vmatpush1.msra.mxu0 0.0
  %3159 = vmatprep.subr.mxu0 0.0
  %3160 = vmatpush1.msra.mxu0 0.0
  %3161 = vmatprep.subr.mxu0 0.0
  %3162 = vmatpush1.msra.mxu0 0.0
  %3163 = vmatprep.subr.mxu0 0.0
  %3164 = vmatpush1.msra.mxu0 0.0
  %3165 = vmatprep.subr.mxu0 0.0
  %3166 = vmatpush1.msra.mxu0 0.0
  %3167 = vmatprep.subr.mxu0 0.0
  %3168 = vmatpush1.msra.mxu0 0.0
  %3169 = vmatprep.subr.mxu0 0.0
  %3170 = vmatpush1.msra.mxu0 0.0
  %3171 = vmatprep.mubr.f32.mxu0 0.0
  %3172 = vmatmul.mubr.f32.gmra.mrb[0].mxu0 %v3102
  %v3173 = vpop.f32.mrb[0].mxu0
  %v3174 = vadd.f32 0.0, %v3173
  %v3175 = vpop.f32.mrb[0].mxu0
  %3176 = vmatprep.mubr.f32.mxu0 0.0
  %3177 = vmatmul.mubr.f32.gmra.mrb[0].mxu0 %v3105
  %v3178 = vpop.f32.mrb[0].mxu0
  %v3179 = vadd.f32 0.0, %v3178
  %v3180 = vpop.f32.mrb[0].mxu0
  %3181 = vdwg.mxu0
  %3184 = vrot.lane.b32.xlu0 %v3174, 16
  %v3185 = vpop.permute.xlu0 %3184
  %3186 = vrot.lane.b32.xlu0 %v3179, 16
  %v3187 = vpop.permute.xlu0 %3186
  %v3190 = vsel %vm137, %v3087, %v3185
  %v3191 = vsel %vm137, %v3092, %v3187
  %v3192 = vlaneseq
  %v3193 = vshrl.u32 %v3192, 7
  %v3194 = vsub.s32 1, %v3193
  %v3195 = vrot.slane %v2698, %v3194
  %3200 = vrot.lane.b32.xlu0 %v2680, 32
  %v3201 = vpop.permute.xlu0 %3200
  %3202 = vrot.lane.b32.xlu0 %v2682, 32
  %v3203 = vpop.permute.xlu0 %3202
  %3204 = vrot.lane.b32.xlu0 %v2684, 32
  %v3205 = vpop.permute.xlu0 %3204
  %3206 = vrot.lane.b32.xlu0 %v2686, 32
  %v3207 = vpop.permute.xlu0 %3206
  %v3213 = vsel %vm45, %v3190, 0
  %v3216 = vsel %vm45, %v3191, 0
  %3218 = vmatprep.subr.mxu0 0.0
  %3219 = vmatpush1.msra.mxu0 %v3201
  %3220 = vmatprep.subr.mxu0 0.0
  %3221 = vmatpush1.msra.mxu0 %v3203
  %3222 = vmatprep.subr.mxu0 0.0
  %3223 = vmatpush1.msra.mxu0 %v3205
  %3224 = vmatprep.subr.mxu0 0.0
  %3225 = vmatpush1.msra.mxu0 %v3207
  %3226 = vmatprep.subr.mxu0 0.0
  %3227 = vmatpush1.msra.mxu0 0.0
  %3228 = vmatprep.subr.mxu0 0.0
  %3229 = vmatpush1.msra.mxu0 0.0
  %3230 = vmatprep.subr.mxu0 0.0
  %3231 = vmatpush1.msra.mxu0 0.0
  %3232 = vmatprep.subr.mxu0 0.0
  %3233 = vmatpush1.msra.mxu0 0.0
  %3234 = vmatprep.subr.mxu0 0.0
  %3235 = vmatpush1.msra.mxu0 0.0
  %3236 = vmatprep.subr.mxu0 0.0
  %3237 = vmatpush1.msra.mxu0 0.0
  %3238 = vmatprep.subr.mxu0 0.0
  %3239 = vmatpush1.msra.mxu0 0.0
  %3240 = vmatprep.subr.mxu0 0.0
  %3241 = vmatpush1.msra.mxu0 0.0
  %3242 = vmatprep.subr.mxu0 0.0
  %3243 = vmatpush1.msra.mxu0 0.0
  %3244 = vmatprep.subr.mxu0 0.0
  %3245 = vmatpush1.msra.mxu0 0.0
  %3246 = vmatprep.subr.mxu0 0.0
  %3247 = vmatpush1.msra.mxu0 0.0
  %3248 = vmatprep.subr.mxu0 0.0
  %3249 = vmatpush1.msra.mxu0 0.0
  %3250 = vmatprep.subr.mxu0 0.0
  %3251 = vmatpush1.msra.mxu0 0.0
  %3252 = vmatprep.subr.mxu0 0.0
  %3253 = vmatpush1.msra.mxu0 0.0
  %3254 = vmatprep.subr.mxu0 0.0
  %3255 = vmatpush1.msra.mxu0 0.0
  %3256 = vmatprep.subr.mxu0 0.0
  %3257 = vmatpush1.msra.mxu0 0.0
  %3258 = vmatprep.subr.mxu0 0.0
  %3259 = vmatpush1.msra.mxu0 0.0
  %3260 = vmatprep.subr.mxu0 0.0
  %3261 = vmatpush1.msra.mxu0 0.0
  %3262 = vmatprep.subr.mxu0 0.0
  %3263 = vmatpush1.msra.mxu0 0.0
  %3264 = vmatprep.subr.mxu0 0.0
  %3265 = vmatpush1.msra.mxu0 0.0
  %3266 = vmatprep.subr.mxu0 0.0
  %3267 = vmatpush1.msra.mxu0 0.0
  %3268 = vmatprep.subr.mxu0 0.0
  %3269 = vmatpush1.msra.mxu0 0.0
  %3270 = vmatprep.subr.mxu0 0.0
  %3271 = vmatpush1.msra.mxu0 0.0
  %3272 = vmatprep.subr.mxu0 0.0
  %3273 = vmatpush1.msra.mxu0 0.0
  %3274 = vmatprep.subr.mxu0 0.0
  %3275 = vmatpush1.msra.mxu0 0.0
  %3276 = vmatprep.subr.mxu0 0.0
  %3277 = vmatpush1.msra.mxu0 0.0
  %3278 = vmatprep.subr.mxu0 0.0
  %3279 = vmatpush1.msra.mxu0 0.0
  %3280 = vmatprep.subr.mxu0 0.0
  %3281 = vmatpush1.msra.mxu0 0.0
  %3282 = vmatprep.mubr.f32.mxu0 0.0
  %3283 = vmatmul.mubr.f32.gmra.mrb[0].mxu0 %v3213
  %v3284 = vpop.f32.mrb[0].mxu0
  %v3285 = vadd.f32 %v3195, %v3284
  %v3286 = vpop.f32.mrb[0].mxu0
  %3287 = vmatprep.mubr.f32.mxu0 0.0
  %3288 = vmatmul.mubr.f32.gmra.mrb[0].mxu0 %v3216
  %v3289 = vpop.f32.mrb[0].mxu0
  %v3290 = vadd.f32 %v3195, %v3289
  %v3291 = vpop.f32.mrb[0].mxu0
  %3292 = vdwg.mxu0
  %v3293 = vadd.f32 %v2677, %v3285
  %v3294 = vadd.f32 %v2678, %v3290
  %v3295 = vsel %vm45, %v3293, 0.0
  %3296 = vadd.xlane.f32.xlu0 %v3295
  %v3297 = vpop.xlane.xlu0 %3296
  %v3298 = vsel %vm45, %v3294, 0.0
  %3299 = vadd.xlane.f32.xlu0 %v3298
  %v3300 = vpop.xlane.xlu0 %3299
  %v3301 = vmul.f32 %v3297, %v645
  %v3302 = vmul.f32 %v3300, %v645
  %v3303 = vsub.f32 %v3293, %v3301
  %v3304 = vsub.f32 %v3294, %v3302
  %v3305 = vmul.f32 %v3303, %v3303
  %v3306 = vmul.f32 %v3304, %v3304
  %v3307 = vsel %vm45, %v3305, 0.0
  %3308 = vadd.xlane.f32.xlu0 %v3307
  %v3309 = vpop.xlane.xlu0 %3308
  %v3310 = vsel %vm45, %v3306, 0.0
  %3311 = vadd.xlane.f32.xlu0 %v3310
  %v3312 = vpop.xlane.xlu0 %3311
  %v3313 = vmul.f32 %v3309, %v645
  %v3314 = vmul.f32 %v3312, %v645
  %v3315 = vadd.f32 %v3313, 1e-12
  %v3316 = vadd.f32 %v3314, 1e-12
  %v3317 = vrsqrt.pop %v3315
  %v3318 = vrsqrt.pop %v3316
  %v3319 = vmul.f32 %v3303, %v3317
  %v3320 = vmul.f32 %v3304, %v3318
  %v3321 = vlaneseq
  %v3322 = vshrl.u32 %v3321, 7
  %v3323 = vsub.s32 2, %v3322
  %v3324 = vrot.slane %v2698, %v3323
  %v3325 = vmul.f32 %v3319, %v3324
  %v3326 = vmul.f32 %v3320, %v3324
  %v3327 = vlaneseq
  %v3328 = vshrl.u32 %v3327, 7
  %v3329 = vsub.s32 3, %v3328
  %v3330 = vrot.slane %v2698, %v3329
  %v3331 = vadd.f32 %v3325, %v3330
  %v3332 = vadd.f32 %v3326, %v3330
  %v3333 = vlaneseq
  %v3334 = vshrl.u32 %v3333, 7
  %v3335 = vsub.s32 4, %v3334
  %v3336 = vrot.slane %v2698, %v3335
  %v3338 = vsel %vm45, %v3331, 0
  %v3341 = vsel %vm45, %v3332, 0
  %3343 = vmatprep.subr.mxu0 0.0
  %3344 = vmatpush1.msra.mxu0 %v2681
  %3345 = vmatprep.subr.mxu0 0.0
  %3346 = vmatpush1.msra.mxu0 %v2683
  %3347 = vmatprep.subr.mxu0 0.0
  %3348 = vmatpush1.msra.mxu0 %v2685
  %3349 = vmatprep.subr.mxu0 0.0
  %3350 = vmatpush1.msra.mxu0 %v2687
  %3351 = vmatprep.subr.mxu0 0.0
  %3352 = vmatpush1.msra.mxu0 0.0
  %3353 = vmatprep.subr.mxu0 0.0
  %3354 = vmatpush1.msra.mxu0 0.0
  %3355 = vmatprep.subr.mxu0 0.0
  %3356 = vmatpush1.msra.mxu0 0.0
  %3357 = vmatprep.subr.mxu0 0.0
  %3358 = vmatpush1.msra.mxu0 0.0
  %3359 = vmatprep.subr.mxu0 0.0
  %3360 = vmatpush1.msra.mxu0 0.0
  %3361 = vmatprep.subr.mxu0 0.0
  %3362 = vmatpush1.msra.mxu0 0.0
  %3363 = vmatprep.subr.mxu0 0.0
  %3364 = vmatpush1.msra.mxu0 0.0
  %3365 = vmatprep.subr.mxu0 0.0
  %3366 = vmatpush1.msra.mxu0 0.0
  %3367 = vmatprep.subr.mxu0 0.0
  %3368 = vmatpush1.msra.mxu0 0.0
  %3369 = vmatprep.subr.mxu0 0.0
  %3370 = vmatpush1.msra.mxu0 0.0
  %3371 = vmatprep.subr.mxu0 0.0
  %3372 = vmatpush1.msra.mxu0 0.0
  %3373 = vmatprep.subr.mxu0 0.0
  %3374 = vmatpush1.msra.mxu0 0.0
  %3375 = vmatprep.subr.mxu0 0.0
  %3376 = vmatpush1.msra.mxu0 0.0
  %3377 = vmatprep.subr.mxu0 0.0
  %3378 = vmatpush1.msra.mxu0 0.0
  %3379 = vmatprep.subr.mxu0 0.0
  %3380 = vmatpush1.msra.mxu0 0.0
  %3381 = vmatprep.subr.mxu0 0.0
  %3382 = vmatpush1.msra.mxu0 0.0
  %3383 = vmatprep.subr.mxu0 0.0
  %3384 = vmatpush1.msra.mxu0 0.0
  %3385 = vmatprep.subr.mxu0 0.0
  %3386 = vmatpush1.msra.mxu0 0.0
  %3387 = vmatprep.subr.mxu0 0.0
  %3388 = vmatpush1.msra.mxu0 0.0
  %3389 = vmatprep.subr.mxu0 0.0
  %3390 = vmatpush1.msra.mxu0 0.0
  %3391 = vmatprep.subr.mxu0 0.0
  %3392 = vmatpush1.msra.mxu0 0.0
  %3393 = vmatprep.subr.mxu0 0.0
  %3394 = vmatpush1.msra.mxu0 0.0
  %3395 = vmatprep.subr.mxu0 0.0
  %3396 = vmatpush1.msra.mxu0 0.0
  %3397 = vmatprep.subr.mxu0 0.0
  %3398 = vmatpush1.msra.mxu0 0.0
  %3399 = vmatprep.subr.mxu0 0.0
  %3400 = vmatpush1.msra.mxu0 0.0
  %3401 = vmatprep.subr.mxu0 0.0
  %3402 = vmatpush1.msra.mxu0 0.0
  %3403 = vmatprep.subr.mxu0 0.0
  %3404 = vmatpush1.msra.mxu0 0.0
  %3405 = vmatprep.subr.mxu0 0.0
  %3406 = vmatpush1.msra.mxu0 0.0
  %3407 = vmatprep.mubr.f32.mxu0 0.0
  %3408 = vmatmul.mubr.f32.gmra.mrb[0].mxu0 %v3338
  %v3409 = vpop.f32.mrb[0].mxu0
  %v3410 = vadd.f32 %v3336, %v3409
  %v3411 = vpop.f32.mrb[0].mxu0
  %3412 = vmatprep.mubr.f32.mxu0 0.0
  %3413 = vmatmul.mubr.f32.gmra.mrb[0].mxu0 %v3341
  %v3414 = vpop.f32.mrb[0].mxu0
  %v3415 = vadd.f32 %v3336, %v3414
  %v3416 = vpop.f32.mrb[0].mxu0
  %3417 = vdwg.mxu0
  %v3418 = vmul.f32 %v3410, %v3410
  %v3419 = vmul.f32 %v3415, %v3415
  %v3420 = vmul.f32 %v3410, %v3418
  %v3421 = vmul.f32 %v3415, %v3419
  %v3422 = vmul.f32 %v3420, 0.044715
  %v3423 = vmul.f32 %v3421, 0.044715
  %v3424 = vadd.f32 %v3410, %v3422
  %v3425 = vadd.f32 %v3415, %v3423
  %v3426 = vmul.f32 %v3424, 0.7978846
  %v3427 = vmul.f32 %v3425, 0.7978846
  %v3428 = vtanh.pop %v3426
  %v3429 = vtanh.pop %v3427
  %v3430 = vadd.f32 %v3428, 1.0
  %v3431 = vadd.f32 %v3429, 1.0
  %v3432 = vmul.f32 %v3430, 0.5
  %v3433 = vmul.f32 %v3431, 0.5
  %v3434 = vmul.f32 %v3410, %v3432
  %v3435 = vmul.f32 %v3415, %v3433
  %v3436 = vlaneseq
  %v3437 = vshrl.u32 %v3436, 7
  %v3438 = vsub.s32 5, %v3437
  %v3439 = vrot.slane %v2698, %v3438
  %v3441 = vsel %vm785, %v3434, 0
  %v3444 = vsel %vm785, %v3435, 0
  %3446 = vmatprep.subr.mxu0 0.0
  %3447 = vmatpush1.msra.mxu0 %v2689
  %3448 = vmatprep.subr.mxu0 0.0
  %3449 = vmatpush1.msra.mxu0 %v2690
  %3450 = vmatprep.subr.mxu0 0.0
  %3451 = vmatpush1.msra.mxu0 %v2691
  %3452 = vmatprep.subr.mxu0 0.0
  %3453 = vmatpush1.msra.mxu0 %v2692
  %3454 = vmatprep.subr.mxu0 0.0
  %3455 = vmatpush1.msra.mxu0 %v2693
  %3456 = vmatprep.subr.mxu0 0.0
  %3457 = vmatpush1.msra.mxu0 %v2694
  %3458 = vmatprep.subr.mxu0 0.0
  %3459 = vmatpush1.msra.mxu0 %v2695
  %3460 = vmatprep.subr.mxu0 0.0
  %3461 = vmatpush1.msra.mxu0 %v2696
  %3462 = vmatprep.subr.mxu0 0.0
  %3463 = vmatpush1.msra.mxu0 0.0
  %3464 = vmatprep.subr.mxu0 0.0
  %3465 = vmatpush1.msra.mxu0 0.0
  %3466 = vmatprep.subr.mxu0 0.0
  %3467 = vmatpush1.msra.mxu0 0.0
  %3468 = vmatprep.subr.mxu0 0.0
  %3469 = vmatpush1.msra.mxu0 0.0
  %3470 = vmatprep.subr.mxu0 0.0
  %3471 = vmatpush1.msra.mxu0 0.0
  %3472 = vmatprep.subr.mxu0 0.0
  %3473 = vmatpush1.msra.mxu0 0.0
  %3474 = vmatprep.subr.mxu0 0.0
  %3475 = vmatpush1.msra.mxu0 0.0
  %3476 = vmatprep.subr.mxu0 0.0
  %3477 = vmatpush1.msra.mxu0 0.0
  %3478 = vmatprep.subr.mxu0 0.0
  %3479 = vmatpush1.msra.mxu0 0.0
  %3480 = vmatprep.subr.mxu0 0.0
  %3481 = vmatpush1.msra.mxu0 0.0
  %3482 = vmatprep.subr.mxu0 0.0
  %3483 = vmatpush1.msra.mxu0 0.0
  %3484 = vmatprep.subr.mxu0 0.0
  %3485 = vmatpush1.msra.mxu0 0.0
  %3486 = vmatprep.subr.mxu0 0.0
  %3487 = vmatpush1.msra.mxu0 0.0
  %3488 = vmatprep.subr.mxu0 0.0
  %3489 = vmatpush1.msra.mxu0 0.0
  %3490 = vmatprep.subr.mxu0 0.0
  %3491 = vmatpush1.msra.mxu0 0.0
  %3492 = vmatprep.subr.mxu0 0.0
  %3493 = vmatpush1.msra.mxu0 0.0
  %3494 = vmatprep.subr.mxu0 0.0
  %3495 = vmatpush1.msra.mxu0 0.0
  %3496 = vmatprep.subr.mxu0 0.0
  %3497 = vmatpush1.msra.mxu0 0.0
  %3498 = vmatprep.subr.mxu0 0.0
  %3499 = vmatpush1.msra.mxu0 0.0
  %3500 = vmatprep.subr.mxu0 0.0
  %3501 = vmatpush1.msra.mxu0 0.0
  %3502 = vmatprep.subr.mxu0 0.0
  %3503 = vmatpush1.msra.mxu0 0.0
  %3504 = vmatprep.subr.mxu0 0.0
  %3505 = vmatpush1.msra.mxu0 0.0
  %3506 = vmatprep.subr.mxu0 0.0
  %3507 = vmatpush1.msra.mxu0 0.0
  %3508 = vmatprep.subr.mxu0 0.0
  %3509 = vmatpush1.msra.mxu0 0.0
  %3510 = vmatprep.mubr.f32.mxu0 0.0
  %3511 = vmatmul.mubr.f32.gmra.mrb[0].mxu0 %v3441
  %v3512 = vpop.f32.mrb[0].mxu0
  %v3513 = vadd.f32 %v3439, %v3512
  %v3514 = vpop.f32.mrb[0].mxu0
  %3515 = vmatprep.mubr.f32.mxu0 0.0
  %3516 = vmatmul.mubr.f32.gmra.mrb[0].mxu0 %v3444
  %v3517 = vpop.f32.mrb[0].mxu0
  %v3518 = vadd.f32 %v3439, %v3517
  %v3519 = vpop.f32.mrb[0].mxu0
  %3520 = vdwg.mxu0
  %v3521 = vadd.f32 %v3331, %v3513
  %v3522 = vadd.f32 %v3332, %v3518
  %v3523 = vsel %vm45, %v3521, 0.0
  %3524 = vadd.xlane.f32.xlu0 %v3523
  %v3525 = vpop.xlane.xlu0 %3524
  %v3526 = vsel %vm45, %v3522, 0.0
  %3527 = vadd.xlane.f32.xlu0 %v3526
  %v3528 = vpop.xlane.xlu0 %3527
  %v3529 = vmul.f32 %v3525, %v645
  %v3530 = vmul.f32 %v3528, %v645
  %v3531 = vsub.f32 %v3521, %v3529
  %v3532 = vsub.f32 %v3522, %v3530
  %v3533 = vmul.f32 %v3531, %v3531
  %v3534 = vmul.f32 %v3532, %v3532
  %v3535 = vsel %vm45, %v3533, 0.0
  %3536 = vadd.xlane.f32.xlu0 %v3535
  %v3537 = vpop.xlane.xlu0 %3536
  %v3538 = vsel %vm45, %v3534, 0.0
  %3539 = vadd.xlane.f32.xlu0 %v3538
  %v3540 = vpop.xlane.xlu0 %3539
  %v3541 = vmul.f32 %v3537, %v645
  %v3542 = vmul.f32 %v3540, %v645
  %v3543 = vadd.f32 %v3541, 1e-12
  %v3544 = vadd.f32 %v3542, 1e-12
  %v3545 = vrsqrt.pop %v3543
  %v3546 = vrsqrt.pop %v3544
  %v3547 = vmul.f32 %v3531, %v3545
  %v3548 = vmul.f32 %v3532, %v3546
  %v3549 = vlaneseq
  %v3550 = vshrl.u32 %v3549, 7
  %v3551 = vsub.s32 6, %v3550
  %v3552 = vrot.slane %v2698, %v3551
  %v3553 = vmul.f32 %v3547, %v3552
  %v3554 = vmul.f32 %v3548, %v3552
  %v3555 = vlaneseq
  %v3556 = vshrl.u32 %v3555, 7
  %v3557 = vsub.s32 7, %v3556
  %v3558 = vrot.slane %v2698, %v3557
  %v3559 = vadd.f32 %v3553, %v3558
  %v3560 = vadd.f32 %v3554, %v3558
  %s3561 = scalar_lea.vmem %s5, 16
  %3562 = vst.msk [vmem:[%s3561] sm:$0xff] %vm45, %v3559
  %3563 = vst.msk [vmem:[%s3561 + $0x8] sm:$0xff] %vm45, %v3560
  // Predicated region
  $region22: #{dpr_combined_forward.1} parent=0 // pred_check
    _
  $region23: #{dpr_combined_forward.1} parent=0 // pred_check_branch
    %3565 = sbr.rel (0) target = $region25
  $region24: #{dpr_combined_forward.1} parent=0 // pred_region
    _
  $region25: #{dpr_combined_forward.1} parent=0 // pred_fallthru
    _
  // Predicated region
  $region26: #{dpr_combined_forward.1} parent=0 // pred_check
    _
  $region27: #{dpr_combined_forward.1} parent=0 // pred_check_branch
    %3567 = sbr.rel (0) target = $region29
  $region28: #{dpr_combined_forward.1} parent=0 // pred_region
    _
  $region29: #{dpr_combined_forward.1} parent=0 // pred_fallthru
    _

</llo_original>
